<compile_context>
chip_gen: v7x
topology: tpu7x:2x2x1
jax: 0.10.0
libtpu: 0.0.40
codegen_flags: <defaults>
</compile_context>

<pallas_src>
import functools

import jax
import jax.numpy as jnp
from jax import lax
from jax.experimental import pallas as pl
from jax.experimental.pallas import tpu as pltpu


# ----------------------------------------------------------------------------
# helpers
# ----------------------------------------------------------------------------
def _round_up(n, m):
    return ((n + m - 1) // m) * m


def _pick_tile(m, cands=(2048, 1024, 512, 256, 128)):
    """Largest candidate dividing m, preferring >= 2 grid steps (pipelining)."""
    for c in cands:
        if m % c == 0 and m // c >= 2:
            return c
    for c in cands:
        if m % c == 0:
            return c
    return m  # callers pad the point dim to a multiple of 128, so this is unreachable


def fold_bn(gamma, beta, mean, var, conv_bias=None, eps=1e-5):
    scale = gamma / jnp.sqrt(var + eps)
    cb = jnp.zeros_like(gamma) if conv_bias is None else conv_bias
    bias = (cb - mean) * scale + beta
    return scale.reshape(1, -1), bias.reshape(1, -1)


_VMEM_LIMIT = 48 * 1024 * 1024  # leaves headroom even inside v7x's 64 MiB physical VMEM


# ----------------------------------------------------------------------------
# Kernel 1: fused encoder front-end.
#   [tn, 9] input tile -> input_embedding (2x conv+BN+ReLU) -> 3 residual encoder
#   blocks -> concat(x1,x2,x3) -> conv_fuse (single K=384 matmul) + BN + LeakyReLU
#   -> write fuse tile + accumulate per-batch global max / mean pooling.
#   Intermediate 128-channel activations live only in VMEM/vregs.
# ----------------------------------------------------------------------------
def _encoder_fuse_pool_kernel(x_ref,
                              ew1_ref, es1_ref, eb1_ref, ew2_ref, es2_ref, eb2_ref,
                              rw0_ref, rs0_ref, rb0_ref,
                              rw1_ref, rs1_ref, rb1_ref,
                              rw2_ref, rs2_ref, rb2_ref,
                              fw_ref, fs_ref, fb_ref,
                              fuse_ref, max_ref, avg_ref,
                              *, inv_n, n_valid, mask):
    t = pl.program_id(1)
    xin = x_ref[0]                                               # [tn, Cin] bf16

    # ---- input_embedding: two 1x1 convs + folded BN + ReLU ----
    y = jnp.dot(xin, ew1_ref[...], preferred_element_type=jnp.float32)
    h = jnp.maximum(y * es1_ref[...] + eb1_ref[...], 0.0).astype(jnp.bfloat16)
    y = jnp.dot(h, ew2_ref[...], preferred_element_type=jnp.float32)
    h = jnp.maximum(y * es2_ref[...] + eb2_ref[...], 0.0).astype(jnp.bfloat16)

    # ---- encoder blocks: residual 1x1 conv + BN + ReLU (PVDSA_Res approximation) ----
    def res_block(hc, w_ref, s_ref, b_ref):
        z = jnp.dot(hc, w_ref[...], preferred_element_type=jnp.float32)
        z = jnp.maximum(z * s_ref[...] + b_ref[...], 0.0)
        return (hc.astype(jnp.float32) + z).astype(jnp.bfloat16)

    x1 = res_block(h, rw0_ref, rs0_ref, rb0_ref)
    x2 = res_block(x1, rw1_ref, rs1_ref, rb1_ref)
    x3 = res_block(x2, rw2_ref, rs2_ref, rb2_ref)

    # ---- conv_fuse on concat(x1,x2,x3): one K=384 MXU pass, BN, LeakyReLU(0.2) ----
    xcat = jnp.concatenate([x1, x2, x3], axis=-1)                # [tn, 384] bf16
    f = jnp.dot(xcat, fw_ref[...], preferred_element_type=jnp.float32)
    f = f * fs_ref[...] + fb_ref[...]
    f = jnp.where(f > 0.0, f, 0.2 * f)
    fuse_ref[0] = f.astype(fuse_ref.dtype)

    # ---- fused global max / mean pooling (masked if the point dim was padded) ----
    if mask:
        tn = f.shape[0]
        row = lax.broadcasted_iota(jnp.int32, (tn, 1), 0) + t * tn
        valid = row < n_valid
        f_max_src = jnp.where(valid, f, -jnp.inf)
        f_sum_src = jnp.where(valid, f, 0.0)
    else:
        f_max_src = f
        f_sum_src = f
    tmax = jnp.max(f_max_src, axis=0, keepdims=True)             # [1, Cf]
    tsum = jnp.sum(f_sum_src, axis=0, keepdims=True)

    @pl.when(t == 0)
    def _():
        max_ref[0] = tmax
        avg_ref[0] = tsum

    @pl.when(t > 0)
    def _():
        max_ref[0] = jnp.maximum(max_ref[0], tmax)
        avg_ref[0] = avg_ref[0] + tsum

    @pl.when(t == pl.num_programs(1) - 1)
    def _():
        avg_ref[0] = avg_ref[0] * inv_n


def encoder_fuse_pool(xcl, p, n_valid):
    """xcl: [B, n_pad, Cin] bf16 (channels-last, point dim padded to 128)."""
    B, n_pad, Cin = xcl.shape
    C = p["emb_w1"].shape[1]
    Cf = p["fuse_w"].shape[1]
    tn = _pick_tile(n_pad)
    kernel = functools.partial(_encoder_fuse_pool_kernel,
                               inv_n=1.0 / n_valid, n_valid=n_valid,
                               mask=(n_valid != n_pad))
    const = lambda b, t: (0, 0)
    fuse, mx, av = pl.pallas_call(
        kernel,
        out_shape=(
            jax.ShapeDtypeStruct((B, n_pad, Cf), jnp.bfloat16),
            jax.ShapeDtypeStruct((B, 1, Cf), jnp.float32),
            jax.ShapeDtypeStruct((B, 1, Cf), jnp.float32),
        ),
        grid=(B, n_pad // tn),
        in_specs=[
            pl.BlockSpec((1, tn, Cin), lambda b, t: (b, t, 0)),
            pl.BlockSpec((Cin, C), const), pl.BlockSpec((1, C), const), pl.BlockSpec((1, C), const),
            pl.BlockSpec((C, C), const), pl.BlockSpec((1, C), const), pl.BlockSpec((1, C), const),
            pl.BlockSpec((C, C), const), pl.BlockSpec((1, C), const), pl.BlockSpec((1, C), const),
            pl.BlockSpec((C, C), const), pl.BlockSpec((1, C), const), pl.BlockSpec((1, C), const),
            pl.BlockSpec((C, C), const), pl.BlockSpec((1, C), const), pl.BlockSpec((1, C), const),
            pl.BlockSpec((3 * C, Cf), const), pl.BlockSpec((1, Cf), const), pl.BlockSpec((1, Cf), const),
        ],
        out_specs=(
            pl.BlockSpec((1, tn, Cf), lambda b, t: (b, t, 0)),
            pl.BlockSpec((1, 1, Cf), lambda b, t: (b, 0, 0)),
            pl.BlockSpec((1, 1, Cf), lambda b, t: (b, 0, 0)),
        ),
        compiler_params=pltpu.CompilerParams(
            dimension_semantics=("parallel", "arbitrary"),
            vmem_limit_bytes=_VMEM_LIMIT),
    )(xcl,
      p["emb_w1"], p["emb_s1"], p["emb_b1"],
      p["emb_w2"], p["emb_s2"], p["emb_b2"],
      p["enc_w0"], p["enc_s0"], p["enc_b0"],
      p["enc_w1"], p["enc_s1"], p["enc_b1"],
      p["enc_w2"], p["enc_s2"], p["enc_b2"],
      p["fuse_w"], p["fuse_s"], p["fuse_b"])
    return fuse, mx, av


# ----------------------------------------------------------------------------
# Kernel 2: fused classifier.
#   cls1(3072->512) is split: the fuse-slice matmul runs on the MXU here, while the
#   (x_max, x_avg) slices arrive pre-reduced as a per-batch bias vector g (already
#   BN-folded).  Then cls2 (512->256) + ReLU and cls3 (256->NCP).  The logits block
#   is stored TRANSPOSED ([NCP, tn], lane-dense) so the NCW output needs no extra
#   XLA transpose pass over the full tensor.
# ----------------------------------------------------------------------------
def _classifier_kernel(fuse_ref, g_ref, w1_ref, s1_ref, w2_ref, s2_ref, b2_ref,
                       w3_ref, b3_ref, o_ref):
    x = fuse_ref[0]                                              # [tn, 1024] bf16
    y = jnp.dot(x, w1_ref[...], preferred_element_type=jnp.float32)
    y = jnp.maximum(y * s1_ref[...] + g_ref[0], 0.0)
    # Dropout(0.5) -> identity (eval mode)
    y = y.astype(w2_ref.dtype)
    z = jnp.dot(y, w2_ref[...], preferred_element_type=jnp.float32)
    z = jnp.maximum(z * s2_ref[...] + b2_ref[...], 0.0)
    z = z.astype(w3_ref.dtype)
    logits = jnp.dot(z, w3_ref[...], preferred_element_type=jnp.float32) + b3_ref[...]
    o_ref[0] = logits.T.astype(o_ref.dtype)                      # [NCP, tn]


def classifier(fuse, gvec3, p):
    B, n_pad, C = fuse.shape
    H1 = p["cls_w1_f"].shape[1]
    H2 = p["cls_w2"].shape[1]
    NCP = p["cls_w3"].shape[1]
    tn = _pick_tile(n_pad)
    const = lambda b, t: (0, 0)
    return pl.pallas_call(
        _classifier_kernel,
        out_shape=jax.ShapeDtypeStruct((B, NCP, n_pad), jnp.float32),
        grid=(B, n_pad // tn),
        in_specs=[
            pl.BlockSpec((1, tn, C), lambda b, t: (b, t, 0)),
            pl.BlockSpec((1, 1, H1), lambda b, t: (b, 0, 0)),
            pl.BlockSpec((C, H1), const),
            pl.BlockSpec((1, H1), const),
            pl.BlockSpec((H1, H2), const),
            pl.BlockSpec((1, H2), const),
            pl.BlockSpec((1, H2), const),
            pl.BlockSpec((H2, NCP), const),
            pl.BlockSpec((1, NCP), const),
        ],
        out_specs=pl.BlockSpec((1, NCP, tn), lambda b, t: (b, 0, t)),
        compiler_params=pltpu.CompilerParams(
            dimension_semantics=("parallel", "parallel"),
            vmem_limit_bytes=_VMEM_LIMIT),
    )(fuse, gvec3, p["cls_w1_f"], p["cls_s1"], p["cls_w2"], p["cls_s2"], p["cls_b2"],
      p["cls_w3"], p["cls_b3"])


# ----------------------------------------------------------------------------
# Parameters (deterministic synthetic init; BN folded into scale/bias)
# ----------------------------------------------------------------------------
def init_params(key, num_classes, in_channels=9, embed=128, n_blocks=3, fuse_out=1024):
    keys = iter(jax.random.split(key, 64))

    def w(cin, cout, s=0.05, dtype=jnp.bfloat16):
        return (s * jax.random.normal(next(keys), (cin, cout),
                                      dtype=jnp.float32)).astype(dtype)

    def bn(c):
        gamma = 1.0 + 0.1 * jax.random.normal(next(keys), (c,), dtype=jnp.float32)
        beta = 0.1 * jax.random.normal(next(keys), (c,), dtype=jnp.float32)
        mean = 0.1 * jax.random.normal(next(keys), (c,), dtype=jnp.float32)
        var = jnp.abs(1.0 + 0.1 * jax.random.normal(next(keys), (c,), dtype=jnp.float32))
        return gamma, beta, mean, var

    p = {}
    # input_embedding: Conv1d(9,128,1,bias=False)+BN+ReLU, Conv1d(128,128)+BN+ReLU
    p["emb_w1"] = w(in_channels, embed)
    p["emb_s1"], p["emb_b1"] = fold_bn(*bn(embed))
    p["emb_w2"] = w(embed, embed)
    p["emb_s2"], p["emb_b2"] = fold_bn(*bn(embed))
    # encoder blocks (approximation of PVDSA_Res, see TODO in forward)
    for i in range(n_blocks):
        p[f"enc_w{i}"] = w(embed, embed)
        p[f"enc_s{i}"], p[f"enc_b{i}"] = fold_bn(*bn(embed))
    # conv_fuse: Conv1d(384,1024,1,bias=False) as a single K=384 weight
    p["fuse_w"] = w(n_blocks * embed, fuse_out)
    p["fuse_s"], p["fuse_b"] = fold_bn(*bn(fuse_out))
    # classifier conv1 (3072->512): fuse-slice on MXU, max/avg slices applied as a
    # per-batch bias in plain JAX (bf16 weights: they feed tiny [B,1024] dots)
    p["cls_w1_f"] = w(fuse_out, 512)
    p["cls_w1_max"] = w(fuse_out, 512)
    p["cls_w1_avg"] = w(fuse_out, 512)
    b1 = 0.05 * jax.random.normal(next(keys), (512,), dtype=jnp.float32)
    p["cls_s1"], p["cls_b1"] = fold_bn(*bn(512), conv_bias=b1)
    # classifier conv2 (512->256)+BN+ReLU
    p["cls_w2"] = w(512, 256)
    b2 = 0.05 * jax.random.normal(next(keys), (256,), dtype=jnp.float32)
    p["cls_s2"], p["cls_b2"] = fold_bn(*bn(256), conv_bias=b2)
    # classifier conv3 (256->num_classes), channels padded to 128 lanes
    ncp = max(128, _round_up(num_classes, 128))
    w3 = 0.05 * jax.random.normal(next(keys), (256, num_classes), dtype=jnp.float32)
    b3 = 0.05 * jax.random.normal(next(keys), (num_classes,), dtype=jnp.float32)
    p["cls_w3"] = jnp.zeros((256, ncp), jnp.bfloat16).at[:, :num_classes].set(
        w3.astype(jnp.bfloat16))
    p["cls_b3"] = jnp.zeros((1, ncp), jnp.float32).at[0, :num_classes].set(b3)
    return p


# ----------------------------------------------------------------------------
# Forward pass (PVDST_semseg.forward)
# ----------------------------------------------------------------------------
def pvdst_semseg_forward(params, inputs, num_classes, in_channels=9):
    """inputs: [B, C, N] (PyTorch NCW). Returns ([B, num_classes, N], None)."""
    B, _, N = inputs.shape
    x = inputs[:, :in_channels, :]                            # [B, 9, N]

    # TODO(synk): knn_point(16, xyz, xyz) and the PVDSA_Res internals (voxel branch,
    # kNN grouping, dual-stream attention) are not defined in the reference; the kNN
    # indices are only consumed by those blocks, so the dead O(N^2) kNN computation is
    # omitted and each encoder block is approximated as a residual pointwise
    # conv+BN+ReLU (res=True) with matching channels.

    xcl = jnp.transpose(x, (0, 2, 1)).astype(jnp.bfloat16)    # [B, N, 9] channels-last
    n_pad = _round_up(N, 128)
    if n_pad != N:
        xcl = jnp.pad(xcl, ((0, 0), (0, n_pad - N), (0, 0)))

    # embedding + encoder blocks + conv_fuse + LeakyReLU + max/mean pooling: 1 kernel
    fuse, x_max, x_avg = encoder_fuse_pool(xcl, params, n_valid=N)

    # Fold the (x_max, x_avg) contribution of classifier conv1 into a per-batch bias
    # (BN already folded):  out1 = (fuse @ W1_f)*s1 + gvec[b]
    xm = x_max[:, 0, :].astype(jnp.bfloat16)                  # [B, 1024]
    xa = x_avg[:, 0, :].astype(jnp.bfloat16)
    g0 = (jnp.dot(xm, params["cls_w1_max"], preferred_element_type=jnp.float32)
          + jnp.dot(xa, params["cls_w1_avg"], preferred_element_type=jnp.float32))
    gvec = g0 * params["cls_s1"] + params["cls_b1"]           # [B, 512]
    gvec3 = gvec.reshape(B, 1, -1)

    logits_t = classifier(fuse, gvec3, params)                # [B, NCP, n_pad] f32
    out = logits_t[:, :num_classes, :N]                       # [B, num_classes, N]
    return out, None


# ----------------------------------------------------------------------------
if __name__ == "__main__":
    key = jax.random.PRNGKey(0)
    k_in, k_p = jax.random.split(key)

    B, N, num_classes = 2, 128, 13            # in_channels = 3 + 6 = 9
    inputs = jax.random.normal(k_in, (B, 9, N), dtype=jnp.float32)
    params = init_params(k_p, num_classes)

    out, aux = pvdst_semseg_forward(params, inputs, num_classes)
    out = jax.block_until_ready(out)

    assert out.shape == (B, num_classes, N)
    assert aux is None
    assert bool(jnp.all(jnp.isfinite(out)))
    print("KERNEL_OK")
</pallas_src>

<mosaic_0001>
module attributes {stable_mosaic.version = 11 : i64} {
  func.func @_encoder_fuse_pool_kernel(%arg0: i32, %arg1: i32, %arg2: memref<1x128x9xbf16, #tpu.memory_space<vmem>>, %arg3: memref<9x128xbf16, #tpu.memory_space<vmem>>, %arg4: memref<1x128xf32, #tpu.memory_space<vmem>>, %arg5: memref<1x128xf32, #tpu.memory_space<vmem>>, %arg6: memref<128x128xbf16, #tpu.memory_space<vmem>>, %arg7: memref<1x128xf32, #tpu.memory_space<vmem>>, %arg8: memref<1x128xf32, #tpu.memory_space<vmem>>, %arg9: memref<128x128xbf16, #tpu.memory_space<vmem>>, %arg10: memref<1x128xf32, #tpu.memory_space<vmem>>, %arg11: memref<1x128xf32, #tpu.memory_space<vmem>>, %arg12: memref<128x128xbf16, #tpu.memory_space<vmem>>, %arg13: memref<1x128xf32, #tpu.memory_space<vmem>>, %arg14: memref<1x128xf32, #tpu.memory_space<vmem>>, %arg15: memref<128x128xbf16, #tpu.memory_space<vmem>>, %arg16: memref<1x128xf32, #tpu.memory_space<vmem>>, %arg17: memref<1x128xf32, #tpu.memory_space<vmem>>, %arg18: memref<384x1024xbf16, #tpu.memory_space<vmem>>, %arg19: memref<1x1024xf32, #tpu.memory_space<vmem>>, %arg20: memref<1x1024xf32, #tpu.memory_space<vmem>>, %arg21: memref<1x128x1024xbf16, #tpu.memory_space<vmem>>, %arg22: memref<1x1x1024xf32, #tpu.memory_space<vmem>>, %arg23: memref<1x1x1024xf32, #tpu.memory_space<vmem>>) attributes {dimension_semantics = [#tpu.dimension_semantics<parallel>, #tpu.dimension_semantics<arbitrary>], iteration_bounds = array<i64: 2, 1>, scalar_prefetch = 0 : i64, scratch_operands = 0 : i64, tpu.core_type = #tpu.core_type<tc>, window_params = [{transform_indices = @transform_0, window_bounds = array<i64: 1, 128, 9>}, {pipeline_mode = #tpu.pipeline_mode<synchronous>, transform_indices = @transform_1, window_bounds = array<i64: 9, 128>}, {pipeline_mode = #tpu.pipeline_mode<synchronous>, transform_indices = @transform_2, window_bounds = array<i64: 1, 128>}, {pipeline_mode = #tpu.pipeline_mode<synchronous>, transform_indices = @transform_3, window_bounds = array<i64: 1, 128>}, {pipeline_mode = #tpu.pipeline_mode<synchronous>, transform_indices = @transform_4, window_bounds = array<i64: 128, 128>}, {pipeline_mode = #tpu.pipeline_mode<synchronous>, transform_indices = @transform_5, window_bounds = array<i64: 1, 128>}, {pipeline_mode = #tpu.pipeline_mode<synchronous>, transform_indices = @transform_6, window_bounds = array<i64: 1, 128>}, {pipeline_mode = #tpu.pipeline_mode<synchronous>, transform_indices = @transform_7, window_bounds = array<i64: 128, 128>}, {pipeline_mode = #tpu.pipeline_mode<synchronous>, transform_indices = @transform_8, window_bounds = array<i64: 1, 128>}, {pipeline_mode = #tpu.pipeline_mode<synchronous>, transform_indices = @transform_9, window_bounds = array<i64: 1, 128>}, {pipeline_mode = #tpu.pipeline_mode<synchronous>, transform_indices = @transform_10, window_bounds = array<i64: 128, 128>}, {pipeline_mode = #tpu.pipeline_mode<synchronous>, transform_indices = @transform_11, window_bounds = array<i64: 1, 128>}, {pipeline_mode = #tpu.pipeline_mode<synchronous>, transform_indices = @transform_12, window_bounds = array<i64: 1, 128>}, {pipeline_mode = #tpu.pipeline_mode<synchronous>, transform_indices = @transform_13, window_bounds = array<i64: 128, 128>}, {pipeline_mode = #tpu.pipeline_mode<synchronous>, transform_indices = @transform_14, window_bounds = array<i64: 1, 128>}, {pipeline_mode = #tpu.pipeline_mode<synchronous>, transform_indices = @transform_15, window_bounds = array<i64: 1, 128>}, {pipeline_mode = #tpu.pipeline_mode<synchronous>, transform_indices = @transform_16, window_bounds = array<i64: 384, 1024>}, {pipeline_mode = #tpu.pipeline_mode<synchronous>, transform_indices = @transform_17, window_bounds = array<i64: 1, 1024>}, {pipeline_mode = #tpu.pipeline_mode<synchronous>, transform_indices = @transform_18, window_bounds = array<i64: 1, 1024>}, {transform_indices = @transform_19, window_bounds = array<i64: 1, 128, 1024>}, {transform_indices = @transform_20, window_bounds = array<i64: 1, 1, 1024>}, {transform_indices = @transform_21, window_bounds = array<i64: 1, 1, 1024>}]} {
    %c0 = arith.constant 0 : index
    %c0_0 = arith.constant 0 : index
    %c0_1 = arith.constant 0 : index
    %0 = vector.load %arg2[%c0, %c0_0, %c0_1] : memref<1x128x9xbf16, #tpu.memory_space<vmem>>, vector<1x128x9xbf16>
    %1 = vector.shape_cast %0 : vector<1x128x9xbf16> to vector<128x9xbf16>
    %c0_2 = arith.constant 0 : index
    %c0_3 = arith.constant 0 : index
    %2 = vector.load %arg3[%c0_2, %c0_3] : memref<9x128xbf16, #tpu.memory_space<vmem>>, vector<9x128xbf16>
    %cst = arith.constant dense<0.000000e+00> : vector<128x128xf32>
    %3 = tpu.matmul %1, %2, %cst {dimension_numbers = #tpu.dot_dimension_numbers<[1], [0], [0], [1], [0, 0, 1, 1], [], []>} : vector<128x9xbf16>, vector<9x128xbf16>, vector<128x128xf32> -> vector<128x128xf32>
    %c0_4 = arith.constant 0 : index
    %c0_5 = arith.constant 0 : index
    %4 = vector.load %arg4[%c0_4, %c0_5] : memref<1x128xf32, #tpu.memory_space<vmem>>, vector<1x128xf32>
    %5 = vector.broadcast %4 : vector<1x128xf32> to vector<128x128xf32>
    %6 = arith.mulf %3, %5 : vector<128x128xf32>
    %c0_6 = arith.constant 0 : index
    %c0_7 = arith.constant 0 : index
    %7 = vector.load %arg5[%c0_6, %c0_7] : memref<1x128xf32, #tpu.memory_space<vmem>>, vector<1x128xf32>
    %8 = vector.broadcast %7 : vector<1x128xf32> to vector<128x128xf32>
    %9 = arith.addf %6, %8 : vector<128x128xf32>
    %cst_8 = arith.constant 0.000000e+00 : f32
    %10 = vector.broadcast %cst_8 : f32 to vector<128x128xf32>
    %11 = arith.maximumf %9, %10 : vector<128x128xf32>
    %12 = arith.truncf %11 : vector<128x128xf32> to vector<128x128xbf16>
    %c0_9 = arith.constant 0 : index
    %c0_10 = arith.constant 0 : index
    %13 = vector.load %arg6[%c0_9, %c0_10] : memref<128x128xbf16, #tpu.memory_space<vmem>>, vector<128x128xbf16>
    %cst_11 = arith.constant dense<0.000000e+00> : vector<128x128xf32>
    %14 = tpu.matmul %12, %13, %cst_11 {dimension_numbers = #tpu.dot_dimension_numbers<[1], [0], [0], [1], [0, 0, 1, 1], [], []>} : vector<128x128xbf16>, vector<128x128xbf16>, vector<128x128xf32> -> vector<128x128xf32>
    %c0_12 = arith.constant 0 : index
    %c0_13 = arith.constant 0 : index
    %15 = vector.load %arg7[%c0_12, %c0_13] : memref<1x128xf32, #tpu.memory_space<vmem>>, vector<1x128xf32>
    %16 = vector.broadcast %15 : vector<1x128xf32> to vector<128x128xf32>
    %17 = arith.mulf %14, %16 : vector<128x128xf32>
    %c0_14 = arith.constant 0 : index
    %c0_15 = arith.constant 0 : index
    %18 = vector.load %arg8[%c0_14, %c0_15] : memref<1x128xf32, #tpu.memory_space<vmem>>, vector<1x128xf32>
    %19 = vector.broadcast %18 : vector<1x128xf32> to vector<128x128xf32>
    %20 = arith.addf %17, %19 : vector<128x128xf32>
    %cst_16 = arith.constant 0.000000e+00 : f32
    %21 = vector.broadcast %cst_16 : f32 to vector<128x128xf32>
    %22 = arith.maximumf %20, %21 : vector<128x128xf32>
    %23 = arith.truncf %22 : vector<128x128xf32> to vector<128x128xbf16>
    %c0_17 = arith.constant 0 : index
    %c0_18 = arith.constant 0 : index
    %24 = vector.load %arg9[%c0_17, %c0_18] : memref<128x128xbf16, #tpu.memory_space<vmem>>, vector<128x128xbf16>
    %cst_19 = arith.constant dense<0.000000e+00> : vector<128x128xf32>
    %25 = tpu.matmul %23, %24, %cst_19 {dimension_numbers = #tpu.dot_dimension_numbers<[1], [0], [0], [1], [0, 0, 1, 1], [], []>} : vector<128x128xbf16>, vector<128x128xbf16>, vector<128x128xf32> -> vector<128x128xf32>
    %c0_20 = arith.constant 0 : index
    %c0_21 = arith.constant 0 : index
    %26 = vector.load %arg10[%c0_20, %c0_21] : memref<1x128xf32, #tpu.memory_space<vmem>>, vector<1x128xf32>
    %27 = vector.broadcast %26 : vector<1x128xf32> to vector<128x128xf32>
    %28 = arith.mulf %25, %27 : vector<128x128xf32>
    %c0_22 = arith.constant 0 : index
    %c0_23 = arith.constant 0 : index
    %29 = vector.load %arg11[%c0_22, %c0_23] : memref<1x128xf32, #tpu.memory_space<vmem>>, vector<1x128xf32>
    %30 = vector.broadcast %29 : vector<1x128xf32> to vector<128x128xf32>
    %31 = arith.addf %28, %30 : vector<128x128xf32>
    %cst_24 = arith.constant 0.000000e+00 : f32
    %32 = vector.broadcast %cst_24 : f32 to vector<128x128xf32>
    %33 = arith.maximumf %31, %32 : vector<128x128xf32>
    %34 = arith.extf %23 : vector<128x128xbf16> to vector<128x128xf32>
    %35 = arith.addf %34, %33 : vector<128x128xf32>
    %36 = arith.truncf %35 : vector<128x128xf32> to vector<128x128xbf16>
    %c0_25 = arith.constant 0 : index
    %c0_26 = arith.constant 0 : index
    %37 = vector.load %arg12[%c0_25, %c0_26] : memref<128x128xbf16, #tpu.memory_space<vmem>>, vector<128x128xbf16>
    %cst_27 = arith.constant dense<0.000000e+00> : vector<128x128xf32>
    %38 = tpu.matmul %36, %37, %cst_27 {dimension_numbers = #tpu.dot_dimension_numbers<[1], [0], [0], [1], [0, 0, 1, 1], [], []>} : vector<128x128xbf16>, vector<128x128xbf16>, vector<128x128xf32> -> vector<128x128xf32>
    %c0_28 = arith.constant 0 : index
    %c0_29 = arith.constant 0 : index
    %39 = vector.load %arg13[%c0_28, %c0_29] : memref<1x128xf32, #tpu.memory_space<vmem>>, vector<1x128xf32>
    %40 = vector.broadcast %39 : vector<1x128xf32> to vector<128x128xf32>
    %41 = arith.mulf %38, %40 : vector<128x128xf32>
    %c0_30 = arith.constant 0 : index
    %c0_31 = arith.constant 0 : index
    %42 = vector.load %arg14[%c0_30, %c0_31] : memref<1x128xf32, #tpu.memory_space<vmem>>, vector<1x128xf32>
    %43 = vector.broadcast %42 : vector<1x128xf32> to vector<128x128xf32>
    %44 = arith.addf %41, %43 : vector<128x128xf32>
    %cst_32 = arith.constant 0.000000e+00 : f32
    %45 = vector.broadcast %cst_32 : f32 to vector<128x128xf32>
    %46 = arith.maximumf %44, %45 : vector<128x128xf32>
    %47 = arith.extf %36 : vector<128x128xbf16> to vector<128x128xf32>
    %48 = arith.addf %47, %46 : vector<128x128xf32>
    %49 = arith.truncf %48 : vector<128x128xf32> to vector<128x128xbf16>
    %c0_33 = arith.constant 0 : index
    %c0_34 = arith.constant 0 : index
    %50 = vector.load %arg15[%c0_33, %c0_34] : memref<128x128xbf16, #tpu.memory_space<vmem>>, vector<128x128xbf16>
    %cst_35 = arith.constant dense<0.000000e+00> : vector<128x128xf32>
    %51 = tpu.matmul %49, %50, %cst_35 {dimension_numbers = #tpu.dot_dimension_numbers<[1], [0], [0], [1], [0, 0, 1, 1], [], []>} : vector<128x128xbf16>, vector<128x128xbf16>, vector<128x128xf32> -> vector<128x128xf32>
    %c0_36 = arith.constant 0 : index
    %c0_37 = arith.constant 0 : index
    %52 = vector.load %arg16[%c0_36, %c0_37] : memref<1x128xf32, #tpu.memory_space<vmem>>, vector<1x128xf32>
    %53 = vector.broadcast %52 : vector<1x128xf32> to vector<128x128xf32>
    %54 = arith.mulf %51, %53 : vector<128x128xf32>
    %c0_38 = arith.constant 0 : index
    %c0_39 = arith.constant 0 : index
    %55 = vector.load %arg17[%c0_38, %c0_39] : memref<1x128xf32, #tpu.memory_space<vmem>>, vector<1x128xf32>
    %56 = vector.broadcast %55 : vector<1x128xf32> to vector<128x128xf32>
    %57 = arith.addf %54, %56 : vector<128x128xf32>
    %cst_40 = arith.constant 0.000000e+00 : f32
    %58 = vector.broadcast %cst_40 : f32 to vector<128x128xf32>
    %59 = arith.maximumf %57, %58 : vector<128x128xf32>
    %60 = arith.extf %49 : vector<128x128xbf16> to vector<128x128xf32>
    %61 = arith.addf %60, %59 : vector<128x128xf32>
    %62 = arith.truncf %61 : vector<128x128xf32> to vector<128x128xbf16>
    %63 = tpu.concatenate %36, %49, %62 in 1 : vector<128x128xbf16>, vector<128x128xbf16>, vector<128x128xbf16> -> vector<128x384xbf16>
    %c0_41 = arith.constant 0 : index
    %c0_42 = arith.constant 0 : index
    %64 = vector.load %arg18[%c0_41, %c0_42] : memref<384x1024xbf16, #tpu.memory_space<vmem>>, vector<384x1024xbf16>
    %cst_43 = arith.constant dense<0.000000e+00> : vector<128x1024xf32>
    %65 = tpu.matmul %63, %64, %cst_43 {dimension_numbers = #tpu.dot_dimension_numbers<[1], [0], [0], [1], [0, 0, 1, 1], [], []>} : vector<128x384xbf16>, vector<384x1024xbf16>, vector<128x1024xf32> -> vector<128x1024xf32>
    %c0_44 = arith.constant 0 : index
    %c0_45 = arith.constant 0 : index
    %66 = vector.load %arg19[%c0_44, %c0_45] : memref<1x1024xf32, #tpu.memory_space<vmem>>, vector<1x1024xf32>
    %67 = vector.broadcast %66 : vector<1x1024xf32> to vector<128x1024xf32>
    %68 = arith.mulf %65, %67 : vector<128x1024xf32>
    %c0_46 = arith.constant 0 : index
    %c0_47 = arith.constant 0 : index
    %69 = vector.load %arg20[%c0_46, %c0_47] : memref<1x1024xf32, #tpu.memory_space<vmem>>, vector<1x1024xf32>
    %70 = vector.broadcast %69 : vector<1x1024xf32> to vector<128x1024xf32>
    %71 = arith.addf %68, %70 : vector<128x1024xf32>
    %cst_48 = arith.constant 0.000000e+00 : f32
    %72 = vector.broadcast %cst_48 : f32 to vector<128x1024xf32>
    %73 = arith.cmpf ogt, %71, %72 : vector<128x1024xf32>
    %cst_49 = arith.constant 2.000000e-01 : f32
    %74 = vector.broadcast %cst_49 : f32 to vector<128x1024xf32>
    %75 = arith.mulf %74, %71 : vector<128x1024xf32>
    %76 = arith.select %73, %71, %75 : vector<128x1024xi1>, vector<128x1024xf32>
    %77 = arith.truncf %76 : vector<128x1024xf32> to vector<128x1024xbf16>
    %c0_50 = arith.constant 0 : index
    %c0_51 = arith.constant 0 : index
    %c0_52 = arith.constant 0 : index
    %78 = vector.load %arg21[%c0_50, %c0_51, %c0_52] : memref<1x128x1024xbf16, #tpu.memory_space<vmem>>, vector<1x128x1024xbf16>
    %79 = vector.shape_cast %78 : vector<1x128x1024xbf16> to vector<128x1024xbf16>
    %80 = vector.shape_cast %77 : vector<128x1024xbf16> to vector<1x128x1024xbf16>
    tpu.vector_store %arg21[%c0_50, %c0_51, %c0_52], %80 {strides = array<i32>} : memref<1x128x1024xbf16, #tpu.memory_space<vmem>>, vector<1x128x1024xbf16>,
    %cst_53 = arith.constant dense<0xFF800000> : vector<1024xf32>
    %81 = vector.multi_reduction <maximumf>, %76, %cst_53 [0] : vector<128x1024xf32> to vector<1024xf32>
    %82 = vector.shape_cast %81 : vector<1024xf32> to vector<1x1024xf32>
    %cst_54 = arith.constant dense<0.000000e+00> : vector<1024xf32>
    %83 = vector.multi_reduction <add>, %76, %cst_54 [0] : vector<128x1024xf32> to vector<1024xf32>
    %84 = vector.shape_cast %83 : vector<1024xf32> to vector<1x1024xf32>
    %c0_i32 = arith.constant 0 : i32
    %85 = arith.cmpi eq, %arg1, %c0_i32 : i32
    %86 = arith.extui %85 : i1 to i32
    %c0_i32_55 = arith.constant 0 : i32
    %87 = arith.cmpi ne, %86, %c0_i32_55 : i32
    scf.if %87 {
      %c0_60 = arith.constant 0 : index
      %c0_61 = arith.constant 0 : index
      %c0_62 = arith.constant 0 : index
      %94 = vector.load %arg22[%c0_60, %c0_61, %c0_62] : memref<1x1x1024xf32, #tpu.memory_space<vmem>>, vector<1x1x1024xf32>
      %95 = vector.shape_cast %94 : vector<1x1x1024xf32> to vector<1x1024xf32>
      %96 = vector.shape_cast %82 : vector<1x1024xf32> to vector<1x1x1024xf32>
      tpu.vector_store %arg22[%c0_60, %c0_61, %c0_62], %96 {strides = array<i32>} : memref<1x1x1024xf32, #tpu.memory_space<vmem>>, vector<1x1x1024xf32>,
      %c0_63 = arith.constant 0 : index
      %c0_64 = arith.constant 0 : index
      %c0_65 = arith.constant 0 : index
      %97 = vector.load %arg23[%c0_63, %c0_64, %c0_65] : memref<1x1x1024xf32, #tpu.memory_space<vmem>>, vector<1x1x1024xf32>
      %98 = vector.shape_cast %97 : vector<1x1x1024xf32> to vector<1x1024xf32>
      %99 = vector.shape_cast %84 : vector<1x1024xf32> to vector<1x1x1024xf32>
      tpu.vector_store %arg23[%c0_63, %c0_64, %c0_65], %99 {strides = array<i32>} : memref<1x1x1024xf32, #tpu.memory_space<vmem>>, vector<1x1x1024xf32>,
    } else {
    }
    %c0_i32_56 = arith.constant 0 : i32
    %88 = arith.cmpi sgt, %arg1, %c0_i32_56 : i32
    %89 = arith.extui %88 : i1 to i32
    %c0_i32_57 = arith.constant 0 : i32
    %90 = arith.cmpi ne, %89, %c0_i32_57 : i32
    scf.if %90 {
      %c0_60 = arith.constant 0 : index
      %c0_61 = arith.constant 0 : index
      %c0_62 = arith.constant 0 : index
      %94 = vector.load %arg22[%c0_60, %c0_61, %c0_62] : memref<1x1x1024xf32, #tpu.memory_space<vmem>>, vector<1x1x1024xf32>
      %95 = vector.shape_cast %94 : vector<1x1x1024xf32> to vector<1x1024xf32>
      %96 = arith.maximumf %95, %82 : vector<1x1024xf32>
      %c0_63 = arith.constant 0 : index
      %c0_64 = arith.constant 0 : index
      %c0_65 = arith.constant 0 : index
      %97 = vector.load %arg22[%c0_63, %c0_64, %c0_65] : memref<1x1x1024xf32, #tpu.memory_space<vmem>>, vector<1x1x1024xf32>
      %98 = vector.shape_cast %97 : vector<1x1x1024xf32> to vector<1x1024xf32>
      %99 = vector.shape_cast %96 : vector<1x1024xf32> to vector<1x1x1024xf32>
      tpu.vector_store %arg22[%c0_63, %c0_64, %c0_65], %99 {strides = array<i32>} : memref<1x1x1024xf32, #tpu.memory_space<vmem>>, vector<1x1x1024xf32>,
      %c0_66 = arith.constant 0 : index
      %c0_67 = arith.constant 0 : index
      %c0_68 = arith.constant 0 : index
      %100 = vector.load %arg23[%c0_66, %c0_67, %c0_68] : memref<1x1x1024xf32, #tpu.memory_space<vmem>>, vector<1x1x1024xf32>
      %101 = vector.shape_cast %100 : vector<1x1x1024xf32> to vector<1x1024xf32>
      %102 = arith.addf %101, %84 : vector<1x1024xf32>
      %c0_69 = arith.constant 0 : index
      %c0_70 = arith.constant 0 : index
      %c0_71 = arith.constant 0 : index
      %103 = vector.load %arg23[%c0_69, %c0_70, %c0_71] : memref<1x1x1024xf32, #tpu.memory_space<vmem>>, vector<1x1x1024xf32>
      %104 = vector.shape_cast %103 : vector<1x1x1024xf32> to vector<1x1024xf32>
      %105 = vector.shape_cast %102 : vector<1x1024xf32> to vector<1x1x1024xf32>
      tpu.vector_store %arg23[%c0_69, %c0_70, %c0_71], %105 {strides = array<i32>} : memref<1x1x1024xf32, #tpu.memory_space<vmem>>, vector<1x1x1024xf32>,
    } else {
    }
    %c0_i32_58 = arith.constant 0 : i32
    %91 = arith.cmpi eq, %arg1, %c0_i32_58 : i32
    %92 = arith.extui %91 : i1 to i32
    %c0_i32_59 = arith.constant 0 : i32
    %93 = arith.cmpi ne, %92, %c0_i32_59 : i32
    scf.if %93 {
      %c0_60 = arith.constant 0 : index
      %c0_61 = arith.constant 0 : index
      %c0_62 = arith.constant 0 : index
      %94 = vector.load %arg23[%c0_60, %c0_61, %c0_62] : memref<1x1x1024xf32, #tpu.memory_space<vmem>>, vector<1x1x1024xf32>
      %95 = vector.shape_cast %94 : vector<1x1x1024xf32> to vector<1x1024xf32>
      %cst_63 = arith.constant 7.812500e-03 : f32
      %96 = vector.broadcast %cst_63 : f32 to vector<1x1024xf32>
      %97 = arith.mulf %95, %96 : vector<1x1024xf32>
      %c0_64 = arith.constant 0 : index
      %c0_65 = arith.constant 0 : index
      %c0_66 = arith.constant 0 : index
      %98 = vector.load %arg23[%c0_64, %c0_65, %c0_66] : memref<1x1x1024xf32, #tpu.memory_space<vmem>>, vector<1x1x1024xf32>
      %99 = vector.shape_cast %98 : vector<1x1x1024xf32> to vector<1x1024xf32>
      %100 = vector.shape_cast %97 : vector<1x1024xf32> to vector<1x1x1024xf32>
      tpu.vector_store %arg23[%c0_64, %c0_65, %c0_66], %100 {strides = array<i32>} : memref<1x1x1024xf32, #tpu.memory_space<vmem>>, vector<1x1x1024xf32>,
    } else {
    }
    return
  }
  func.func @transform_0(%arg0: i32, %arg1: i32) -> (i32, i32, i32) {
    %c0_i32 = arith.constant 0 : i32
    %c0_i32_0 = arith.constant 0 : i32
    return %arg0, %arg1, %c0_i32 : i32, i32, i32
  }
  func.func @transform_1(%arg0: i32, %arg1: i32) -> (i32, i32) {
    %c0_i32 = arith.constant 0 : i32
    %c0_i32_0 = arith.constant 0 : i32
    %c0_i32_1 = arith.constant 0 : i32
    return %c0_i32, %c0_i32_0 : i32, i32
  }
  func.func @transform_2(%arg0: i32, %arg1: i32) -> (i32, i32) {
    %c0_i32 = arith.constant 0 : i32
    %c0_i32_0 = arith.constant 0 : i32
    %c0_i32_1 = arith.constant 0 : i32
    return %c0_i32, %c0_i32_0 : i32, i32
  }
  func.func @transform_3(%arg0: i32, %arg1: i32) -> (i32, i32) {
    %c0_i32 = arith.constant 0 : i32
    %c0_i32_0 = arith.constant 0 : i32
    %c0_i32_1 = arith.constant 0 : i32
    return %c0_i32, %c0_i32_0 : i32, i32
  }
  func.func @transform_4(%arg0: i32, %arg1: i32) -> (i32, i32) {
    %c0_i32 = arith.constant 0 : i32
    %c0_i32_0 = arith.constant 0 : i32
    %c0_i32_1 = arith.constant 0 : i32
    return %c0_i32, %c0_i32_0 : i32, i32
  }
  func.func @transform_5(%arg0: i32, %arg1: i32) -> (i32, i32) {
    %c0_i32 = arith.constant 0 : i32
    %c0_i32_0 = arith.constant 0 : i32
    %c0_i32_1 = arith.constant 0 : i32
    return %c0_i32, %c0_i32_0 : i32, i32
  }
  func.func @transform_6(%arg0: i32, %arg1: i32) -> (i32, i32) {
    %c0_i32 = arith.constant 0 : i32
    %c0_i32_0 = arith.constant 0 : i32
    %c0_i32_1 = arith.constant 0 : i32
    return %c0_i32, %c0_i32_0 : i32, i32
  }
  func.func @transform_7(%arg0: i32, %arg1: i32) -> (i32, i32) {
    %c0_i32 = arith.constant 0 : i32
    %c0_i32_0 = arith.constant 0 : i32
    %c0_i32_1 = arith.constant 0 : i32
    return %c0_i32, %c0_i32_0 : i32, i32
  }
  func.func @transform_8(%arg0: i32, %arg1: i32) -> (i32, i32) {
    %c0_i32 = arith.constant 0 : i32
    %c0_i32_0 = arith.constant 0 : i32
    %c0_i32_1 = arith.constant 0 : i32
    return %c0_i32, %c0_i32_0 : i32, i32
  }
  func.func @transform_9(%arg0: i32, %arg1: i32) -> (i32, i32) {
    %c0_i32 = arith.constant 0 : i32
    %c0_i32_0 = arith.constant 0 : i32
    %c0_i32_1 = arith.constant 0 : i32
    return %c0_i32, %c0_i32_0 : i32, i32
  }
  func.func @transform_10(%arg0: i32, %arg1: i32) -> (i32, i32) {
    %c0_i32 = arith.constant 0 : i32
    %c0_i32_0 = arith.constant 0 : i32
    %c0_i32_1 = arith.constant 0 : i32
    return %c0_i32, %c0_i32_0 : i32, i32
  }
  func.func @transform_11(%arg0: i32, %arg1: i32) -> (i32, i32) {
    %c0_i32 = arith.constant 0 : i32
    %c0_i32_0 = arith.constant 0 : i32
    %c0_i32_1 = arith.constant 0 : i32
    return %c0_i32, %c0_i32_0 : i32, i32
  }
  func.func @transform_12(%arg0: i32, %arg1: i32) -> (i32, i32) {
    %c0_i32 = arith.constant 0 : i32
    %c0_i32_0 = arith.constant 0 : i32
    %c0_i32_1 = arith.constant 0 : i32
    return %c0_i32, %c0_i32_0 : i32, i32
  }
  func.func @transform_13(%arg0: i32, %arg1: i32) -> (i32, i32) {
    %c0_i32 = arith.constant 0 : i32
    %c0_i32_0 = arith.constant 0 : i32
    %c0_i32_1 = arith.constant 0 : i32
    return %c0_i32, %c0_i32_0 : i32, i32
  }
  func.func @transform_14(%arg0: i32, %arg1: i32) -> (i32, i32) {
    %c0_i32 = arith.constant 0 : i32
    %c0_i32_0 = arith.constant 0 : i32
    %c0_i32_1 = arith.constant 0 : i32
    return %c0_i32, %c0_i32_0 : i32, i32
  }
  func.func @transform_15(%arg0: i32, %arg1: i32) -> (i32, i32) {
    %c0_i32 = arith.constant 0 : i32
    %c0_i32_0 = arith.constant 0 : i32
    %c0_i32_1 = arith.constant 0 : i32
    return %c0_i32, %c0_i32_0 : i32, i32
  }
  func.func @transform_16(%arg0: i32, %arg1: i32) -> (i32, i32) {
    %c0_i32 = arith.constant 0 : i32
    %c0_i32_0 = arith.constant 0 : i32
    %c0_i32_1 = arith.constant 0 : i32
    return %c0_i32, %c0_i32_0 : i32, i32
  }
  func.func @transform_17(%arg0: i32, %arg1: i32) -> (i32, i32) {
    %c0_i32 = arith.constant 0 : i32
    %c0_i32_0 = arith.constant 0 : i32
    %c0_i32_1 = arith.constant 0 : i32
    return %c0_i32, %c0_i32_0 : i32, i32
  }
  func.func @transform_18(%arg0: i32, %arg1: i32) -> (i32, i32) {
    %c0_i32 = arith.constant 0 : i32
    %c0_i32_0 = arith.constant 0 : i32
    %c0_i32_1 = arith.constant 0 : i32
    return %c0_i32, %c0_i32_0 : i32, i32
  }
  func.func @transform_19(%arg0: i32, %arg1: i32) -> (i32, i32, i32) {
    %c0_i32 = arith.constant 0 : i32
    %c0_i32_0 = arith.constant 0 : i32
    return %arg0, %arg1, %c0_i32 : i32, i32, i32
  }
  func.func @transform_20(%arg0: i32, %arg1: i32) -> (i32, i32, i32) {
    %c0_i32 = arith.constant 0 : i32
    %c0_i32_0 = arith.constant 0 : i32
    %c0_i32_1 = arith.constant 0 : i32
    return %arg0, %c0_i32, %c0_i32_0 : i32, i32, i32
  }
  func.func @transform_21(%arg0: i32, %arg1: i32) -> (i32, i32, i32) {
    %c0_i32 = arith.constant 0 : i32
    %c0_i32_0 = arith.constant 0 : i32
    %c0_i32_1 = arith.constant 0 : i32
    return %arg0, %c0_i32, %c0_i32_0 : i32, i32, i32
  }
}

</mosaic_0001>

<llo_original>
// kernel: tpu_custom_call.1
$region0: #{tpu_custom_call.1}
  #allocation0 [shape = 'u32[]', space=smem, size = 0x4, offset = 0x4, fixed_abs, tag = 'smem constant byte address 0x4 - core index']
  #allocation1 [shape = 'u32[144,128]{1,0:T(1,128)}', space=vmem, size = 0x12000, scoped, tag = 'internal scratch']
  %s0 = inlined_call_operand.vmem [shape: bf16[2,128,9], index: 0, kind: input, shape index: {}]
  %s1 = inlined_call_operand.vmem [shape: bf16[9,128], index: 1, kind: input, shape index: {}]
  %s2 = inlined_call_operand.hbm [shape: f32[1,128], index: 2, kind: input, shape index: {}]
  %s3 = inlined_call_operand.hbm [shape: f32[1,128], index: 3, kind: input, shape index: {}]
  %s4 = inlined_call_operand.vmem [shape: bf16[128,128], index: 4, kind: input, shape index: {}]
  %s5 = inlined_call_operand.vmem [shape: f32[1,128], index: 5, kind: input, shape index: {}]
  %s6 = inlined_call_operand.vmem [shape: f32[1,128], index: 6, kind: input, shape index: {}]
  %s7 = inlined_call_operand.vmem [shape: bf16[128,128], index: 7, kind: input, shape index: {}]
  %s8 = inlined_call_operand.vmem [shape: f32[1,128], index: 8, kind: input, shape index: {}]
  %s9 = inlined_call_operand.vmem [shape: f32[1,128], index: 9, kind: input, shape index: {}]
  %s10 = inlined_call_operand.hbm [shape: bf16[128,128], index: 10, kind: input, shape index: {}]
  %s11 = inlined_call_operand.vmem [shape: f32[1,128], index: 11, kind: input, shape index: {}]
  %s12 = inlined_call_operand.vmem [shape: f32[1,128], index: 12, kind: input, shape index: {}]
  %s13 = inlined_call_operand.hbm [shape: bf16[128,128], index: 13, kind: input, shape index: {}]
  %s14 = inlined_call_operand.vmem [shape: f32[1,128], index: 14, kind: input, shape index: {}]
  %s15 = inlined_call_operand.vmem [shape: f32[1,128], index: 15, kind: input, shape index: {}]
  %s16 = inlined_call_operand.hbm [shape: bf16[384,1024], index: 16, kind: input, shape index: {}]
  %s17 = inlined_call_operand.vmem [shape: f32[1,1024], index: 17, kind: input, shape index: {}]
  %s18 = inlined_call_operand.vmem [shape: f32[1,1024], index: 18, kind: input, shape index: {}]
  %s19 = inlined_call_operand.hbm [shape: bf16[2,128,1024], index: 19, kind: output, shape index: {0}]
  %s20 = inlined_call_operand.hbm [shape: f32[2,1,1024], index: 20, kind: output, shape index: {1}]
  %s21 = inlined_call_operand.hbm [shape: f32[2,1,1024], index: 21, kind: output, shape index: {2}]
  %22 = xla_tuple %s19, %s20, %s21
  %s23 = sld [smem:[#allocation0]]
  $region157: #{tpu_custom_call.1} parent=0
    _
  %s25 = ssub.s32 1, %s23
  %s26 = scalar_select 0, %s25, %s23
  $region1: #{tpu_custom_call.1} parent=0
    #allocation2 [shape = 'u8[512]{0}', space=vmem, size = 0x400, scoped, tag = 'input window, operand 2, single buffered']
    #allocation3 [shape = 's32[2]{0}', space=sflag, size = 0x8, scoped, tag = 'scoped memory for tpu_custom_call.1']
    #allocation4 [shape = 's32[2]{0}', space=sflag, size = 0x8, scoped, tag = 'scoped memory for tpu_custom_call.1']
    #allocation5 [shape = 'u8[512]{0}', space=vmem, size = 0x400, scoped, tag = 'input window, operand 3, single buffered']
    #allocation6 [shape = 's32[1]{0}', space=sflag, size = 0x4, scoped, tag = 'scoped memory for tpu_custom_call.1']
    #allocation7 [shape = 'u8[32768]{0}', space=vmem, size = 0x8000, scoped, tag = 'input window, operand 10, single buffered']
    #allocation8 [shape = 'u8[32768]{0}', space=vmem, size = 0x8000, scoped, tag = 'input window, operand 13, single buffered']
    #allocation9 [shape = 's32[1]{0}', space=sflag, size = 0x4, scoped, tag = 'scoped memory for tpu_custom_call.1']
    #allocation10 [shape = 'u8[786432]{0}', space=vmem, size = 0xc0000, scoped, tag = 'input window, operand 16, single buffered']
    #allocation11 [shape = 'u8[524288]{0}', space=vmem, size = 0x80000, scoped, tag = 'output window, operand 0']
    #allocation12 [shape = 'u8[8192]{0}', space=vmem, size = 0x2000, scoped, tag = 'output window, operand 1']
    #allocation13 [shape = 's32[2]{0}', space=sflag, size = 0x8, scoped, tag = 'scoped memory for tpu_custom_call.1']
    #allocation14 [shape = 'u8[8192]{0}', space=vmem, size = 0x2000, scoped, tag = 'output window, operand 2']
    %27 = vsyncpa [#allocation3], 0
    %28 = vsyncpa [#allocation6], 0
    %29 = vsyncpa [#allocation9], 0
    %30 = vsyncpa [#allocation4], 0
    %s31 = scalar_lea.sflag [#allocation4], 1
    %32 = vsyncpa %s31, 0
    %33 = vsyncpa [#allocation13], 0
    %s34 = scalar_lea.sflag [#allocation13], 1
    %35 = vsyncpa %s34, 0
    loop: start=0, step=1, limit=4
    $region2: #{tpu_custom_call.1} parent=1 // loop_pre_header
      _
    $region3: #{tpu_custom_call.1} parent=1 // loop_header
      %s37 = sphi 0, %s41
      %p38 = scmp.ge.s32.totalorder %s37, 4
      %s44 = sphi 0, %s56
      %s45 = sphi 0, %s52
      %s46 = sphi 0, %s44
      %s47 = sphi 0, %s45
      %s48 = sphi 0, %s46
      %s49 = sphi 0, %s47
      %s61 = sphi 0, %s63
      %s64 = sphi 0, %s61
      %s65 = sphi 0, %s64
      %s81 = sphi 0, %s65
      %s85 = sphi 0, %s85
      %s87 = sphi 0, %s85
      %s88 = sphi 0, %s87
      %s102 = sphi 0, %s88
      %s106 = sphi 0, %s106
      %s108 = sphi 0, %s106
      %s109 = sphi 0, %s108
      %s123 = sphi 0, %s109
      %s127 = sphi 0, %s127
      %s129 = sphi 0, %s127
      %s130 = sphi 0, %s129
      %s144 = sphi 0, %s130
      %s148 = sphi 0, %s148
      %s150 = sphi 0, %s148
      %s151 = sphi 0, %s150
      %s165 = sphi 0, %s151
      %s169 = sphi 0, %s169
      %s171 = sphi 0, %s169
      %s172 = sphi 0, %s171
      %s186 = sphi 0, %s172
      %s190 = sphi 0, %s190
      %s192 = sphi 0, %s190
      %s193 = sphi 0, %s192
      %s207 = sphi 0, %s193
      %s211 = sphi 0, %s211
      %s213 = sphi 0, %s211
      %s214 = sphi 0, %s213
      %s228 = sphi 0, %s214
      %s232 = sphi 0, %s232
      %s234 = sphi 0, %s232
      %s235 = sphi 0, %s234
      %s249 = sphi 0, %s235
      %s253 = sphi 0, %s253
      %s255 = sphi 0, %s253
      %s256 = sphi 0, %s255
      %s270 = sphi 0, %s256
      %s274 = sphi 0, %s274
      %s276 = sphi 0, %s274
      %s277 = sphi 0, %s276
      %s291 = sphi 0, %s277
      %s295 = sphi 0, %s295
      %s297 = sphi 0, %s295
      %s298 = sphi 0, %s297
      %s312 = sphi 0, %s298
      %s316 = sphi 0, %s316
      %s318 = sphi 0, %s316
      %s319 = sphi 0, %s318
      %s333 = sphi 0, %s319
      %s337 = sphi 0, %s337
      %s339 = sphi 0, %s337
      %s340 = sphi 0, %s339
      %s354 = sphi 0, %s340
      %s358 = sphi 0, %s358
      %s360 = sphi 0, %s358
      %s361 = sphi 0, %s360
      %s375 = sphi 0, %s361
      %s379 = sphi 0, %s379
      %s381 = sphi 0, %s379
      %s382 = sphi 0, %s381
      %s396 = sphi 0, %s382
      %s400 = sphi 0, %s400
      %s402 = sphi 0, %s400
      %s403 = sphi 0, %s402
      %s417 = sphi 0, %s403
      %s421 = sphi 0, %s421
      %s423 = sphi 0, %s421
      %s424 = sphi 0, %s423
      %s438 = sphi 0, %s424
      %s442 = sphi 0, %s442
      %s444 = sphi 0, %s442
      %s445 = sphi 0, %s444
      %s459 = sphi 0, %s445
      %s467 = sphi 0, %s469
      %s470 = sphi 0, %s467
      %s471 = sphi 0, %s470
      %s487 = sphi 0, %s471
      %s493 = sphi 0, %s495
      %s496 = sphi 0, %s493
      %s497 = sphi 0, %s496
      %s513 = sphi 0, %s497
      %s519 = sphi 0, %s521
      %s522 = sphi 0, %s519
      %s523 = sphi 0, %s522
      %s539 = sphi 0, %s523
    $region4: #{tpu_custom_call.1} parent=1 // loop_header_branch
      %40 = sbr.rel (%p38) target = $region8
    $region5: #{tpu_custom_call.1} parent=1 // loop_body
      %s42 = ssub.s32 %s37, 1
      %s43 = ssub.s32 %s37, 2
      %s50 = sadd.s32 1, %s45
      %p51 = scmp.ge.s32.totalorder %s50, 1
      %s52 = scalar_select %p51, 0, %s50
      %s53 = sadd.s32 1, %s44
      %s54 = scalar_select %p51, %s53, %s44
      %p55 = scmp.ge.s32.totalorder %s54, 2
      %s56 = scalar_select %p55, 0, %s54
      %s57 = ssub.s32 %s44, %s56
      %s58 = ssub.s32 %s45, %s52
      %s59 = sor.u32 %s57, %s58
      %p60 = scmp.eq.s32.totalorder %s59, 0
      %s62 = sadd.s32 %s61, 1
      %s63 = scalar_select %p60, %s61, %s62
      %p66 = pneg %p60
      %p67 = scmp.eq.s32.totalorder %s37, 1
      %p68 = por %p66, %p67
      %p69 = scmp.ne.s32.totalorder %s61, %s64
      %p70 = scmp.eq.s32.totalorder %s37, 0
      %p71 = por %p69, %p70
      %p72 = scmp.ne.s32.totalorder %s61, %s64
      %p73 = scmp.eq.s32.totalorder %s42, 1
      %p74 = por %p72, %p73
      %p75 = scmp.ne.s32.totalorder %s64, %s65
      %p76 = scmp.eq.s32.totalorder %s42, 0
      %p77 = por %p75, %p76
      %p78 = scmp.ne.s32.totalorder %s64, %s65
      %p79 = scmp.eq.s32.totalorder %s43, 1
      %p80 = por %p78, %p79
      %p82 = scmp.ne.s32.totalorder %s65, %s81
      %p83 = scmp.eq.s32.totalorder %s43, 0
      %p84 = por %p82, %p83
      %s86 = sadd.s32 %s85, 1
      %p89 = scmp.eq.s32.totalorder %s37, 1
      %p90 = scmp.ne.s32.totalorder %s85, %s87
      %p91 = scmp.eq.s32.totalorder %s37, 0
      %p92 = por %p90, %p91
      %p93 = scmp.ne.s32.totalorder %s85, %s87
      %p94 = scmp.eq.s32.totalorder %s42, 1
      %p95 = por %p93, %p94
      %p96 = scmp.ne.s32.totalorder %s87, %s88
      %p97 = scmp.eq.s32.totalorder %s42, 0
      %p98 = por %p96, %p97
      %p99 = scmp.ne.s32.totalorder %s87, %s88
      %p100 = scmp.eq.s32.totalorder %s43, 1
      %p101 = por %p99, %p100
      %p103 = scmp.ne.s32.totalorder %s88, %s102
      %p104 = scmp.eq.s32.totalorder %s43, 0
      %p105 = por %p103, %p104
      %s107 = sadd.s32 %s106, 1
      %p110 = scmp.eq.s32.totalorder %s37, 1
      %p111 = scmp.ne.s32.totalorder %s106, %s108
      %p112 = scmp.eq.s32.totalorder %s37, 0
      %p113 = por %p111, %p112
      %p114 = scmp.ne.s32.totalorder %s106, %s108
      %p115 = scmp.eq.s32.totalorder %s42, 1
      %p116 = por %p114, %p115
      %p117 = scmp.ne.s32.totalorder %s108, %s109
      %p118 = scmp.eq.s32.totalorder %s42, 0
      %p119 = por %p117, %p118
      %p120 = scmp.ne.s32.totalorder %s108, %s109
      %p121 = scmp.eq.s32.totalorder %s43, 1
      %p122 = por %p120, %p121
      %p124 = scmp.ne.s32.totalorder %s109, %s123
      %p125 = scmp.eq.s32.totalorder %s43, 0
      %p126 = por %p124, %p125
      %s128 = sadd.s32 %s127, 1
      %p131 = scmp.eq.s32.totalorder %s37, 1
      %p132 = scmp.ne.s32.totalorder %s127, %s129
      %p133 = scmp.eq.s32.totalorder %s37, 0
      %p134 = por %p132, %p133
      %p135 = scmp.ne.s32.totalorder %s127, %s129
      %p136 = scmp.eq.s32.totalorder %s42, 1
      %p137 = por %p135, %p136
      %p138 = scmp.ne.s32.totalorder %s129, %s130
      %p139 = scmp.eq.s32.totalorder %s42, 0
      %p140 = por %p138, %p139
      %p141 = scmp.ne.s32.totalorder %s129, %s130
      %p142 = scmp.eq.s32.totalorder %s43, 1
      %p143 = por %p141, %p142
      %p145 = scmp.ne.s32.totalorder %s130, %s144
      %p146 = scmp.eq.s32.totalorder %s43, 0
      %p147 = por %p145, %p146
      %s149 = sadd.s32 %s148, 1
      %p152 = scmp.eq.s32.totalorder %s37, 1
      %p153 = scmp.ne.s32.totalorder %s148, %s150
      %p154 = scmp.eq.s32.totalorder %s37, 0
      %p155 = por %p153, %p154
      %p156 = scmp.ne.s32.totalorder %s148, %s150
      %p157 = scmp.eq.s32.totalorder %s42, 1
      %p158 = por %p156, %p157
      %p159 = scmp.ne.s32.totalorder %s150, %s151
      %p160 = scmp.eq.s32.totalorder %s42, 0
      %p161 = por %p159, %p160
      %p162 = scmp.ne.s32.totalorder %s150, %s151
      %p163 = scmp.eq.s32.totalorder %s43, 1
      %p164 = por %p162, %p163
      %p166 = scmp.ne.s32.totalorder %s151, %s165
      %p167 = scmp.eq.s32.totalorder %s43, 0
      %p168 = por %p166, %p167
      %s170 = sadd.s32 %s169, 1
      %p173 = scmp.eq.s32.totalorder %s37, 1
      %p174 = scmp.ne.s32.totalorder %s169, %s171
      %p175 = scmp.eq.s32.totalorder %s37, 0
      %p176 = por %p174, %p175
      %p177 = scmp.ne.s32.totalorder %s169, %s171
      %p178 = scmp.eq.s32.totalorder %s42, 1
      %p179 = por %p177, %p178
      %p180 = scmp.ne.s32.totalorder %s171, %s172
      %p181 = scmp.eq.s32.totalorder %s42, 0
      %p182 = por %p180, %p181
      %p183 = scmp.ne.s32.totalorder %s171, %s172
      %p184 = scmp.eq.s32.totalorder %s43, 1
      %p185 = por %p183, %p184
      %p187 = scmp.ne.s32.totalorder %s172, %s186
      %p188 = scmp.eq.s32.totalorder %s43, 0
      %p189 = por %p187, %p188
      %s191 = sadd.s32 %s190, 1
      %p194 = scmp.eq.s32.totalorder %s37, 1
      %p195 = scmp.ne.s32.totalorder %s190, %s192
      %p196 = scmp.eq.s32.totalorder %s37, 0
      %p197 = por %p195, %p196
      %p198 = scmp.ne.s32.totalorder %s190, %s192
      %p199 = scmp.eq.s32.totalorder %s42, 1
      %p200 = por %p198, %p199
      %p201 = scmp.ne.s32.totalorder %s192, %s193
      %p202 = scmp.eq.s32.totalorder %s42, 0
      %p203 = por %p201, %p202
      %p204 = scmp.ne.s32.totalorder %s192, %s193
      %p205 = scmp.eq.s32.totalorder %s43, 1
      %p206 = por %p204, %p205
      %p208 = scmp.ne.s32.totalorder %s193, %s207
      %p209 = scmp.eq.s32.totalorder %s43, 0
      %p210 = por %p208, %p209
      %s212 = sadd.s32 %s211, 1
      %p215 = scmp.eq.s32.totalorder %s37, 1
      %p216 = scmp.ne.s32.totalorder %s211, %s213
      %p217 = scmp.eq.s32.totalorder %s37, 0
      %p218 = por %p216, %p217
      %p219 = scmp.ne.s32.totalorder %s211, %s213
      %p220 = scmp.eq.s32.totalorder %s42, 1
      %p221 = por %p219, %p220
      %p222 = scmp.ne.s32.totalorder %s213, %s214
      %p223 = scmp.eq.s32.totalorder %s42, 0
      %p224 = por %p222, %p223
      %p225 = scmp.ne.s32.totalorder %s213, %s214
      %p226 = scmp.eq.s32.totalorder %s43, 1
      %p227 = por %p225, %p226
      %p229 = scmp.ne.s32.totalorder %s214, %s228
      %p230 = scmp.eq.s32.totalorder %s43, 0
      %p231 = por %p229, %p230
      %s233 = sadd.s32 %s232, 1
      %p236 = scmp.eq.s32.totalorder %s37, 1
      %p237 = scmp.ne.s32.totalorder %s232, %s234
      %p238 = scmp.eq.s32.totalorder %s37, 0
      %p239 = por %p237, %p238
      %p240 = scmp.ne.s32.totalorder %s232, %s234
      %p241 = scmp.eq.s32.totalorder %s42, 1
      %p242 = por %p240, %p241
      %p243 = scmp.ne.s32.totalorder %s234, %s235
      %p244 = scmp.eq.s32.totalorder %s42, 0
      %p245 = por %p243, %p244
      %p246 = scmp.ne.s32.totalorder %s234, %s235
      %p247 = scmp.eq.s32.totalorder %s43, 1
      %p248 = por %p246, %p247
      %p250 = scmp.ne.s32.totalorder %s235, %s249
      %p251 = scmp.eq.s32.totalorder %s43, 0
      %p252 = por %p250, %p251
      %s254 = sadd.s32 %s253, 1
      %p257 = scmp.eq.s32.totalorder %s37, 1
      %p258 = scmp.ne.s32.totalorder %s253, %s255
      %p259 = scmp.eq.s32.totalorder %s37, 0
      %p260 = por %p258, %p259
      %p261 = scmp.ne.s32.totalorder %s253, %s255
      %p262 = scmp.eq.s32.totalorder %s42, 1
      %p263 = por %p261, %p262
      %p264 = scmp.ne.s32.totalorder %s255, %s256
      %p265 = scmp.eq.s32.totalorder %s42, 0
      %p266 = por %p264, %p265
      %p267 = scmp.ne.s32.totalorder %s255, %s256
      %p268 = scmp.eq.s32.totalorder %s43, 1
      %p269 = por %p267, %p268
      %p271 = scmp.ne.s32.totalorder %s256, %s270
      %p272 = scmp.eq.s32.totalorder %s43, 0
      %p273 = por %p271, %p272
      %s275 = sadd.s32 %s274, 1
      %p278 = scmp.eq.s32.totalorder %s37, 1
      %p279 = scmp.ne.s32.totalorder %s274, %s276
      %p280 = scmp.eq.s32.totalorder %s37, 0
      %p281 = por %p279, %p280
      %p282 = scmp.ne.s32.totalorder %s274, %s276
      %p283 = scmp.eq.s32.totalorder %s42, 1
      %p284 = por %p282, %p283
      %p285 = scmp.ne.s32.totalorder %s276, %s277
      %p286 = scmp.eq.s32.totalorder %s42, 0
      %p287 = por %p285, %p286
      %p288 = scmp.ne.s32.totalorder %s276, %s277
      %p289 = scmp.eq.s32.totalorder %s43, 1
      %p290 = por %p288, %p289
      %p292 = scmp.ne.s32.totalorder %s277, %s291
      %p293 = scmp.eq.s32.totalorder %s43, 0
      %p294 = por %p292, %p293
      %s296 = sadd.s32 %s295, 1
      %p299 = scmp.eq.s32.totalorder %s37, 1
      %p300 = scmp.ne.s32.totalorder %s295, %s297
      %p301 = scmp.eq.s32.totalorder %s37, 0
      %p302 = por %p300, %p301
      %p303 = scmp.ne.s32.totalorder %s295, %s297
      %p304 = scmp.eq.s32.totalorder %s42, 1
      %p305 = por %p303, %p304
      %p306 = scmp.ne.s32.totalorder %s297, %s298
      %p307 = scmp.eq.s32.totalorder %s42, 0
      %p308 = por %p306, %p307
      %p309 = scmp.ne.s32.totalorder %s297, %s298
      %p310 = scmp.eq.s32.totalorder %s43, 1
      %p311 = por %p309, %p310
      %p313 = scmp.ne.s32.totalorder %s298, %s312
      %p314 = scmp.eq.s32.totalorder %s43, 0
      %p315 = por %p313, %p314
      %s317 = sadd.s32 %s316, 1
      %p320 = scmp.eq.s32.totalorder %s37, 1
      %p321 = scmp.ne.s32.totalorder %s316, %s318
      %p322 = scmp.eq.s32.totalorder %s37, 0
      %p323 = por %p321, %p322
      %p324 = scmp.ne.s32.totalorder %s316, %s318
      %p325 = scmp.eq.s32.totalorder %s42, 1
      %p326 = por %p324, %p325
      %p327 = scmp.ne.s32.totalorder %s318, %s319
      %p328 = scmp.eq.s32.totalorder %s42, 0
      %p329 = por %p327, %p328
      %p330 = scmp.ne.s32.totalorder %s318, %s319
      %p331 = scmp.eq.s32.totalorder %s43, 1
      %p332 = por %p330, %p331
      %p334 = scmp.ne.s32.totalorder %s319, %s333
      %p335 = scmp.eq.s32.totalorder %s43, 0
      %p336 = por %p334, %p335
      %s338 = sadd.s32 %s337, 1
      %p341 = scmp.eq.s32.totalorder %s37, 1
      %p342 = scmp.ne.s32.totalorder %s337, %s339
      %p343 = scmp.eq.s32.totalorder %s37, 0
      %p344 = por %p342, %p343
      %p345 = scmp.ne.s32.totalorder %s337, %s339
      %p346 = scmp.eq.s32.totalorder %s42, 1
      %p347 = por %p345, %p346
      %p348 = scmp.ne.s32.totalorder %s339, %s340
      %p349 = scmp.eq.s32.totalorder %s42, 0
      %p350 = por %p348, %p349
      %p351 = scmp.ne.s32.totalorder %s339, %s340
      %p352 = scmp.eq.s32.totalorder %s43, 1
      %p353 = por %p351, %p352
      %p355 = scmp.ne.s32.totalorder %s340, %s354
      %p356 = scmp.eq.s32.totalorder %s43, 0
      %p357 = por %p355, %p356
      %s359 = sadd.s32 %s358, 1
      %p362 = scmp.eq.s32.totalorder %s37, 1
      %p363 = scmp.ne.s32.totalorder %s358, %s360
      %p364 = scmp.eq.s32.totalorder %s37, 0
      %p365 = por %p363, %p364
      %p366 = scmp.ne.s32.totalorder %s358, %s360
      %p367 = scmp.eq.s32.totalorder %s42, 1
      %p368 = por %p366, %p367
      %p369 = scmp.ne.s32.totalorder %s360, %s361
      %p370 = scmp.eq.s32.totalorder %s42, 0
      %p371 = por %p369, %p370
      %p372 = scmp.ne.s32.totalorder %s360, %s361
      %p373 = scmp.eq.s32.totalorder %s43, 1
      %p374 = por %p372, %p373
      %p376 = scmp.ne.s32.totalorder %s361, %s375
      %p377 = scmp.eq.s32.totalorder %s43, 0
      %p378 = por %p376, %p377
      %s380 = sadd.s32 %s379, 1
      %p383 = scmp.eq.s32.totalorder %s37, 1
      %p384 = scmp.ne.s32.totalorder %s379, %s381
      %p385 = scmp.eq.s32.totalorder %s37, 0
      %p386 = por %p384, %p385
      %p387 = scmp.ne.s32.totalorder %s379, %s381
      %p388 = scmp.eq.s32.totalorder %s42, 1
      %p389 = por %p387, %p388
      %p390 = scmp.ne.s32.totalorder %s381, %s382
      %p391 = scmp.eq.s32.totalorder %s42, 0
      %p392 = por %p390, %p391
      %p393 = scmp.ne.s32.totalorder %s381, %s382
      %p394 = scmp.eq.s32.totalorder %s43, 1
      %p395 = por %p393, %p394
      %p397 = scmp.ne.s32.totalorder %s382, %s396
      %p398 = scmp.eq.s32.totalorder %s43, 0
      %p399 = por %p397, %p398
      %s401 = sadd.s32 %s400, 1
      %p404 = scmp.eq.s32.totalorder %s37, 1
      %p405 = scmp.ne.s32.totalorder %s400, %s402
      %p406 = scmp.eq.s32.totalorder %s37, 0
      %p407 = por %p405, %p406
      %p408 = scmp.ne.s32.totalorder %s400, %s402
      %p409 = scmp.eq.s32.totalorder %s42, 1
      %p410 = por %p408, %p409
      %p411 = scmp.ne.s32.totalorder %s402, %s403
      %p412 = scmp.eq.s32.totalorder %s42, 0
      %p413 = por %p411, %p412
      %p414 = scmp.ne.s32.totalorder %s402, %s403
      %p415 = scmp.eq.s32.totalorder %s43, 1
      %p416 = por %p414, %p415
      %p418 = scmp.ne.s32.totalorder %s403, %s417
      %p419 = scmp.eq.s32.totalorder %s43, 0
      %p420 = por %p418, %p419
      %s422 = sadd.s32 %s421, 1
      %p425 = scmp.eq.s32.totalorder %s37, 1
      %p426 = scmp.ne.s32.totalorder %s421, %s423
      %p427 = scmp.eq.s32.totalorder %s37, 0
      %p428 = por %p426, %p427
      %p429 = scmp.ne.s32.totalorder %s421, %s423
      %p430 = scmp.eq.s32.totalorder %s42, 1
      %p431 = por %p429, %p430
      %p432 = scmp.ne.s32.totalorder %s423, %s424
      %p433 = scmp.eq.s32.totalorder %s42, 0
      %p434 = por %p432, %p433
      %p435 = scmp.ne.s32.totalorder %s423, %s424
      %p436 = scmp.eq.s32.totalorder %s43, 1
      %p437 = por %p435, %p436
      %p439 = scmp.ne.s32.totalorder %s424, %s438
      %p440 = scmp.eq.s32.totalorder %s43, 0
      %p441 = por %p439, %p440
      %s443 = sadd.s32 %s442, 1
      %p446 = scmp.eq.s32.totalorder %s37, 1
      %p447 = scmp.ne.s32.totalorder %s442, %s444
      %p448 = scmp.eq.s32.totalorder %s37, 0
      %p449 = por %p447, %p448
      %p450 = scmp.ne.s32.totalorder %s442, %s444
      %p451 = scmp.eq.s32.totalorder %s42, 1
      %p452 = por %p450, %p451
      %p453 = scmp.ne.s32.totalorder %s444, %s445
      %p454 = scmp.eq.s32.totalorder %s42, 0
      %p455 = por %p453, %p454
      %p456 = scmp.ne.s32.totalorder %s444, %s445
      %p457 = scmp.eq.s32.totalorder %s43, 1
      %p458 = por %p456, %p457
      %p460 = scmp.ne.s32.totalorder %s445, %s459
      %p461 = scmp.eq.s32.totalorder %s43, 0
      %p462 = por %p460, %p461
      %s463 = ssub.s32 %s44, %s56
      %s464 = ssub.s32 %s45, %s52
      %s465 = sor.u32 %s463, %s464
      %p466 = scmp.eq.s32.totalorder %s465, 0
      %s468 = sadd.s32 %s467, 1
      %s469 = scalar_select %p466, %s467, %s468
      %p472 = pneg %p466
      %p473 = scmp.eq.s32.totalorder %s37, 1
      %p474 = por %p472, %p473
      %p475 = scmp.ne.s32.totalorder %s467, %s470
      %p476 = scmp.eq.s32.totalorder %s37, 0
      %p477 = por %p475, %p476
      %p478 = scmp.ne.s32.totalorder %s467, %s470
      %p479 = scmp.eq.s32.totalorder %s42, 1
      %p480 = por %p478, %p479
      %p481 = scmp.ne.s32.totalorder %s470, %s471
      %p482 = scmp.eq.s32.totalorder %s42, 0
      %p483 = por %p481, %p482
      %p484 = scmp.ne.s32.totalorder %s470, %s471
      %p485 = scmp.eq.s32.totalorder %s43, 1
      %p486 = por %p484, %p485
      %p488 = scmp.ne.s32.totalorder %s471, %s487
      %p489 = scmp.eq.s32.totalorder %s43, 0
      %p490 = por %p488, %p489
      %s491 = ssub.s32 %s44, %s56
      %p492 = scmp.eq.s32.totalorder %s491, 0
      %s494 = sadd.s32 %s493, 1
      %s495 = scalar_select %p492, %s493, %s494
      %p498 = pneg %p492
      %p499 = scmp.eq.s32.totalorder %s37, 1
      %p500 = por %p498, %p499
      %p501 = scmp.ne.s32.totalorder %s493, %s496
      %p502 = scmp.eq.s32.totalorder %s37, 0
      %p503 = por %p501, %p502
      %p504 = scmp.ne.s32.totalorder %s493, %s496
      %p505 = scmp.eq.s32.totalorder %s42, 1
      %p506 = por %p504, %p505
      %p507 = scmp.ne.s32.totalorder %s496, %s497
      %p508 = scmp.eq.s32.totalorder %s42, 0
      %p509 = por %p507, %p508
      %p510 = scmp.ne.s32.totalorder %s496, %s497
      %p511 = scmp.eq.s32.totalorder %s43, 1
      %p512 = por %p510, %p511
      %p514 = scmp.ne.s32.totalorder %s497, %s513
      %p515 = scmp.eq.s32.totalorder %s43, 0
      %p516 = por %p514, %p515
      %s517 = ssub.s32 %s44, %s56
      %p518 = scmp.eq.s32.totalorder %s517, 0
      %s520 = sadd.s32 %s519, 1
      %s521 = scalar_select %p518, %s519, %s520
      %p524 = pneg %p518
      %p525 = scmp.eq.s32.totalorder %s37, 1
      %p526 = por %p524, %p525
      %p527 = scmp.ne.s32.totalorder %s519, %s522
      %p528 = scmp.eq.s32.totalorder %s37, 0
      %p529 = por %p527, %p528
      %p530 = scmp.ne.s32.totalorder %s519, %s522
      %p531 = scmp.eq.s32.totalorder %s42, 1
      %p532 = por %p530, %p531
      %p533 = scmp.ne.s32.totalorder %s522, %s523
      %p534 = scmp.eq.s32.totalorder %s42, 0
      %p535 = por %p533, %p534
      %p536 = scmp.ne.s32.totalorder %s522, %s523
      %p537 = scmp.eq.s32.totalorder %s43, 1
      %p538 = por %p536, %p537
      %p540 = scmp.ne.s32.totalorder %s523, %s539
      %p541 = scmp.eq.s32.totalorder %s43, 0
      %p542 = por %p540, %p541
      %p543 = scmp.le.s32.totalorder 1, %s37
      %p544 = scmp.lt.s32.totalorder %s37, 3
      %p545 = pnand %p543, %p544
      %p546 = pneg %p545
      // Predicated region
      $region9: #{tpu_custom_call.1} parent=5 // pred_check
        _
      $region10: #{tpu_custom_call.1} parent=5 // pred_check_branch
        %548 = sbr.rel (%p545) target = $region12
      $region11: #{tpu_custom_call.1} parent=5 // pred_region
        %s549 = ssub.s32 %s37, 1
        // Predicated region
        $region13: #{tpu_custom_call.1} parent=11 // pred_check
          %p550 = pneg %p98
        $region14: #{tpu_custom_call.1} parent=11 // pred_check_branch
          %552 = sbr.rel (%p550) target = $region16
        $region15: #{tpu_custom_call.1} parent=11 // pred_region
          _
        $region16: #{tpu_custom_call.1} parent=11 // pred_fallthru
          _
        // Predicated region
        $region17: #{tpu_custom_call.1} parent=11 // pred_check
          %p553 = pneg %p119
        $region18: #{tpu_custom_call.1} parent=11 // pred_check_branch
          %555 = sbr.rel (%p553) target = $region20
        $region19: #{tpu_custom_call.1} parent=11 // pred_region
          %s557 = ssub.s32 16, 16
          %558 = vsyncadd [#allocation3], %s557
          %s560 = sshll.u32 [#allocation2], 4
          %s561 = int_to_ptr.vmem [resolvable:$true] %s560
          %563 = dma.hbm_to_vmem [thread:$0]  %s2, 16, %s561, [#allocation3]
        $region20: #{tpu_custom_call.1} parent=11 // pred_fallthru
          _
        // Predicated region
        $region21: #{tpu_custom_call.1} parent=11 // pred_check
          %p564 = pneg %p140
        $region22: #{tpu_custom_call.1} parent=11 // pred_check_branch
          %566 = sbr.rel (%p564) target = $region24
        $region23: #{tpu_custom_call.1} parent=11 // pred_region
          %s568 = ssub.s32 16, 16
          %569 = vsyncadd [#allocation6], %s568
          %s571 = sshll.u32 [#allocation5], 4
          %s572 = int_to_ptr.vmem [resolvable:$true] %s571
          %574 = dma.hbm_to_vmem [thread:$0]  %s3, 16, %s572, [#allocation6]
        $region24: #{tpu_custom_call.1} parent=11 // pred_fallthru
          _
        // Predicated region
        $region25: #{tpu_custom_call.1} parent=11 // pred_check
          %p575 = pneg %p161
        $region26: #{tpu_custom_call.1} parent=11 // pred_check_branch
          %577 = sbr.rel (%p575) target = $region28
        $region27: #{tpu_custom_call.1} parent=11 // pred_region
          _
        $region28: #{tpu_custom_call.1} parent=11 // pred_fallthru
          _
        // Predicated region
        $region29: #{tpu_custom_call.1} parent=11 // pred_check
          %p578 = pneg %p182
        $region30: #{tpu_custom_call.1} parent=11 // pred_check_branch
          %580 = sbr.rel (%p578) target = $region32
        $region31: #{tpu_custom_call.1} parent=11 // pred_region
          _
        $region32: #{tpu_custom_call.1} parent=11 // pred_fallthru
          _
        // Predicated region
        $region33: #{tpu_custom_call.1} parent=11 // pred_check
          %p581 = pneg %p203
        $region34: #{tpu_custom_call.1} parent=11 // pred_check_branch
          %583 = sbr.rel (%p581) target = $region36
        $region35: #{tpu_custom_call.1} parent=11 // pred_region
          _
        $region36: #{tpu_custom_call.1} parent=11 // pred_fallthru
          _
        // Predicated region
        $region37: #{tpu_custom_call.1} parent=11 // pred_check
          %p584 = pneg %p224
        $region38: #{tpu_custom_call.1} parent=11 // pred_check_branch
          %586 = sbr.rel (%p584) target = $region40
        $region39: #{tpu_custom_call.1} parent=11 // pred_region
          _
        $region40: #{tpu_custom_call.1} parent=11 // pred_fallthru
          _
        // Predicated region
        $region41: #{tpu_custom_call.1} parent=11 // pred_check
          %p587 = pneg %p245
        $region42: #{tpu_custom_call.1} parent=11 // pred_check_branch
          %589 = sbr.rel (%p587) target = $region44
        $region43: #{tpu_custom_call.1} parent=11 // pred_region
          _
        $region44: #{tpu_custom_call.1} parent=11 // pred_fallthru
          _
        // Predicated region
        $region45: #{tpu_custom_call.1} parent=11 // pred_check
          %p590 = pneg %p266
        $region46: #{tpu_custom_call.1} parent=11 // pred_check_branch
          %592 = sbr.rel (%p590) target = $region48
        $region47: #{tpu_custom_call.1} parent=11 // pred_region
          _
        $region48: #{tpu_custom_call.1} parent=11 // pred_fallthru
          _
        // Predicated region
        $region49: #{tpu_custom_call.1} parent=11 // pred_check
          %p593 = pneg %p287
        $region50: #{tpu_custom_call.1} parent=11 // pred_check_branch
          %595 = sbr.rel (%p593) target = $region52
        $region51: #{tpu_custom_call.1} parent=11 // pred_region
          %s597 = ssub.s32 1024, 1024
          %598 = vsyncadd [#allocation6], %s597
          %s599 = sshll.u32 [#allocation7], 4
          %s600 = int_to_ptr.vmem [resolvable:$true] %s599
          %605 = dma.hbm_to_vmem [thread:$0]  %s10, 1024, %s600, [#allocation6], 64, 64, 4
        $region52: #{tpu_custom_call.1} parent=11 // pred_fallthru
          _
        // Predicated region
        $region53: #{tpu_custom_call.1} parent=11 // pred_check
          %p606 = pneg %p308
        $region54: #{tpu_custom_call.1} parent=11 // pred_check_branch
          %608 = sbr.rel (%p606) target = $region56
        $region55: #{tpu_custom_call.1} parent=11 // pred_region
          _
        $region56: #{tpu_custom_call.1} parent=11 // pred_fallthru
          _
        // Predicated region
        $region57: #{tpu_custom_call.1} parent=11 // pred_check
          %p609 = pneg %p329
        $region58: #{tpu_custom_call.1} parent=11 // pred_check_branch
          %611 = sbr.rel (%p609) target = $region60
        $region59: #{tpu_custom_call.1} parent=11 // pred_region
          _
        $region60: #{tpu_custom_call.1} parent=11 // pred_fallthru
          _
        // Predicated region
        $region61: #{tpu_custom_call.1} parent=11 // pred_check
          %p612 = pneg %p350
        $region62: #{tpu_custom_call.1} parent=11 // pred_check_branch
          %614 = sbr.rel (%p612) target = $region64
        $region63: #{tpu_custom_call.1} parent=11 // pred_region
          %s616 = ssub.s32 1024, 1024
          %617 = vsyncadd [#allocation9], %s616
          %s618 = sshll.u32 [#allocation8], 4
          %s619 = int_to_ptr.vmem [resolvable:$true] %s618
          %624 = dma.hbm_to_vmem [thread:$0]  %s13, 1024, %s619, [#allocation9], 64, 64, 4
        $region64: #{tpu_custom_call.1} parent=11 // pred_fallthru
          _
        // Predicated region
        $region65: #{tpu_custom_call.1} parent=11 // pred_check
          %p625 = pneg %p371
        $region66: #{tpu_custom_call.1} parent=11 // pred_check_branch
          %627 = sbr.rel (%p625) target = $region68
        $region67: #{tpu_custom_call.1} parent=11 // pred_region
          _
        $region68: #{tpu_custom_call.1} parent=11 // pred_fallthru
          _
        // Predicated region
        $region69: #{tpu_custom_call.1} parent=11 // pred_check
          %p628 = pneg %p392
        $region70: #{tpu_custom_call.1} parent=11 // pred_check_branch
          %630 = sbr.rel (%p628) target = $region72
        $region71: #{tpu_custom_call.1} parent=11 // pred_region
          _
        $region72: #{tpu_custom_call.1} parent=11 // pred_fallthru
          _
        // Predicated region
        $region73: #{tpu_custom_call.1} parent=11 // pred_check
          %p631 = pneg %p413
        $region74: #{tpu_custom_call.1} parent=11 // pred_check_branch
          %633 = sbr.rel (%p631) target = $region76
        $region75: #{tpu_custom_call.1} parent=11 // pred_region
          %s635 = ssub.s32 24576, 24576
          %636 = vsyncadd [#allocation9], %s635
          %s637 = sshll.u32 [#allocation10], 4
          %s638 = int_to_ptr.vmem [resolvable:$true] %s637
          %643 = dma.hbm_to_vmem [thread:$0]  %s16, 24576, %s638, [#allocation9], 512, 512, 32
        $region76: #{tpu_custom_call.1} parent=11 // pred_fallthru
          _
        // Predicated region
        $region77: #{tpu_custom_call.1} parent=11 // pred_check
          %p644 = pneg %p434
        $region78: #{tpu_custom_call.1} parent=11 // pred_check_branch
          %646 = sbr.rel (%p644) target = $region80
        $region79: #{tpu_custom_call.1} parent=11 // pred_region
          _
        $region80: #{tpu_custom_call.1} parent=11 // pred_fallthru
          _
        // Predicated region
        $region81: #{tpu_custom_call.1} parent=11 // pred_check
          %p647 = pneg %p455
        $region82: #{tpu_custom_call.1} parent=11 // pred_check_branch
          %649 = sbr.rel (%p647) target = $region84
        $region83: #{tpu_custom_call.1} parent=11 // pred_region
          _
        $region84: #{tpu_custom_call.1} parent=11 // pred_fallthru
          _
      $region12: #{tpu_custom_call.1} parent=5 // pred_fallthru
        _
      %p650 = scmp.lt.s32.totalorder %s37, 2
      // Predicated region
      $region85: #{tpu_custom_call.1} parent=5 // pred_check
        %p651 = pneg %p650
      $region86: #{tpu_custom_call.1} parent=5 // pred_check_branch
        %653 = sbr.rel (%p651) target = $region88
      $region87: #{tpu_custom_call.1} parent=5 // pred_region
        // Predicated region
        $region89: #{tpu_custom_call.1} parent=87 // pred_check
          %p654 = pneg %p71
        $region90: #{tpu_custom_call.1} parent=87 // pred_check_branch
          %656 = sbr.rel (%p654) target = $region92
        $region91: #{tpu_custom_call.1} parent=87 // pred_region
          %s657 = smul.u32 16, %s45
          %p658 = scmp.lt.s32.totalorder %s44, 1
          %s659 = scalar_select %p658, %s44, 1
          %p660 = scmp.lt.s32.totalorder %s657, 15
          %s661 = scalar_select %p660, %s657, 15
          %s662 = smul.addr %s659, 16
          %s663 = sadd.s32 %s661, %s662
          %s664 = smul.addr %s663, 4
          %s665 = scalar_lea.vmem %s0, %s664
          %s666 = smul.u32 16, %s45
        $region92: #{tpu_custom_call.1} parent=87 // pred_fallthru
          _
      $region88: #{tpu_custom_call.1} parent=5 // pred_fallthru
        _
      %p667 = scmp.le.s32.totalorder 1, %s37
      %p668 = scmp.lt.s32.totalorder %s37, 3
      %p669 = pnand %p667, %p668
      %p670 = pneg %p669
      // Predicated region
      $region93: #{tpu_custom_call.1} parent=5 // pred_check
        _
      $region94: #{tpu_custom_call.1} parent=5 // pred_check_branch
        %672 = sbr.rel (%p669) target = $region96
      $region95: #{tpu_custom_call.1} parent=5 // pred_region
        %s673 = ssub.s32 %s37, 1
        // Predicated region
        $region97: #{tpu_custom_call.1} parent=95 // pred_check
          %p674 = pneg %p119
        $region98: #{tpu_custom_call.1} parent=95 // pred_check_branch
          %676 = sbr.rel (%p674) target = $region100
        $region99: #{tpu_custom_call.1} parent=95 // pred_region
          %677 = dma.done [#allocation3], 16
        $region100: #{tpu_custom_call.1} parent=95 // pred_fallthru
          _
        // Predicated region
        $region101: #{tpu_custom_call.1} parent=95 // pred_check
          %p678 = pneg %p140
        $region102: #{tpu_custom_call.1} parent=95 // pred_check_branch
          %680 = sbr.rel (%p678) target = $region104
        $region103: #{tpu_custom_call.1} parent=95 // pred_region
          %681 = dma.done [#allocation6], 16
        $region104: #{tpu_custom_call.1} parent=95 // pred_fallthru
          _
        // Predicated region
        $region105: #{tpu_custom_call.1} parent=95 // pred_check
          %p682 = pneg %p287
        $region106: #{tpu_custom_call.1} parent=95 // pred_check_branch
          %684 = sbr.rel (%p682) target = $region108
        $region107: #{tpu_custom_call.1} parent=95 // pred_region
          %685 = dma.done [#allocation6], 1024
        $region108: #{tpu_custom_call.1} parent=95 // pred_fallthru
          _
        // Predicated region
        $region109: #{tpu_custom_call.1} parent=95 // pred_check
          %p686 = pneg %p350
        $region110: #{tpu_custom_call.1} parent=95 // pred_check_branch
          %688 = sbr.rel (%p686) target = $region112
        $region111: #{tpu_custom_call.1} parent=95 // pred_region
          %689 = dma.done [#allocation9], 1024
        $region112: #{tpu_custom_call.1} parent=95 // pred_fallthru
          _
        // Predicated region
        $region113: #{tpu_custom_call.1} parent=95 // pred_check
          %p690 = pneg %p413
        $region114: #{tpu_custom_call.1} parent=95 // pred_check_branch
          %692 = sbr.rel (%p690) target = $region116
        $region115: #{tpu_custom_call.1} parent=95 // pred_region
          %693 = dma.done [#allocation9], 24576
        $region116: #{tpu_custom_call.1} parent=95 // pred_fallthru
          _
        %s694 = smul.u32 16, %s47
        %p695 = scmp.lt.s32.totalorder %s46, 1
        %s696 = scalar_select %p695, %s46, 1
        %p697 = scmp.lt.s32.totalorder %s694, 15
        %s698 = scalar_select %p697, %s694, 15
        %s699 = smul.addr %s696, 16
        %s700 = sadd.s32 %s698, %s699
        %s701 = smul.addr %s700, 4
        %s702 = scalar_lea.vmem %s0, %s701
        %p703 = pneg %p77
        %p704 = pneg %p74
        %p705 = pneg %p98
        %p706 = pneg %p95
        %p707 = pneg %p119
        %p708 = pneg %p116
        %p709 = pneg %p140
        %p710 = pneg %p137
        %p711 = pneg %p161
        %p712 = pneg %p158
        %p713 = pneg %p182
        %p714 = pneg %p179
        %p715 = pneg %p203
        %p716 = pneg %p200
        %p717 = pneg %p224
        %p718 = pneg %p221
        %p719 = pneg %p245
        %p720 = pneg %p242
        %p721 = pneg %p266
        %p722 = pneg %p263
        %p723 = pneg %p287
        %p724 = pneg %p284
        %p725 = pneg %p308
        %p726 = pneg %p305
        %p727 = pneg %p329
        %p728 = pneg %p326
        %p729 = pneg %p350
        %p730 = pneg %p347
        %p731 = pneg %p371
        %p732 = pneg %p368
        %p733 = pneg %p392
        %p734 = pneg %p389
        %p735 = pneg %p413
        %p736 = pneg %p410
        %p737 = pneg %p434
        %p738 = pneg %p431
        %p739 = pneg %p455
        %p740 = pneg %p452
        %p741 = pneg %p483
        %p742 = pneg %p480
        %s743 = sand.u32 %s470, 1
        %s744 = scalar_lea.sflag [#allocation4], %s743
        %s745 = sand.u32 %s470, 1
        %s746 = smul.addr %s745, 512
        %s747 = scalar_lea.vmem [#allocation11], %s746
        %p748 = pneg %p509
        %p749 = pneg %p506
        %s750 = sand.u32 %s42, 1
        %s751 = scalar_lea.sflag [#allocation13], %s750
        %s752 = sand.u32 %s496, 1
        %s753 = smul.addr %s752, 8
        %s754 = scalar_lea.vmem [#allocation12], %s753
        %p755 = pneg %p535
        %p756 = pneg %p532
        %s757 = sand.u32 %s42, 1
        %s758 = scalar_lea.sflag [#allocation13], %s757
        %s759 = sand.u32 %s522, 1
        %s760 = smul.addr %s759, 8
        %s761 = scalar_lea.vmem [#allocation14], %s760
        %s762 = smul.u32 16, %s47
        %p763 = scmp.lt.s32.totalorder %s46, 1
        %s764 = scalar_select %p763, %s46, 1
        %p765 = scmp.lt.s32.totalorder %s762, 15
        %s766 = scalar_select %p765, %s762, 15
        %s767 = smul.addr %s764, 16
        %s768 = sadd.s32 %s766, %s767
        %s769 = smul.addr %s768, 4
        %s770 = scalar_lea.vmem %s0, %s769
        %s771 = smul.u32 16, %s47
        %s772 = smul.u32 16, %s47
        %v774 = vld [vmem:[%s770] sm:$0xf]
        %v775 = vld [vmem:[%s770 + $0x4] sm:$0xf]
        %v776 = vld [vmem:[%s770 + $0x8] sm:$0xf]
        %v777 = vld [vmem:[%s770 + $0xc] sm:$0xf]
        %v778 = vld [vmem:[%s770 + $0x10] sm:$0xf]
        %v779 = vld [vmem:[%s770 + $0x14] sm:$0xf]
        %v780 = vld [vmem:[%s770 + $0x18] sm:$0xf]
        %v781 = vld [vmem:[%s770 + $0x1c] sm:$0xf]
        %v782 = vld [vmem:[%s770 + $0x20] sm:$0xf]
        %v783 = vld [vmem:[%s770 + $0x24] sm:$0xf]
        %v784 = vld [vmem:[%s770 + $0x28] sm:$0xf]
        %v785 = vld [vmem:[%s770 + $0x2c] sm:$0xf]
        %v786 = vld [vmem:[%s770 + $0x30] sm:$0xf]
        %v787 = vld [vmem:[%s770 + $0x34] sm:$0xf]
        %v788 = vld [vmem:[%s770 + $0x38] sm:$0xf]
        %v789 = vld [vmem:[%s770 + $0x3c] sm:$0xf]
        %v790 = vld [vmem:[%s1] sm:$0xf]
        %v791 = vld [vmem:[%s1 + $0x4] sm:$0x1]
        %v808 = vunpack.c.l.b16 %v774
        %v809 = vunpack.c.l.b16 %v775
        %v810 = vunpack.c.l.b16 %v776
        %v811 = vunpack.c.l.b16 %v777
        %v812 = vunpack.c.l.b16 %v778
        %v813 = vunpack.c.l.b16 %v779
        %v814 = vunpack.c.l.b16 %v780
        %v815 = vunpack.c.l.b16 %v781
        %v816 = vunpack.c.l.b16 %v782
        %v817 = vunpack.c.l.b16 %v783
        %v818 = vunpack.c.l.b16 %v784
        %v819 = vunpack.c.l.b16 %v785
        %v820 = vunpack.c.l.b16 %v786
        %v821 = vunpack.c.l.b16 %v787
        %v822 = vunpack.c.l.b16 %v788
        %v823 = vunpack.c.l.b16 %v789
        %v824 = vpack.c.b16 %v809, %v808
        %v825 = vpack.c.b16 %v811, %v810
        %v826 = vpack.c.b16 %v813, %v812
        %v827 = vpack.c.b16 %v815, %v814
        %v828 = vpack.c.b16 %v817, %v816
        %v829 = vpack.c.b16 %v819, %v818
        %v830 = vpack.c.b16 %v821, %v820
        %v831 = vpack.c.b16 %v823, %v822
        %v834 = vunpack.c.l.b16 %v790
        %v835 = vunpack.c.l.b16 %v791
        %v836 = vpack.c.b16 %v835, %v834
        %vm837 = vcmask 72704
        %v839 = vsel %vm837, %v824, 0
        %v842 = vsel %vm837, %v825, 0
        %v845 = vsel %vm837, %v826, 0
        %v848 = vsel %vm837, %v827, 0
        %v851 = vsel %vm837, %v828, 0
        %v854 = vsel %vm837, %v829, 0
        %v857 = vsel %vm837, %v830, 0
        %v860 = vsel %vm837, %v831, 0
        %vm862 = vcmask 1043456
        %vm863 = vcmask 1044480
        %v864 = vsel %vm862, 4294967295, 65535
        %v865 = vsel %vm863, %v864, 0
        %v867 = vand.u32 %v836, %v865
        %869 = vmatprep.subr.bf16.mxu0 0
        %870 = vmatpush1.bf16.msra.mxu0 %v867
        %871 = vmatprep.subr.bf16.mxu0 0
        %872 = vmatpush1.bf16.msra.mxu0 0
        %873 = vmatprep.subr.bf16.mxu0 0
        %874 = vmatpush1.bf16.msra.mxu0 0
        %875 = vmatprep.subr.bf16.mxu0 0
        %876 = vmatpush1.bf16.msra.mxu0 0
        %877 = vmatprep.subr.bf16.mxu0 0
        %878 = vmatpush1.bf16.msra.mxu0 0
        %879 = vmatprep.subr.bf16.mxu0 0
        %880 = vmatpush1.bf16.msra.mxu0 0
        %881 = vmatprep.subr.bf16.mxu0 0
        %882 = vmatpush1.bf16.msra.mxu0 0
        %883 = vmatprep.subr.bf16.mxu0 0
        %884 = vmatpush1.bf16.msra.mxu0 0
        %885 = vmatprep.subr.bf16.mxu0 0
        %886 = vmatpush1.bf16.msra.mxu0 0
        %887 = vmatprep.subr.bf16.mxu0 0
        %888 = vmatpush1.bf16.msra.mxu0 0
        %889 = vmatprep.subr.bf16.mxu0 0
        %890 = vmatpush1.bf16.msra.mxu0 0
        %891 = vmatprep.subr.bf16.mxu0 0
        %892 = vmatpush1.bf16.msra.mxu0 0
        %893 = vmatprep.subr.bf16.mxu0 0
        %894 = vmatpush1.bf16.msra.mxu0 0
        %895 = vmatprep.subr.bf16.mxu0 0
        %896 = vmatpush1.bf16.msra.mxu0 0
        %897 = vmatprep.subr.bf16.mxu0 0
        %898 = vmatpush1.bf16.msra.mxu0 0
        %899 = vmatprep.subr.bf16.mxu0 0
        %900 = vmatpush1.bf16.msra.mxu0 0
        %901 = vmatprep.mubr.bf16.mxu0 0
        %902 = vmatmul.mubr.bf16.gmra.mrb[0].mxu0 %v839
        %v903 = vpop.f32.mrb[0].mxu0
        %v904 = vadd.f32 0.0, %v903
        %v905 = vpop.f32.mrb[0].mxu0
        %v906 = vpop.f32.mrb[0].mxu0
        %v907 = vadd.f32 0.0, %v906
        %v908 = vpop.f32.mrb[0].mxu0
        %909 = vmatprep.mubr.bf16.mxu0 0
        %910 = vmatmul.mubr.bf16.gmra.mrb[0].mxu0 %v842
        %v911 = vpop.f32.mrb[0].mxu0
        %v912 = vadd.f32 0.0, %v911
        %v913 = vpop.f32.mrb[0].mxu0
        %v914 = vpop.f32.mrb[0].mxu0
        %v915 = vadd.f32 0.0, %v914
        %v916 = vpop.f32.mrb[0].mxu0
        %917 = vmatprep.mubr.bf16.mxu0 0
        %918 = vmatmul.mubr.bf16.gmra.mrb[0].mxu0 %v845
        %v919 = vpop.f32.mrb[0].mxu0
        %v920 = vadd.f32 0.0, %v919
        %v921 = vpop.f32.mrb[0].mxu0
        %v922 = vpop.f32.mrb[0].mxu0
        %v923 = vadd.f32 0.0, %v922
        %v924 = vpop.f32.mrb[0].mxu0
        %925 = vmatprep.mubr.bf16.mxu0 0
        %926 = vmatmul.mubr.bf16.gmra.mrb[0].mxu0 %v848
        %v927 = vpop.f32.mrb[0].mxu0
        %v928 = vadd.f32 0.0, %v927
        %v929 = vpop.f32.mrb[0].mxu0
        %v930 = vpop.f32.mrb[0].mxu0
        %v931 = vadd.f32 0.0, %v930
        %v932 = vpop.f32.mrb[0].mxu0
        %933 = vmatprep.mubr.bf16.mxu0 0
        %934 = vmatmul.mubr.bf16.gmra.mrb[0].mxu0 %v851
        %v935 = vpop.f32.mrb[0].mxu0
        %v936 = vadd.f32 0.0, %v935
        %v937 = vpop.f32.mrb[0].mxu0
        %v938 = vpop.f32.mrb[0].mxu0
        %v939 = vadd.f32 0.0, %v938
        %v940 = vpop.f32.mrb[0].mxu0
        %941 = vmatprep.mubr.bf16.mxu0 0
        %942 = vmatmul.mubr.bf16.gmra.mrb[0].mxu0 %v854
        %v943 = vpop.f32.mrb[0].mxu0
        %v944 = vadd.f32 0.0, %v943
        %v945 = vpop.f32.mrb[0].mxu0
        %v946 = vpop.f32.mrb[0].mxu0
        %v947 = vadd.f32 0.0, %v946
        %v948 = vpop.f32.mrb[0].mxu0
        %949 = vmatprep.mubr.bf16.mxu0 0
        %950 = vmatmul.mubr.bf16.gmra.mrb[0].mxu0 %v857
        %v951 = vpop.f32.mrb[0].mxu0
        %v952 = vadd.f32 0.0, %v951
        %v953 = vpop.f32.mrb[0].mxu0
        %v954 = vpop.f32.mrb[0].mxu0
        %v955 = vadd.f32 0.0, %v954
        %v956 = vpop.f32.mrb[0].mxu0
        %957 = vmatprep.mubr.bf16.mxu0 0
        %958 = vmatmul.mubr.bf16.gmra.mrb[0].mxu0 %v860
        %v959 = vpop.f32.mrb[0].mxu0
        %v960 = vadd.f32 0.0, %v959
        %v961 = vpop.f32.mrb[0].mxu0
        %v962 = vpop.f32.mrb[0].mxu0
        %v963 = vadd.f32 0.0, %v962
        %v964 = vpop.f32.mrb[0].mxu0
        %965 = vdwg.mxu0
        %v966 = vld [vmem:[#allocation2] sm:$0x1]
        %v968 = vlaneseq
        %v969 = vshrl.u32 %v968, 7
        %v970 = vsub.s32 0, %v969
        %v971 = vrot.slane %v966, %v970
        %v973 = vmul.f32 %v904, %v971
        %v974 = vmul.f32 %v907, %v971
        %v975 = vmul.f32 %v912, %v971
        %v976 = vmul.f32 %v915, %v971
        %v977 = vmul.f32 %v920, %v971
        %v978 = vmul.f32 %v923, %v971
        %v979 = vmul.f32 %v928, %v971
        %v980 = vmul.f32 %v931, %v971
        %v981 = vmul.f32 %v936, %v971
        %v982 = vmul.f32 %v939, %v971
        %v983 = vmul.f32 %v944, %v971
        %v984 = vmul.f32 %v947, %v971
        %v985 = vmul.f32 %v952, %v971
        %v986 = vmul.f32 %v955, %v971
        %v987 = vmul.f32 %v960, %v971
        %v988 = vmul.f32 %v963, %v971
        %v989 = vld [vmem:[#allocation5] sm:$0x1]
        %v991 = vlaneseq
        %v992 = vshrl.u32 %v991, 7
        %v993 = vsub.s32 0, %v992
        %v994 = vrot.slane %v989, %v993
        %v996 = vadd.f32 %v973, %v994
        %v997 = vadd.f32 %v974, %v994
        %v998 = vadd.f32 %v975, %v994
        %v999 = vadd.f32 %v976, %v994
        %v1000 = vadd.f32 %v977, %v994
        %v1001 = vadd.f32 %v978, %v994
        %v1002 = vadd.f32 %v979, %v994
        %v1003 = vadd.f32 %v980, %v994
        %v1004 = vadd.f32 %v981, %v994
        %v1005 = vadd.f32 %v982, %v994
        %v1006 = vadd.f32 %v983, %v994
        %v1007 = vadd.f32 %v984, %v994
        %v1008 = vadd.f32 %v985, %v994
        %v1009 = vadd.f32 %v986, %v994
        %v1010 = vadd.f32 %v987, %v994
        %v1011 = vadd.f32 %v988, %v994
        %v1012 = vmax.f32 %v996, 0.0
        %v1013 = vmax.f32 %v997, 0.0
        %v1014 = vmax.f32 %v998, 0.0
        %v1015 = vmax.f32 %v999, 0.0
        %v1016 = vmax.f32 %v1000, 0.0
        %v1017 = vmax.f32 %v1001, 0.0
        %v1018 = vmax.f32 %v1002, 0.0
        %v1019 = vmax.f32 %v1003, 0.0
        %v1020 = vmax.f32 %v1004, 0.0
        %v1021 = vmax.f32 %v1005, 0.0
        %v1022 = vmax.f32 %v1006, 0.0
        %v1023 = vmax.f32 %v1007, 0.0
        %v1024 = vmax.f32 %v1008, 0.0
        %v1025 = vmax.f32 %v1009, 0.0
        %v1026 = vmax.f32 %v1010, 0.0
        %v1027 = vmax.f32 %v1011, 0.0
        %v1028 = vpack.c.bf16 %v1013, %v1012
        %v1029 = vpack.c.bf16 %v1015, %v1014
        %v1030 = vpack.c.bf16 %v1017, %v1016
        %v1031 = vpack.c.bf16 %v1019, %v1018
        %v1032 = vpack.c.bf16 %v1021, %v1020
        %v1033 = vpack.c.bf16 %v1023, %v1022
        %v1034 = vpack.c.bf16 %v1025, %v1024
        %v1035 = vpack.c.bf16 %v1027, %v1026
        %v1036 = vld [vmem:[%s4] sm:$0xf]
        %v1037 = vld [vmem:[%s4 + $0x4] sm:$0xf]
        %v1038 = vld [vmem:[%s4 + $0x8] sm:$0xf]
        %v1039 = vld [vmem:[%s4 + $0xc] sm:$0xf]
        %v1040 = vld [vmem:[%s4 + $0x10] sm:$0xf]
        %v1041 = vld [vmem:[%s4 + $0x14] sm:$0xf]
        %v1042 = vld [vmem:[%s4 + $0x18] sm:$0xf]
        %v1043 = vld [vmem:[%s4 + $0x1c] sm:$0xf]
        %v1044 = vld [vmem:[%s4 + $0x20] sm:$0xf]
        %v1045 = vld [vmem:[%s4 + $0x24] sm:$0xf]
        %v1046 = vld [vmem:[%s4 + $0x28] sm:$0xf]
        %v1047 = vld [vmem:[%s4 + $0x2c] sm:$0xf]
        %v1048 = vld [vmem:[%s4 + $0x30] sm:$0xf]
        %v1049 = vld [vmem:[%s4 + $0x34] sm:$0xf]
        %v1050 = vld [vmem:[%s4 + $0x38] sm:$0xf]
        %v1051 = vld [vmem:[%s4 + $0x3c] sm:$0xf]
        %v1068 = vunpack.c.l.b16 %v1036
        %v1069 = vunpack.c.l.b16 %v1037
        %v1070 = vunpack.c.l.b16 %v1038
        %v1071 = vunpack.c.l.b16 %v1039
        %v1072 = vunpack.c.l.b16 %v1040
        %v1073 = vunpack.c.l.b16 %v1041
        %v1074 = vunpack.c.l.b16 %v1042
        %v1075 = vunpack.c.l.b16 %v1043
        %v1076 = vunpack.c.l.b16 %v1044
        %v1077 = vunpack.c.l.b16 %v1045
        %v1078 = vunpack.c.l.b16 %v1046
        %v1079 = vunpack.c.l.b16 %v1047
        %v1080 = vunpack.c.l.b16 %v1048
        %v1081 = vunpack.c.l.b16 %v1049
        %v1082 = vunpack.c.l.b16 %v1050
        %v1083 = vunpack.c.l.b16 %v1051
        %v1084 = vpack.c.b16 %v1069, %v1068
        %v1085 = vpack.c.b16 %v1071, %v1070
        %v1086 = vpack.c.b16 %v1073, %v1072
        %v1087 = vpack.c.b16 %v1075, %v1074
        %v1088 = vpack.c.b16 %v1077, %v1076
        %v1089 = vpack.c.b16 %v1079, %v1078
        %v1090 = vpack.c.b16 %v1081, %v1080
        %v1091 = vpack.c.b16 %v1083, %v1082
        %1100 = vmatprep.subr.bf16.mxu0 0
        %1101 = vmatpush1.bf16.msra.mxu0 %v1084
        %1102 = vmatprep.subr.bf16.mxu0 0
        %1103 = vmatpush1.bf16.msra.mxu0 %v1085
        %1104 = vmatprep.subr.bf16.mxu0 0
        %1105 = vmatpush1.bf16.msra.mxu0 %v1086
        %1106 = vmatprep.subr.bf16.mxu0 0
        %1107 = vmatpush1.bf16.msra.mxu0 %v1087
        %1108 = vmatprep.subr.bf16.mxu0 0
        %1109 = vmatpush1.bf16.msra.mxu0 %v1088
        %1110 = vmatprep.subr.bf16.mxu0 0
        %1111 = vmatpush1.bf16.msra.mxu0 %v1089
        %1112 = vmatprep.subr.bf16.mxu0 0
        %1113 = vmatpush1.bf16.msra.mxu0 %v1090
        %1114 = vmatprep.subr.bf16.mxu0 0
        %1115 = vmatpush1.bf16.msra.mxu0 %v1091
        %1116 = vmatprep.subr.bf16.mxu0 0
        %1117 = vmatpush1.bf16.msra.mxu0 0
        %1118 = vmatprep.subr.bf16.mxu0 0
        %1119 = vmatpush1.bf16.msra.mxu0 0
        %1120 = vmatprep.subr.bf16.mxu0 0
        %1121 = vmatpush1.bf16.msra.mxu0 0
        %1122 = vmatprep.subr.bf16.mxu0 0
        %1123 = vmatpush1.bf16.msra.mxu0 0
        %1124 = vmatprep.subr.bf16.mxu0 0
        %1125 = vmatpush1.bf16.msra.mxu0 0
        %1126 = vmatprep.subr.bf16.mxu0 0
        %1127 = vmatpush1.bf16.msra.mxu0 0
        %1128 = vmatprep.subr.bf16.mxu0 0
        %1129 = vmatpush1.bf16.msra.mxu0 0
        %1130 = vmatprep.subr.bf16.mxu0 0
        %1131 = vmatpush1.bf16.msra.mxu0 0
        %1132 = vmatprep.mubr.bf16.mxu0 0
        %1133 = vmatmul.mubr.bf16.gmra.mrb[0].mxu0 %v1028
        %v1134 = vpop.f32.mrb[0].mxu0
        %v1135 = vadd.f32 0.0, %v1134
        %v1136 = vpop.f32.mrb[0].mxu0
        %v1137 = vpop.f32.mrb[0].mxu0
        %v1138 = vadd.f32 0.0, %v1137
        %v1139 = vpop.f32.mrb[0].mxu0
        %1140 = vmatprep.mubr.bf16.mxu0 0
        %1141 = vmatmul.mubr.bf16.gmra.mrb[0].mxu0 %v1029
        %v1142 = vpop.f32.mrb[0].mxu0
        %v1143 = vadd.f32 0.0, %v1142
        %v1144 = vpop.f32.mrb[0].mxu0
        %v1145 = vpop.f32.mrb[0].mxu0
        %v1146 = vadd.f32 0.0, %v1145
        %v1147 = vpop.f32.mrb[0].mxu0
        %1148 = vmatprep.mubr.bf16.mxu0 0
        %1149 = vmatmul.mubr.bf16.gmra.mrb[0].mxu0 %v1030
        %v1150 = vpop.f32.mrb[0].mxu0
        %v1151 = vadd.f32 0.0, %v1150
        %v1152 = vpop.f32.mrb[0].mxu0
        %v1153 = vpop.f32.mrb[0].mxu0
        %v1154 = vadd.f32 0.0, %v1153
        %v1155 = vpop.f32.mrb[0].mxu0
        %1156 = vmatprep.mubr.bf16.mxu0 0
        %1157 = vmatmul.mubr.bf16.gmra.mrb[0].mxu0 %v1031
        %v1158 = vpop.f32.mrb[0].mxu0
        %v1159 = vadd.f32 0.0, %v1158
        %v1160 = vpop.f32.mrb[0].mxu0
        %v1161 = vpop.f32.mrb[0].mxu0
        %v1162 = vadd.f32 0.0, %v1161
        %v1163 = vpop.f32.mrb[0].mxu0
        %1164 = vmatprep.mubr.bf16.mxu0 0
        %1165 = vmatmul.mubr.bf16.gmra.mrb[0].mxu0 %v1032
        %v1166 = vpop.f32.mrb[0].mxu0
        %v1167 = vadd.f32 0.0, %v1166
        %v1168 = vpop.f32.mrb[0].mxu0
        %v1169 = vpop.f32.mrb[0].mxu0
        %v1170 = vadd.f32 0.0, %v1169
        %v1171 = vpop.f32.mrb[0].mxu0
        %1172 = vmatprep.mubr.bf16.mxu0 0
        %1173 = vmatmul.mubr.bf16.gmra.mrb[0].mxu0 %v1033
        %v1174 = vpop.f32.mrb[0].mxu0
        %v1175 = vadd.f32 0.0, %v1174
        %v1176 = vpop.f32.mrb[0].mxu0
        %v1177 = vpop.f32.mrb[0].mxu0
        %v1178 = vadd.f32 0.0, %v1177
        %v1179 = vpop.f32.mrb[0].mxu0
        %1180 = vmatprep.mubr.bf16.mxu0 0
        %1181 = vmatmul.mubr.bf16.gmra.mrb[0].mxu0 %v1034
        %v1182 = vpop.f32.mrb[0].mxu0
        %v1183 = vadd.f32 0.0, %v1182
        %v1184 = vpop.f32.mrb[0].mxu0
        %v1185 = vpop.f32.mrb[0].mxu0
        %v1186 = vadd.f32 0.0, %v1185
        %v1187 = vpop.f32.mrb[0].mxu0
        %1188 = vmatprep.mubr.bf16.mxu0 0
        %1189 = vmatmul.mubr.bf16.gmra.mrb[0].mxu0 %v1035
        %v1190 = vpop.f32.mrb[0].mxu0
        %v1191 = vadd.f32 0.0, %v1190
        %v1192 = vpop.f32.mrb[0].mxu0
        %v1193 = vpop.f32.mrb[0].mxu0
        %v1194 = vadd.f32 0.0, %v1193
        %v1195 = vpop.f32.mrb[0].mxu0
        %1196 = vdwg.mxu0
        %v1197 = vld [vmem:[%s5] sm:$0x1]
        %v1199 = vlaneseq
        %v1200 = vshrl.u32 %v1199, 7
        %v1201 = vsub.s32 0, %v1200
        %v1202 = vrot.slane %v1197, %v1201
        %v1204 = vmul.f32 %v1135, %v1202
        %v1205 = vmul.f32 %v1138, %v1202
        %v1206 = vmul.f32 %v1143, %v1202
        %v1207 = vmul.f32 %v1146, %v1202
        %v1208 = vmul.f32 %v1151, %v1202
        %v1209 = vmul.f32 %v1154, %v1202
        %v1210 = vmul.f32 %v1159, %v1202
        %v1211 = vmul.f32 %v1162, %v1202
        %v1212 = vmul.f32 %v1167, %v1202
        %v1213 = vmul.f32 %v1170, %v1202
        %v1214 = vmul.f32 %v1175, %v1202
        %v1215 = vmul.f32 %v1178, %v1202
        %v1216 = vmul.f32 %v1183, %v1202
        %v1217 = vmul.f32 %v1186, %v1202
        %v1218 = vmul.f32 %v1191, %v1202
        %v1219 = vmul.f32 %v1194, %v1202
        %v1220 = vld [vmem:[%s6] sm:$0x1]
        %v1222 = vlaneseq
        %v1223 = vshrl.u32 %v1222, 7
        %v1224 = vsub.s32 0, %v1223
        %v1225 = vrot.slane %v1220, %v1224
        %v1227 = vadd.f32 %v1204, %v1225
        %v1228 = vadd.f32 %v1205, %v1225
        %v1229 = vadd.f32 %v1206, %v1225
        %v1230 = vadd.f32 %v1207, %v1225
        %v1231 = vadd.f32 %v1208, %v1225
        %v1232 = vadd.f32 %v1209, %v1225
        %v1233 = vadd.f32 %v1210, %v1225
        %v1234 = vadd.f32 %v1211, %v1225
        %v1235 = vadd.f32 %v1212, %v1225
        %v1236 = vadd.f32 %v1213, %v1225
        %v1237 = vadd.f32 %v1214, %v1225
        %v1238 = vadd.f32 %v1215, %v1225
        %v1239 = vadd.f32 %v1216, %v1225
        %v1240 = vadd.f32 %v1217, %v1225
        %v1241 = vadd.f32 %v1218, %v1225
        %v1242 = vadd.f32 %v1219, %v1225
        %v1243 = vmax.f32 %v1227, 0.0
        %v1244 = vmax.f32 %v1228, 0.0
        %v1245 = vmax.f32 %v1229, 0.0
        %v1246 = vmax.f32 %v1230, 0.0
        %v1247 = vmax.f32 %v1231, 0.0
        %v1248 = vmax.f32 %v1232, 0.0
        %v1249 = vmax.f32 %v1233, 0.0
        %v1250 = vmax.f32 %v1234, 0.0
        %v1251 = vmax.f32 %v1235, 0.0
        %v1252 = vmax.f32 %v1236, 0.0
        %v1253 = vmax.f32 %v1237, 0.0
        %v1254 = vmax.f32 %v1238, 0.0
        %v1255 = vmax.f32 %v1239, 0.0
        %v1256 = vmax.f32 %v1240, 0.0
        %v1257 = vmax.f32 %v1241, 0.0
        %v1258 = vmax.f32 %v1242, 0.0
        %v1259 = vpack.c.bf16 %v1244, %v1243
        %v1260 = vpack.c.bf16 %v1246, %v1245
        %v1261 = vpack.c.bf16 %v1248, %v1247
        %v1262 = vpack.c.bf16 %v1250, %v1249
        %v1263 = vpack.c.bf16 %v1252, %v1251
        %v1264 = vpack.c.bf16 %v1254, %v1253
        %v1265 = vpack.c.bf16 %v1256, %v1255
        %v1266 = vpack.c.bf16 %v1258, %v1257
        %v1267 = vld [vmem:[%s7] sm:$0xf]
        %v1268 = vld [vmem:[%s7 + $0x4] sm:$0xf]
        %v1269 = vld [vmem:[%s7 + $0x8] sm:$0xf]
        %v1270 = vld [vmem:[%s7 + $0xc] sm:$0xf]
        %v1271 = vld [vmem:[%s7 + $0x10] sm:$0xf]
        %v1272 = vld [vmem:[%s7 + $0x14] sm:$0xf]
        %v1273 = vld [vmem:[%s7 + $0x18] sm:$0xf]
        %v1274 = vld [vmem:[%s7 + $0x1c] sm:$0xf]
        %v1275 = vld [vmem:[%s7 + $0x20] sm:$0xf]
        %v1276 = vld [vmem:[%s7 + $0x24] sm:$0xf]
        %v1277 = vld [vmem:[%s7 + $0x28] sm:$0xf]
        %v1278 = vld [vmem:[%s7 + $0x2c] sm:$0xf]
        %v1279 = vld [vmem:[%s7 + $0x30] sm:$0xf]
        %v1280 = vld [vmem:[%s7 + $0x34] sm:$0xf]
        %v1281 = vld [vmem:[%s7 + $0x38] sm:$0xf]
        %v1282 = vld [vmem:[%s7 + $0x3c] sm:$0xf]
        %v1299 = vunpack.c.l.b16 %v1267
        %v1300 = vunpack.c.l.b16 %v1268
        %v1301 = vunpack.c.l.b16 %v1269
        %v1302 = vunpack.c.l.b16 %v1270
        %v1303 = vunpack.c.l.b16 %v1271
        %v1304 = vunpack.c.l.b16 %v1272
        %v1305 = vunpack.c.l.b16 %v1273
        %v1306 = vunpack.c.l.b16 %v1274
        %v1307 = vunpack.c.l.b16 %v1275
        %v1308 = vunpack.c.l.b16 %v1276
        %v1309 = vunpack.c.l.b16 %v1277
        %v1310 = vunpack.c.l.b16 %v1278
        %v1311 = vunpack.c.l.b16 %v1279
        %v1312 = vunpack.c.l.b16 %v1280
        %v1313 = vunpack.c.l.b16 %v1281
        %v1314 = vunpack.c.l.b16 %v1282
        %v1315 = vpack.c.b16 %v1300, %v1299
        %v1316 = vpack.c.b16 %v1302, %v1301
        %v1317 = vpack.c.b16 %v1304, %v1303
        %v1318 = vpack.c.b16 %v1306, %v1305
        %v1319 = vpack.c.b16 %v1308, %v1307
        %v1320 = vpack.c.b16 %v1310, %v1309
        %v1321 = vpack.c.b16 %v1312, %v1311
        %v1322 = vpack.c.b16 %v1314, %v1313
        %1331 = vmatprep.subr.bf16.mxu0 0
        %1332 = vmatpush1.bf16.msra.mxu0 %v1315
        %1333 = vmatprep.subr.bf16.mxu0 0
        %1334 = vmatpush1.bf16.msra.mxu0 %v1316
        %1335 = vmatprep.subr.bf16.mxu0 0
        %1336 = vmatpush1.bf16.msra.mxu0 %v1317
        %1337 = vmatprep.subr.bf16.mxu0 0
        %1338 = vmatpush1.bf16.msra.mxu0 %v1318
        %1339 = vmatprep.subr.bf16.mxu0 0
        %1340 = vmatpush1.bf16.msra.mxu0 %v1319
        %1341 = vmatprep.subr.bf16.mxu0 0
        %1342 = vmatpush1.bf16.msra.mxu0 %v1320
        %1343 = vmatprep.subr.bf16.mxu0 0
        %1344 = vmatpush1.bf16.msra.mxu0 %v1321
        %1345 = vmatprep.subr.bf16.mxu0 0
        %1346 = vmatpush1.bf16.msra.mxu0 %v1322
        %1347 = vmatprep.subr.bf16.mxu0 0
        %1348 = vmatpush1.bf16.msra.mxu0 0
        %1349 = vmatprep.subr.bf16.mxu0 0
        %1350 = vmatpush1.bf16.msra.mxu0 0
        %1351 = vmatprep.subr.bf16.mxu0 0
        %1352 = vmatpush1.bf16.msra.mxu0 0
        %1353 = vmatprep.subr.bf16.mxu0 0
        %1354 = vmatpush1.bf16.msra.mxu0 0
        %1355 = vmatprep.subr.bf16.mxu0 0
        %1356 = vmatpush1.bf16.msra.mxu0 0
        %1357 = vmatprep.subr.bf16.mxu0 0
        %1358 = vmatpush1.bf16.msra.mxu0 0
        %1359 = vmatprep.subr.bf16.mxu0 0
        %1360 = vmatpush1.bf16.msra.mxu0 0
        %1361 = vmatprep.subr.bf16.mxu0 0
        %1362 = vmatpush1.bf16.msra.mxu0 0
        %1363 = vmatprep.mubr.bf16.mxu0 0
        %1364 = vmatmul.mubr.bf16.gmra.mrb[0].mxu0 %v1259
        %v1365 = vpop.f32.mrb[0].mxu0
        %v1366 = vadd.f32 0.0, %v1365
        %v1367 = vpop.f32.mrb[0].mxu0
        %v1368 = vpop.f32.mrb[0].mxu0
        %v1369 = vadd.f32 0.0, %v1368
        %v1370 = vpop.f32.mrb[0].mxu0
        %1371 = vmatprep.mubr.bf16.mxu0 0
        %1372 = vmatmul.mubr.bf16.gmra.mrb[0].mxu0 %v1260
        %v1373 = vpop.f32.mrb[0].mxu0
        %v1374 = vadd.f32 0.0, %v1373
        %v1375 = vpop.f32.mrb[0].mxu0
        %v1376 = vpop.f32.mrb[0].mxu0
        %v1377 = vadd.f32 0.0, %v1376
        %v1378 = vpop.f32.mrb[0].mxu0
        %1379 = vmatprep.mubr.bf16.mxu0 0
        %1380 = vmatmul.mubr.bf16.gmra.mrb[0].mxu0 %v1261
        %v1381 = vpop.f32.mrb[0].mxu0
        %v1382 = vadd.f32 0.0, %v1381
        %v1383 = vpop.f32.mrb[0].mxu0
        %v1384 = vpop.f32.mrb[0].mxu0
        %v1385 = vadd.f32 0.0, %v1384
        %v1386 = vpop.f32.mrb[0].mxu0
        %1387 = vmatprep.mubr.bf16.mxu0 0
        %1388 = vmatmul.mubr.bf16.gmra.mrb[0].mxu0 %v1262
        %v1389 = vpop.f32.mrb[0].mxu0
        %v1390 = vadd.f32 0.0, %v1389
        %v1391 = vpop.f32.mrb[0].mxu0
        %v1392 = vpop.f32.mrb[0].mxu0
        %v1393 = vadd.f32 0.0, %v1392
        %v1394 = vpop.f32.mrb[0].mxu0
        %1395 = vmatprep.mubr.bf16.mxu0 0
        %1396 = vmatmul.mubr.bf16.gmra.mrb[0].mxu0 %v1263
        %v1397 = vpop.f32.mrb[0].mxu0
        %v1398 = vadd.f32 0.0, %v1397
        %v1399 = vpop.f32.mrb[0].mxu0
        %v1400 = vpop.f32.mrb[0].mxu0
        %v1401 = vadd.f32 0.0, %v1400
        %v1402 = vpop.f32.mrb[0].mxu0
        %1403 = vmatprep.mubr.bf16.mxu0 0
        %1404 = vmatmul.mubr.bf16.gmra.mrb[0].mxu0 %v1264
        %v1405 = vpop.f32.mrb[0].mxu0
        %v1406 = vadd.f32 0.0, %v1405
        %v1407 = vpop.f32.mrb[0].mxu0
        %v1408 = vpop.f32.mrb[0].mxu0
        %v1409 = vadd.f32 0.0, %v1408
        %v1410 = vpop.f32.mrb[0].mxu0
        %1411 = vmatprep.mubr.bf16.mxu0 0
        %1412 = vmatmul.mubr.bf16.gmra.mrb[0].mxu0 %v1265
        %v1413 = vpop.f32.mrb[0].mxu0
        %v1414 = vadd.f32 0.0, %v1413
        %v1415 = vpop.f32.mrb[0].mxu0
        %v1416 = vpop.f32.mrb[0].mxu0
        %v1417 = vadd.f32 0.0, %v1416
        %v1418 = vpop.f32.mrb[0].mxu0
        %1419 = vmatprep.mubr.bf16.mxu0 0
        %1420 = vmatmul.mubr.bf16.gmra.mrb[0].mxu0 %v1266
        %v1421 = vpop.f32.mrb[0].mxu0
        %v1422 = vadd.f32 0.0, %v1421
        %v1423 = vpop.f32.mrb[0].mxu0
        %v1424 = vpop.f32.mrb[0].mxu0
        %v1425 = vadd.f32 0.0, %v1424
        %v1426 = vpop.f32.mrb[0].mxu0
        %1427 = vdwg.mxu0
        %v1428 = vld [vmem:[%s8] sm:$0x1]
        %v1430 = vlaneseq
        %v1431 = vshrl.u32 %v1430, 7
        %v1432 = vsub.s32 0, %v1431
        %v1433 = vrot.slane %v1428, %v1432
        %v1435 = vmul.f32 %v1366, %v1433
        %v1436 = vmul.f32 %v1369, %v1433
        %v1437 = vmul.f32 %v1374, %v1433
        %v1438 = vmul.f32 %v1377, %v1433
        %v1439 = vmul.f32 %v1382, %v1433
        %v1440 = vmul.f32 %v1385, %v1433
        %v1441 = vmul.f32 %v1390, %v1433
        %v1442 = vmul.f32 %v1393, %v1433
        %v1443 = vmul.f32 %v1398, %v1433
        %v1444 = vmul.f32 %v1401, %v1433
        %v1445 = vmul.f32 %v1406, %v1433
        %v1446 = vmul.f32 %v1409, %v1433
        %v1447 = vmul.f32 %v1414, %v1433
        %v1448 = vmul.f32 %v1417, %v1433
        %v1449 = vmul.f32 %v1422, %v1433
        %v1450 = vmul.f32 %v1425, %v1433
        %v1451 = vld [vmem:[%s9] sm:$0x1]
        %v1453 = vlaneseq
        %v1454 = vshrl.u32 %v1453, 7
        %v1455 = vsub.s32 0, %v1454
        %v1456 = vrot.slane %v1451, %v1455
        %v1458 = vadd.f32 %v1435, %v1456
        %v1459 = vadd.f32 %v1436, %v1456
        %v1460 = vadd.f32 %v1437, %v1456
        %v1461 = vadd.f32 %v1438, %v1456
        %v1462 = vadd.f32 %v1439, %v1456
        %v1463 = vadd.f32 %v1440, %v1456
        %v1464 = vadd.f32 %v1441, %v1456
        %v1465 = vadd.f32 %v1442, %v1456
        %v1466 = vadd.f32 %v1443, %v1456
        %v1467 = vadd.f32 %v1444, %v1456
        %v1468 = vadd.f32 %v1445, %v1456
        %v1469 = vadd.f32 %v1446, %v1456
        %v1470 = vadd.f32 %v1447, %v1456
        %v1471 = vadd.f32 %v1448, %v1456
        %v1472 = vadd.f32 %v1449, %v1456
        %v1473 = vadd.f32 %v1450, %v1456
        %v1474 = vmax.f32 %v1458, 0.0
        %v1475 = vmax.f32 %v1459, 0.0
        %v1476 = vmax.f32 %v1460, 0.0
        %v1477 = vmax.f32 %v1461, 0.0
        %v1478 = vmax.f32 %v1462, 0.0
        %v1479 = vmax.f32 %v1463, 0.0
        %v1480 = vmax.f32 %v1464, 0.0
        %v1481 = vmax.f32 %v1465, 0.0
        %v1482 = vmax.f32 %v1466, 0.0
        %v1483 = vmax.f32 %v1467, 0.0
        %v1484 = vmax.f32 %v1468, 0.0
        %v1485 = vmax.f32 %v1469, 0.0
        %v1486 = vmax.f32 %v1470, 0.0
        %v1487 = vmax.f32 %v1471, 0.0
        %v1488 = vmax.f32 %v1472, 0.0
        %v1489 = vmax.f32 %v1473, 0.0
        %v1490 = vunpack.c.l.bf16 %v1259
        %v1491 = vunpack.c.h.bf16 %v1259
        %v1492 = vunpack.c.l.bf16 %v1260
        %v1493 = vunpack.c.h.bf16 %v1260
        %v1494 = vunpack.c.l.bf16 %v1261
        %v1495 = vunpack.c.h.bf16 %v1261
        %v1496 = vunpack.c.l.bf16 %v1262
        %v1497 = vunpack.c.h.bf16 %v1262
        %v1498 = vunpack.c.l.bf16 %v1263
        %v1499 = vunpack.c.h.bf16 %v1263
        %v1500 = vunpack.c.l.bf16 %v1264
        %v1501 = vunpack.c.h.bf16 %v1264
        %v1502 = vunpack.c.l.bf16 %v1265
        %v1503 = vunpack.c.h.bf16 %v1265
        %v1504 = vunpack.c.l.bf16 %v1266
        %v1505 = vunpack.c.h.bf16 %v1266
        %v1506 = vadd.f32 %v1490, %v1474
        %v1507 = vadd.f32 %v1491, %v1475
        %v1508 = vadd.f32 %v1492, %v1476
        %v1509 = vadd.f32 %v1493, %v1477
        %v1510 = vadd.f32 %v1494, %v1478
        %v1511 = vadd.f32 %v1495, %v1479
        %v1512 = vadd.f32 %v1496, %v1480
        %v1513 = vadd.f32 %v1497, %v1481
        %v1514 = vadd.f32 %v1498, %v1482
        %v1515 = vadd.f32 %v1499, %v1483
        %v1516 = vadd.f32 %v1500, %v1484
        %v1517 = vadd.f32 %v1501, %v1485
        %v1518 = vadd.f32 %v1502, %v1486
        %v1519 = vadd.f32 %v1503, %v1487
        %v1520 = vadd.f32 %v1504, %v1488
        %v1521 = vadd.f32 %v1505, %v1489
        %v1522 = vpack.c.bf16 %v1507, %v1506
        %v1523 = vpack.c.bf16 %v1509, %v1508
        %v1524 = vpack.c.bf16 %v1511, %v1510
        %v1525 = vpack.c.bf16 %v1513, %v1512
        %v1526 = vpack.c.bf16 %v1515, %v1514
        %v1527 = vpack.c.bf16 %v1517, %v1516
        %v1528 = vpack.c.bf16 %v1519, %v1518
        %v1529 = vpack.c.bf16 %v1521, %v1520
        %v1530 = vld [vmem:[#allocation7] sm:$0xf]
        %v1531 = vld [vmem:[#allocation7 + $0x4] sm:$0xf]
        %v1532 = vld [vmem:[#allocation7 + $0x8] sm:$0xf]
        %v1533 = vld [vmem:[#allocation7 + $0xc] sm:$0xf]
        %v1534 = vld [vmem:[#allocation7 + $0x10] sm:$0xf]
        %v1535 = vld [vmem:[#allocation7 + $0x14] sm:$0xf]
        %v1536 = vld [vmem:[#allocation7 + $0x18] sm:$0xf]
        %v1537 = vld [vmem:[#allocation7 + $0x1c] sm:$0xf]
        %v1538 = vld [vmem:[#allocation7 + $0x20] sm:$0xf]
        %v1539 = vld [vmem:[#allocation7 + $0x24] sm:$0xf]
        %v1540 = vld [vmem:[#allocation7 + $0x28] sm:$0xf]
        %v1541 = vld [vmem:[#allocation7 + $0x2c] sm:$0xf]
        %v1542 = vld [vmem:[#allocation7 + $0x30] sm:$0xf]
        %v1543 = vld [vmem:[#allocation7 + $0x34] sm:$0xf]
        %v1544 = vld [vmem:[#allocation7 + $0x38] sm:$0xf]
        %v1545 = vld [vmem:[#allocation7 + $0x3c] sm:$0xf]
        %v1562 = vunpack.c.l.b16 %v1530
        %v1563 = vunpack.c.l.b16 %v1531
        %v1564 = vunpack.c.l.b16 %v1532
        %v1565 = vunpack.c.l.b16 %v1533
        %v1566 = vunpack.c.l.b16 %v1534
        %v1567 = vunpack.c.l.b16 %v1535
        %v1568 = vunpack.c.l.b16 %v1536
        %v1569 = vunpack.c.l.b16 %v1537
        %v1570 = vunpack.c.l.b16 %v1538
        %v1571 = vunpack.c.l.b16 %v1539
        %v1572 = vunpack.c.l.b16 %v1540
        %v1573 = vunpack.c.l.b16 %v1541
        %v1574 = vunpack.c.l.b16 %v1542
        %v1575 = vunpack.c.l.b16 %v1543
        %v1576 = vunpack.c.l.b16 %v1544
        %v1577 = vunpack.c.l.b16 %v1545
        %v1578 = vpack.c.b16 %v1563, %v1562
        %v1579 = vpack.c.b16 %v1565, %v1564
        %v1580 = vpack.c.b16 %v1567, %v1566
        %v1581 = vpack.c.b16 %v1569, %v1568
        %v1582 = vpack.c.b16 %v1571, %v1570
        %v1583 = vpack.c.b16 %v1573, %v1572
        %v1584 = vpack.c.b16 %v1575, %v1574
        %v1585 = vpack.c.b16 %v1577, %v1576
        %1594 = vmatprep.subr.bf16.mxu0 0
        %1595 = vmatpush1.bf16.msra.mxu0 %v1578
        %1596 = vmatprep.subr.bf16.mxu0 0
        %1597 = vmatpush1.bf16.msra.mxu0 %v1579
        %1598 = vmatprep.subr.bf16.mxu0 0
        %1599 = vmatpush1.bf16.msra.mxu0 %v1580
        %1600 = vmatprep.subr.bf16.mxu0 0
        %1601 = vmatpush1.bf16.msra.mxu0 %v1581
        %1602 = vmatprep.subr.bf16.mxu0 0
        %1603 = vmatpush1.bf16.msra.mxu0 %v1582
        %1604 = vmatprep.subr.bf16.mxu0 0
        %1605 = vmatpush1.bf16.msra.mxu0 %v1583
        %1606 = vmatprep.subr.bf16.mxu0 0
        %1607 = vmatpush1.bf16.msra.mxu0 %v1584
        %1608 = vmatprep.subr.bf16.mxu0 0
        %1609 = vmatpush1.bf16.msra.mxu0 %v1585
        %1610 = vmatprep.subr.bf16.mxu0 0
        %1611 = vmatpush1.bf16.msra.mxu0 0
        %1612 = vmatprep.subr.bf16.mxu0 0
        %1613 = vmatpush1.bf16.msra.mxu0 0
        %1614 = vmatprep.subr.bf16.mxu0 0
        %1615 = vmatpush1.bf16.msra.mxu0 0
        %1616 = vmatprep.subr.bf16.mxu0 0
        %1617 = vmatpush1.bf16.msra.mxu0 0
        %1618 = vmatprep.subr.bf16.mxu0 0
        %1619 = vmatpush1.bf16.msra.mxu0 0
        %1620 = vmatprep.subr.bf16.mxu0 0
        %1621 = vmatpush1.bf16.msra.mxu0 0
        %1622 = vmatprep.subr.bf16.mxu0 0
        %1623 = vmatpush1.bf16.msra.mxu0 0
        %1624 = vmatprep.subr.bf16.mxu0 0
        %1625 = vmatpush1.bf16.msra.mxu0 0
        %1626 = vmatprep.mubr.bf16.mxu0 0
        %1627 = vmatmul.mubr.bf16.gmra.mrb[0].mxu0 %v1522
        %v1628 = vpop.f32.mrb[0].mxu0
        %v1629 = vadd.f32 0.0, %v1628
        %v1630 = vpop.f32.mrb[0].mxu0
        %v1631 = vpop.f32.mrb[0].mxu0
        %v1632 = vadd.f32 0.0, %v1631
        %v1633 = vpop.f32.mrb[0].mxu0
        %1634 = vmatprep.mubr.bf16.mxu0 0
        %1635 = vmatmul.mubr.bf16.gmra.mrb[0].mxu0 %v1523
        %v1636 = vpop.f32.mrb[0].mxu0
        %v1637 = vadd.f32 0.0, %v1636
        %v1638 = vpop.f32.mrb[0].mxu0
        %v1639 = vpop.f32.mrb[0].mxu0
        %v1640 = vadd.f32 0.0, %v1639
        %v1641 = vpop.f32.mrb[0].mxu0
        %1642 = vmatprep.mubr.bf16.mxu0 0
        %1643 = vmatmul.mubr.bf16.gmra.mrb[0].mxu0 %v1524
        %v1644 = vpop.f32.mrb[0].mxu0
        %v1645 = vadd.f32 0.0, %v1644
        %v1646 = vpop.f32.mrb[0].mxu0
        %v1647 = vpop.f32.mrb[0].mxu0
        %v1648 = vadd.f32 0.0, %v1647
        %v1649 = vpop.f32.mrb[0].mxu0
        %1650 = vmatprep.mubr.bf16.mxu0 0
        %1651 = vmatmul.mubr.bf16.gmra.mrb[0].mxu0 %v1525
        %v1652 = vpop.f32.mrb[0].mxu0
        %v1653 = vadd.f32 0.0, %v1652
        %v1654 = vpop.f32.mrb[0].mxu0
        %v1655 = vpop.f32.mrb[0].mxu0
        %v1656 = vadd.f32 0.0, %v1655
        %v1657 = vpop.f32.mrb[0].mxu0
        %1658 = vmatprep.mubr.bf16.mxu0 0
        %1659 = vmatmul.mubr.bf16.gmra.mrb[0].mxu0 %v1526
        %v1660 = vpop.f32.mrb[0].mxu0
        %v1661 = vadd.f32 0.0, %v1660
        %v1662 = vpop.f32.mrb[0].mxu0
        %v1663 = vpop.f32.mrb[0].mxu0
        %v1664 = vadd.f32 0.0, %v1663
        %v1665 = vpop.f32.mrb[0].mxu0
        %1666 = vmatprep.mubr.bf16.mxu0 0
        %1667 = vmatmul.mubr.bf16.gmra.mrb[0].mxu0 %v1527
        %v1668 = vpop.f32.mrb[0].mxu0
        %v1669 = vadd.f32 0.0, %v1668
        %v1670 = vpop.f32.mrb[0].mxu0
        %v1671 = vpop.f32.mrb[0].mxu0
        %v1672 = vadd.f32 0.0, %v1671
        %v1673 = vpop.f32.mrb[0].mxu0
        %1674 = vmatprep.mubr.bf16.mxu0 0
        %1675 = vmatmul.mubr.bf16.gmra.mrb[0].mxu0 %v1528
        %v1676 = vpop.f32.mrb[0].mxu0
        %v1677 = vadd.f32 0.0, %v1676
        %v1678 = vpop.f32.mrb[0].mxu0
        %v1679 = vpop.f32.mrb[0].mxu0
        %v1680 = vadd.f32 0.0, %v1679
        %v1681 = vpop.f32.mrb[0].mxu0
        %1682 = vmatprep.mubr.bf16.mxu0 0
        %1683 = vmatmul.mubr.bf16.gmra.mrb[0].mxu0 %v1529
        %v1684 = vpop.f32.mrb[0].mxu0
        %v1685 = vadd.f32 0.0, %v1684
        %v1686 = vpop.f32.mrb[0].mxu0
        %v1687 = vpop.f32.mrb[0].mxu0
        %v1688 = vadd.f32 0.0, %v1687
        %v1689 = vpop.f32.mrb[0].mxu0
        %1690 = vdwg.mxu0
        %v1691 = vld [vmem:[%s11] sm:$0x1]
        %v1693 = vlaneseq
        %v1694 = vshrl.u32 %v1693, 7
        %v1695 = vsub.s32 0, %v1694
        %v1696 = vrot.slane %v1691, %v1695
        %v1698 = vmul.f32 %v1629, %v1696
        %v1699 = vmul.f32 %v1632, %v1696
        %v1700 = vmul.f32 %v1637, %v1696
        %v1701 = vmul.f32 %v1640, %v1696
        %v1702 = vmul.f32 %v1645, %v1696
        %v1703 = vmul.f32 %v1648, %v1696
        %v1704 = vmul.f32 %v1653, %v1696
        %v1705 = vmul.f32 %v1656, %v1696
        %v1706 = vmul.f32 %v1661, %v1696
        %v1707 = vmul.f32 %v1664, %v1696
        %v1708 = vmul.f32 %v1669, %v1696
        %v1709 = vmul.f32 %v1672, %v1696
        %v1710 = vmul.f32 %v1677, %v1696
        %v1711 = vmul.f32 %v1680, %v1696
        %v1712 = vmul.f32 %v1685, %v1696
        %v1713 = vmul.f32 %v1688, %v1696
        %v1714 = vld [vmem:[%s12] sm:$0x1]
        %v1716 = vlaneseq
        %v1717 = vshrl.u32 %v1716, 7
        %v1718 = vsub.s32 0, %v1717
        %v1719 = vrot.slane %v1714, %v1718
        %v1721 = vadd.f32 %v1698, %v1719
        %v1722 = vadd.f32 %v1699, %v1719
        %v1723 = vadd.f32 %v1700, %v1719
        %v1724 = vadd.f32 %v1701, %v1719
        %v1725 = vadd.f32 %v1702, %v1719
        %v1726 = vadd.f32 %v1703, %v1719
        %v1727 = vadd.f32 %v1704, %v1719
        %v1728 = vadd.f32 %v1705, %v1719
        %v1729 = vadd.f32 %v1706, %v1719
        %v1730 = vadd.f32 %v1707, %v1719
        %v1731 = vadd.f32 %v1708, %v1719
        %v1732 = vadd.f32 %v1709, %v1719
        %v1733 = vadd.f32 %v1710, %v1719
        %v1734 = vadd.f32 %v1711, %v1719
        %v1735 = vadd.f32 %v1712, %v1719
        %v1736 = vadd.f32 %v1713, %v1719
        %v1737 = vmax.f32 %v1721, 0.0
        %v1738 = vmax.f32 %v1722, 0.0
        %v1739 = vmax.f32 %v1723, 0.0
        %v1740 = vmax.f32 %v1724, 0.0
        %v1741 = vmax.f32 %v1725, 0.0
        %v1742 = vmax.f32 %v1726, 0.0
        %v1743 = vmax.f32 %v1727, 0.0
        %v1744 = vmax.f32 %v1728, 0.0
        %v1745 = vmax.f32 %v1729, 0.0
        %v1746 = vmax.f32 %v1730, 0.0
        %v1747 = vmax.f32 %v1731, 0.0
        %v1748 = vmax.f32 %v1732, 0.0
        %v1749 = vmax.f32 %v1733, 0.0
        %v1750 = vmax.f32 %v1734, 0.0
        %v1751 = vmax.f32 %v1735, 0.0
        %v1752 = vmax.f32 %v1736, 0.0
        %v1753 = vunpack.c.l.bf16 %v1522
        %v1754 = vunpack.c.h.bf16 %v1522
        %v1755 = vunpack.c.l.bf16 %v1523
        %v1756 = vunpack.c.h.bf16 %v1523
        %v1757 = vunpack.c.l.bf16 %v1524
        %v1758 = vunpack.c.h.bf16 %v1524
        %v1759 = vunpack.c.l.bf16 %v1525
        %v1760 = vunpack.c.h.bf16 %v1525
        %v1761 = vunpack.c.l.bf16 %v1526
        %v1762 = vunpack.c.h.bf16 %v1526
        %v1763 = vunpack.c.l.bf16 %v1527
        %v1764 = vunpack.c.h.bf16 %v1527
        %v1765 = vunpack.c.l.bf16 %v1528
        %v1766 = vunpack.c.h.bf16 %v1528
        %v1767 = vunpack.c.l.bf16 %v1529
        %v1768 = vunpack.c.h.bf16 %v1529
        %v1769 = vadd.f32 %v1753, %v1737
        %v1770 = vadd.f32 %v1754, %v1738
        %v1771 = vadd.f32 %v1755, %v1739
        %v1772 = vadd.f32 %v1756, %v1740
        %v1773 = vadd.f32 %v1757, %v1741
        %v1774 = vadd.f32 %v1758, %v1742
        %v1775 = vadd.f32 %v1759, %v1743
        %v1776 = vadd.f32 %v1760, %v1744
        %v1777 = vadd.f32 %v1761, %v1745
        %v1778 = vadd.f32 %v1762, %v1746
        %v1779 = vadd.f32 %v1763, %v1747
        %v1780 = vadd.f32 %v1764, %v1748
        %v1781 = vadd.f32 %v1765, %v1749
        %v1782 = vadd.f32 %v1766, %v1750
        %v1783 = vadd.f32 %v1767, %v1751
        %v1784 = vadd.f32 %v1768, %v1752
        %v1785 = vpack.c.bf16 %v1770, %v1769
        %v1786 = vpack.c.bf16 %v1772, %v1771
        %v1787 = vpack.c.bf16 %v1774, %v1773
        %v1788 = vpack.c.bf16 %v1776, %v1775
        %v1789 = vpack.c.bf16 %v1778, %v1777
        %v1790 = vpack.c.bf16 %v1780, %v1779
        %v1791 = vpack.c.bf16 %v1782, %v1781
        %v1792 = vpack.c.bf16 %v1784, %v1783
        %v1793 = vld [vmem:[#allocation8] sm:$0xf]
        %v1794 = vld [vmem:[#allocation8 + $0x4] sm:$0xf]
        %v1795 = vld [vmem:[#allocation8 + $0x8] sm:$0xf]
        %v1796 = vld [vmem:[#allocation8 + $0xc] sm:$0xf]
        %v1797 = vld [vmem:[#allocation8 + $0x10] sm:$0xf]
        %v1798 = vld [vmem:[#allocation8 + $0x14] sm:$0xf]
        %v1799 = vld [vmem:[#allocation8 + $0x18] sm:$0xf]
        %v1800 = vld [vmem:[#allocation8 + $0x1c] sm:$0xf]
        %v1801 = vld [vmem:[#allocation8 + $0x20] sm:$0xf]
        %v1802 = vld [vmem:[#allocation8 + $0x24] sm:$0xf]
        %v1803 = vld [vmem:[#allocation8 + $0x28] sm:$0xf]
        %v1804 = vld [vmem:[#allocation8 + $0x2c] sm:$0xf]
        %v1805 = vld [vmem:[#allocation8 + $0x30] sm:$0xf]
        %v1806 = vld [vmem:[#allocation8 + $0x34] sm:$0xf]
        %v1807 = vld [vmem:[#allocation8 + $0x38] sm:$0xf]
        %v1808 = vld [vmem:[#allocation8 + $0x3c] sm:$0xf]
        %v1825 = vunpack.c.l.b16 %v1793
        %v1826 = vunpack.c.l.b16 %v1794
        %v1827 = vunpack.c.l.b16 %v1795
        %v1828 = vunpack.c.l.b16 %v1796
        %v1829 = vunpack.c.l.b16 %v1797
        %v1830 = vunpack.c.l.b16 %v1798
        %v1831 = vunpack.c.l.b16 %v1799
        %v1832 = vunpack.c.l.b16 %v1800
        %v1833 = vunpack.c.l.b16 %v1801
        %v1834 = vunpack.c.l.b16 %v1802
        %v1835 = vunpack.c.l.b16 %v1803
        %v1836 = vunpack.c.l.b16 %v1804
        %v1837 = vunpack.c.l.b16 %v1805
        %v1838 = vunpack.c.l.b16 %v1806
        %v1839 = vunpack.c.l.b16 %v1807
        %v1840 = vunpack.c.l.b16 %v1808
        %v1841 = vpack.c.b16 %v1826, %v1825
        %v1842 = vpack.c.b16 %v1828, %v1827
        %v1843 = vpack.c.b16 %v1830, %v1829
        %v1844 = vpack.c.b16 %v1832, %v1831
        %v1845 = vpack.c.b16 %v1834, %v1833
        %v1846 = vpack.c.b16 %v1836, %v1835
        %v1847 = vpack.c.b16 %v1838, %v1837
        %v1848 = vpack.c.b16 %v1840, %v1839
        %1857 = vmatprep.subr.bf16.mxu0 0
        %1858 = vmatpush1.bf16.msra.mxu0 %v1841
        %1859 = vmatprep.subr.bf16.mxu0 0
        %1860 = vmatpush1.bf16.msra.mxu0 %v1842
        %1861 = vmatprep.subr.bf16.mxu0 0
        %1862 = vmatpush1.bf16.msra.mxu0 %v1843
        %1863 = vmatprep.subr.bf16.mxu0 0
        %1864 = vmatpush1.bf16.msra.mxu0 %v1844
        %1865 = vmatprep.subr.bf16.mxu0 0
        %1866 = vmatpush1.bf16.msra.mxu0 %v1845
        %1867 = vmatprep.subr.bf16.mxu0 0
        %1868 = vmatpush1.bf16.msra.mxu0 %v1846
        %1869 = vmatprep.subr.bf16.mxu0 0
        %1870 = vmatpush1.bf16.msra.mxu0 %v1847
        %1871 = vmatprep.subr.bf16.mxu0 0
        %1872 = vmatpush1.bf16.msra.mxu0 %v1848
        %1873 = vmatprep.subr.bf16.mxu0 0
        %1874 = vmatpush1.bf16.msra.mxu0 0
        %1875 = vmatprep.subr.bf16.mxu0 0
        %1876 = vmatpush1.bf16.msra.mxu0 0
        %1877 = vmatprep.subr.bf16.mxu0 0
        %1878 = vmatpush1.bf16.msra.mxu0 0
        %1879 = vmatprep.subr.bf16.mxu0 0
        %1880 = vmatpush1.bf16.msra.mxu0 0
        %1881 = vmatprep.subr.bf16.mxu0 0
        %1882 = vmatpush1.bf16.msra.mxu0 0
        %1883 = vmatprep.subr.bf16.mxu0 0
        %1884 = vmatpush1.bf16.msra.mxu0 0
        %1885 = vmatprep.subr.bf16.mxu0 0
        %1886 = vmatpush1.bf16.msra.mxu0 0
        %1887 = vmatprep.subr.bf16.mxu0 0
        %1888 = vmatpush1.bf16.msra.mxu0 0
        %1889 = vmatprep.mubr.bf16.mxu0 0
        %1890 = vmatmul.mubr.bf16.gmra.mrb[0].mxu0 %v1785
        %v1891 = vpop.f32.mrb[0].mxu0
        %v1892 = vadd.f32 0.0, %v1891
        %v1893 = vpop.f32.mrb[0].mxu0
        %v1894 = vpop.f32.mrb[0].mxu0
        %v1895 = vadd.f32 0.0, %v1894
        %v1896 = vpop.f32.mrb[0].mxu0
        %1897 = vmatprep.mubr.bf16.mxu0 0
        %1898 = vmatmul.mubr.bf16.gmra.mrb[0].mxu0 %v1786
        %v1899 = vpop.f32.mrb[0].mxu0
        %v1900 = vadd.f32 0.0, %v1899
        %v1901 = vpop.f32.mrb[0].mxu0
        %v1902 = vpop.f32.mrb[0].mxu0
        %v1903 = vadd.f32 0.0, %v1902
        %v1904 = vpop.f32.mrb[0].mxu0
        %1905 = vmatprep.mubr.bf16.mxu0 0
        %1906 = vmatmul.mubr.bf16.gmra.mrb[0].mxu0 %v1787
        %v1907 = vpop.f32.mrb[0].mxu0
        %v1908 = vadd.f32 0.0, %v1907
        %v1909 = vpop.f32.mrb[0].mxu0
        %v1910 = vpop.f32.mrb[0].mxu0
        %v1911 = vadd.f32 0.0, %v1910
        %v1912 = vpop.f32.mrb[0].mxu0
        %1913 = vmatprep.mubr.bf16.mxu0 0
        %1914 = vmatmul.mubr.bf16.gmra.mrb[0].mxu0 %v1788
        %v1915 = vpop.f32.mrb[0].mxu0
        %v1916 = vadd.f32 0.0, %v1915
        %v1917 = vpop.f32.mrb[0].mxu0
        %v1918 = vpop.f32.mrb[0].mxu0
        %v1919 = vadd.f32 0.0, %v1918
        %v1920 = vpop.f32.mrb[0].mxu0
        %1921 = vmatprep.mubr.bf16.mxu0 0
        %1922 = vmatmul.mubr.bf16.gmra.mrb[0].mxu0 %v1789
        %v1923 = vpop.f32.mrb[0].mxu0
        %v1924 = vadd.f32 0.0, %v1923
        %v1925 = vpop.f32.mrb[0].mxu0
        %v1926 = vpop.f32.mrb[0].mxu0
        %v1927 = vadd.f32 0.0, %v1926
        %v1928 = vpop.f32.mrb[0].mxu0
        %1929 = vmatprep.mubr.bf16.mxu0 0
        %1930 = vmatmul.mubr.bf16.gmra.mrb[0].mxu0 %v1790
        %v1931 = vpop.f32.mrb[0].mxu0
        %v1932 = vadd.f32 0.0, %v1931
        %v1933 = vpop.f32.mrb[0].mxu0
        %v1934 = vpop.f32.mrb[0].mxu0
        %v1935 = vadd.f32 0.0, %v1934
        %v1936 = vpop.f32.mrb[0].mxu0
        %1937 = vmatprep.mubr.bf16.mxu0 0
        %1938 = vmatmul.mubr.bf16.gmra.mrb[0].mxu0 %v1791
        %v1939 = vpop.f32.mrb[0].mxu0
        %v1940 = vadd.f32 0.0, %v1939
        %v1941 = vpop.f32.mrb[0].mxu0
        %v1942 = vpop.f32.mrb[0].mxu0
        %v1943 = vadd.f32 0.0, %v1942
        %v1944 = vpop.f32.mrb[0].mxu0
        %1945 = vmatprep.mubr.bf16.mxu0 0
        %1946 = vmatmul.mubr.bf16.gmra.mrb[0].mxu0 %v1792
        %v1947 = vpop.f32.mrb[0].mxu0
        %v1948 = vadd.f32 0.0, %v1947
        %v1949 = vpop.f32.mrb[0].mxu0
        %v1950 = vpop.f32.mrb[0].mxu0
        %v1951 = vadd.f32 0.0, %v1950
        %v1952 = vpop.f32.mrb[0].mxu0
        %1953 = vdwg.mxu0
        %v1954 = vld [vmem:[%s14] sm:$0x1]
        %v1956 = vlaneseq
        %v1957 = vshrl.u32 %v1956, 7
        %v1958 = vsub.s32 0, %v1957
        %v1959 = vrot.slane %v1954, %v1958
        %v1961 = vmul.f32 %v1892, %v1959
        %v1962 = vmul.f32 %v1895, %v1959
        %v1963 = vmul.f32 %v1900, %v1959
        %v1964 = vmul.f32 %v1903, %v1959
        %v1965 = vmul.f32 %v1908, %v1959
        %v1966 = vmul.f32 %v1911, %v1959
        %v1967 = vmul.f32 %v1916, %v1959
        %v1968 = vmul.f32 %v1919, %v1959
        %v1969 = vmul.f32 %v1924, %v1959
        %v1970 = vmul.f32 %v1927, %v1959
        %v1971 = vmul.f32 %v1932, %v1959
        %v1972 = vmul.f32 %v1935, %v1959
        %v1973 = vmul.f32 %v1940, %v1959
        %v1974 = vmul.f32 %v1943, %v1959
        %v1975 = vmul.f32 %v1948, %v1959
        %v1976 = vmul.f32 %v1951, %v1959
        %v1977 = vld [vmem:[%s15] sm:$0x1]
        %v1979 = vlaneseq
        %v1980 = vshrl.u32 %v1979, 7
        %v1981 = vsub.s32 0, %v1980
        %v1982 = vrot.slane %v1977, %v1981
        %v1984 = vadd.f32 %v1961, %v1982
        %v1985 = vadd.f32 %v1962, %v1982
        %v1986 = vadd.f32 %v1963, %v1982
        %v1987 = vadd.f32 %v1964, %v1982
        %v1988 = vadd.f32 %v1965, %v1982
        %v1989 = vadd.f32 %v1966, %v1982
        %v1990 = vadd.f32 %v1967, %v1982
        %v1991 = vadd.f32 %v1968, %v1982
        %v1992 = vadd.f32 %v1969, %v1982
        %v1993 = vadd.f32 %v1970, %v1982
        %v1994 = vadd.f32 %v1971, %v1982
        %v1995 = vadd.f32 %v1972, %v1982
        %v1996 = vadd.f32 %v1973, %v1982
        %v1997 = vadd.f32 %v1974, %v1982
        %v1998 = vadd.f32 %v1975, %v1982
        %v1999 = vadd.f32 %v1976, %v1982
        %v2000 = vmax.f32 %v1984, 0.0
        %v2001 = vmax.f32 %v1985, 0.0
        %v2002 = vmax.f32 %v1986, 0.0
        %v2003 = vmax.f32 %v1987, 0.0
        %v2004 = vmax.f32 %v1988, 0.0
        %v2005 = vmax.f32 %v1989, 0.0
        %v2006 = vmax.f32 %v1990, 0.0
        %v2007 = vmax.f32 %v1991, 0.0
        %v2008 = vmax.f32 %v1992, 0.0
        %v2009 = vmax.f32 %v1993, 0.0
        %v2010 = vmax.f32 %v1994, 0.0
        %v2011 = vmax.f32 %v1995, 0.0
        %v2012 = vmax.f32 %v1996, 0.0
        %v2013 = vmax.f32 %v1997, 0.0
        %v2014 = vmax.f32 %v1998, 0.0
        %v2015 = vmax.f32 %v1999, 0.0
        %v2016 = vunpack.c.l.bf16 %v1785
        %v2017 = vunpack.c.h.bf16 %v1785
        %v2018 = vunpack.c.l.bf16 %v1786
        %v2019 = vunpack.c.h.bf16 %v1786
        %v2020 = vunpack.c.l.bf16 %v1787
        %v2021 = vunpack.c.h.bf16 %v1787
        %v2022 = vunpack.c.l.bf16 %v1788
        %v2023 = vunpack.c.h.bf16 %v1788
        %v2024 = vunpack.c.l.bf16 %v1789
        %v2025 = vunpack.c.h.bf16 %v1789
        %v2026 = vunpack.c.l.bf16 %v1790
        %v2027 = vunpack.c.h.bf16 %v1790
        %v2028 = vunpack.c.l.bf16 %v1791
        %v2029 = vunpack.c.h.bf16 %v1791
        %v2030 = vunpack.c.l.bf16 %v1792
        %v2031 = vunpack.c.h.bf16 %v1792
        %v2032 = vadd.f32 %v2016, %v2000
        %v2033 = vadd.f32 %v2017, %v2001
        %v2034 = vadd.f32 %v2018, %v2002
        %v2035 = vadd.f32 %v2019, %v2003
        %v2036 = vadd.f32 %v2020, %v2004
        %v2037 = vadd.f32 %v2021, %v2005
        %v2038 = vadd.f32 %v2022, %v2006
        %v2039 = vadd.f32 %v2023, %v2007
        %v2040 = vadd.f32 %v2024, %v2008
        %v2041 = vadd.f32 %v2025, %v2009
        %v2042 = vadd.f32 %v2026, %v2010
        %v2043 = vadd.f32 %v2027, %v2011
        %v2044 = vadd.f32 %v2028, %v2012
        %v2045 = vadd.f32 %v2029, %v2013
        %v2046 = vadd.f32 %v2030, %v2014
        %v2047 = vadd.f32 %v2031, %v2015
        %v2048 = vpack.c.bf16 %v2033, %v2032
        %v2049 = vpack.c.bf16 %v2035, %v2034
        %v2050 = vpack.c.bf16 %v2037, %v2036
        %v2051 = vpack.c.bf16 %v2039, %v2038
        %v2052 = vpack.c.bf16 %v2041, %v2040
        %v2053 = vpack.c.bf16 %v2043, %v2042
        %v2054 = vpack.c.bf16 %v2045, %v2044
        %v2055 = vpack.c.bf16 %v2047, %v2046
        %v2056 = vld [vmem:[#allocation10] sm:$0xff]
        %v2057 = vld [vmem:[#allocation10 + $0x8] sm:$0xff]
        %v2058 = vld [vmem:[#allocation10 + $0x10] sm:$0xff]
        %v2059 = vld [vmem:[#allocation10 + $0x18] sm:$0xff]
        %v2060 = vld [vmem:[#allocation10 + $0x20] sm:$0xff]
        %v2061 = vld [vmem:[#allocation10 + $0x28] sm:$0xff]
        %v2062 = vld [vmem:[#allocation10 + $0x30] sm:$0xff]
        %v2063 = vld [vmem:[#allocation10 + $0x38] sm:$0xff]
        %v2064 = vld [vmem:[#allocation10 + $0x40] sm:$0xff]
        %v2065 = vld [vmem:[#allocation10 + $0x48] sm:$0xff]
        %v2066 = vld [vmem:[#allocation10 + $0x50] sm:$0xff]
        %v2067 = vld [vmem:[#allocation10 + $0x58] sm:$0xff]
        %v2068 = vld [vmem:[#allocation10 + $0x60] sm:$0xff]
        %v2069 = vld [vmem:[#allocation10 + $0x68] sm:$0xff]
        %v2070 = vld [vmem:[#allocation10 + $0x70] sm:$0xff]
        %v2071 = vld [vmem:[#allocation10 + $0x78] sm:$0xff]
        %v2072 = vld [vmem:[#allocation10 + $0x80] sm:$0xff]
        %v2073 = vld [vmem:[#allocation10 + $0x88] sm:$0xff]
        %v2074 = vld [vmem:[#allocation10 + $0x90] sm:$0xff]
        %v2075 = vld [vmem:[#allocation10 + $0x98] sm:$0xff]
        %v2076 = vld [vmem:[#allocation10 + $0xa0] sm:$0xff]
        %v2077 = vld [vmem:[#allocation10 + $0xa8] sm:$0xff]
        %v2078 = vld [vmem:[#allocation10 + $0xb0] sm:$0xff]
        %v2079 = vld [vmem:[#allocation10 + $0xb8] sm:$0xff]
        %v2080 = vld [vmem:[#allocation10 + $0xc0] sm:$0xff]
        %v2081 = vld [vmem:[#allocation10 + $0xc8] sm:$0xff]
        %v2082 = vld [vmem:[#allocation10 + $0xd0] sm:$0xff]
        %v2083 = vld [vmem:[#allocation10 + $0xd8] sm:$0xff]
        %v2084 = vld [vmem:[#allocation10 + $0xe0] sm:$0xff]
        %v2085 = vld [vmem:[#allocation10 + $0xe8] sm:$0xff]
        %v2086 = vld [vmem:[#allocation10 + $0xf0] sm:$0xff]
        %v2087 = vld [vmem:[#allocation10 + $0xf8] sm:$0xff]
        %v2088 = vld [vmem:[#allocation10 + $0x100] sm:$0xff]
        %v2089 = vld [vmem:[#allocation10 + $0x108] sm:$0xff]
        %v2090 = vld [vmem:[#allocation10 + $0x110] sm:$0xff]
        %v2091 = vld [vmem:[#allocation10 + $0x118] sm:$0xff]
        %v2092 = vld [vmem:[#allocation10 + $0x120] sm:$0xff]
        %v2093 = vld [vmem:[#allocation10 + $0x128] sm:$0xff]
        %v2094 = vld [vmem:[#allocation10 + $0x130] sm:$0xff]
        %v2095 = vld [vmem:[#allocation10 + $0x138] sm:$0xff]
        %v2096 = vld [vmem:[#allocation10 + $0x140] sm:$0xff]
        %v2097 = vld [vmem:[#allocation10 + $0x148] sm:$0xff]
        %v2098 = vld [vmem:[#allocation10 + $0x150] sm:$0xff]
        %v2099 = vld [vmem:[#allocation10 + $0x158] sm:$0xff]
        %v2100 = vld [vmem:[#allocation10 + $0x160] sm:$0xff]
        %v2101 = vld [vmem:[#allocation10 + $0x168] sm:$0xff]
        %v2102 = vld [vmem:[#allocation10 + $0x170] sm:$0xff]
        %v2103 = vld [vmem:[#allocation10 + $0x178] sm:$0xff]
        %v2104 = vld [vmem:[#allocation10 + $0x180] sm:$0xff]
        %v2105 = vld [vmem:[#allocation10 + $0x188] sm:$0xff]
        %v2106 = vld [vmem:[#allocation10 + $0x190] sm:$0xff]
        %v2107 = vld [vmem:[#allocation10 + $0x198] sm:$0xff]
        %v2108 = vld [vmem:[#allocation10 + $0x1a0] sm:$0xff]
        %v2109 = vld [vmem:[#allocation10 + $0x1a8] sm:$0xff]
        %v2110 = vld [vmem:[#allocation10 + $0x1b0] sm:$0xff]
        %v2111 = vld [vmem:[#allocation10 + $0x1b8] sm:$0xff]
        %v2112 = vld [vmem:[#allocation10 + $0x1c0] sm:$0xff]
        %v2113 = vld [vmem:[#allocation10 + $0x1c8] sm:$0xff]
        %v2114 = vld [vmem:[#allocation10 + $0x1d0] sm:$0xff]
        %v2115 = vld [vmem:[#allocation10 + $0x1d8] sm:$0xff]
        %v2116 = vld [vmem:[#allocation10 + $0x1e0] sm:$0xff]
        %v2117 = vld [vmem:[#allocation10 + $0x1e8] sm:$0xff]
        %v2118 = vld [vmem:[#allocation10 + $0x1f0] sm:$0xff]
        %v2119 = vld [vmem:[#allocation10 + $0x1f8] sm:$0xff]
        %v2120 = vld [vmem:[#allocation10 + $0x200] sm:$0xff]
        %v2121 = vld [vmem:[#allocation10 + $0x208] sm:$0xff]
        %v2122 = vld [vmem:[#allocation10 + $0x210] sm:$0xff]
        %v2123 = vld [vmem:[#allocation10 + $0x218] sm:$0xff]
        %v2124 = vld [vmem:[#allocation10 + $0x220] sm:$0xff]
        %v2125 = vld [vmem:[#allocation10 + $0x228] sm:$0xff]
        %v2126 = vld [vmem:[#allocation10 + $0x230] sm:$0xff]
        %v2127 = vld [vmem:[#allocation10 + $0x238] sm:$0xff]
        %v2128 = vld [vmem:[#allocation10 + $0x240] sm:$0xff]
        %v2129 = vld [vmem:[#allocation10 + $0x248] sm:$0xff]
        %v2130 = vld [vmem:[#allocation10 + $0x250] sm:$0xff]
        %v2131 = vld [vmem:[#allocation10 + $0x258] sm:$0xff]
        %v2132 = vld [vmem:[#allocation10 + $0x260] sm:$0xff]
        %v2133 = vld [vmem:[#allocation10 + $0x268] sm:$0xff]
        %v2134 = vld [vmem:[#allocation10 + $0x270] sm:$0xff]
        %v2135 = vld [vmem:[#allocation10 + $0x278] sm:$0xff]
        %v2136 = vld [vmem:[#allocation10 + $0x280] sm:$0xff]
        %v2137 = vld [vmem:[#allocation10 + $0x288] sm:$0xff]
        %v2138 = vld [vmem:[#allocation10 + $0x290] sm:$0xff]
        %v2139 = vld [vmem:[#allocation10 + $0x298] sm:$0xff]
        %v2140 = vld [vmem:[#allocation10 + $0x2a0] sm:$0xff]
        %v2141 = vld [vmem:[#allocation10 + $0x2a8] sm:$0xff]
        %v2142 = vld [vmem:[#allocation10 + $0x2b0] sm:$0xff]
        %v2143 = vld [vmem:[#allocation10 + $0x2b8] sm:$0xff]
        %v2144 = vld [vmem:[#allocation10 + $0x2c0] sm:$0xff]
        %v2145 = vld [vmem:[#allocation10 + $0x2c8] sm:$0xff]
        %v2146 = vld [vmem:[#allocation10 + $0x2d0] sm:$0xff]
        %v2147 = vld [vmem:[#allocation10 + $0x2d8] sm:$0xff]
        %v2148 = vld [vmem:[#allocation10 + $0x2e0] sm:$0xff]
        %v2149 = vld [vmem:[#allocation10 + $0x2e8] sm:$0xff]
        %v2150 = vld [vmem:[#allocation10 + $0x2f0] sm:$0xff]
        %v2151 = vld [vmem:[#allocation10 + $0x2f8] sm:$0xff]
        %v2152 = vld [vmem:[#allocation10 + $0x300] sm:$0xff]
        %v2153 = vld [vmem:[#allocation10 + $0x308] sm:$0xff]
        %v2154 = vld [vmem:[#allocation10 + $0x310] sm:$0xff]
        %v2155 = vld [vmem:[#allocation10 + $0x318] sm:$0xff]
        %v2156 = vld [vmem:[#allocation10 + $0x320] sm:$0xff]
        %v2157 = vld [vmem:[#allocation10 + $0x328] sm:$0xff]
        %v2158 = vld [vmem:[#allocation10 + $0x330] sm:$0xff]
        %v2159 = vld [vmem:[#allocation10 + $0x338] sm:$0xff]
        %v2160 = vld [vmem:[#allocation10 + $0x340] sm:$0xff]
        %v2161 = vld [vmem:[#allocation10 + $0x348] sm:$0xff]
        %v2162 = vld [vmem:[#allocation10 + $0x350] sm:$0xff]
        %v2163 = vld [vmem:[#allocation10 + $0x358] sm:$0xff]
        %v2164 = vld [vmem:[#allocation10 + $0x360] sm:$0xff]
        %v2165 = vld [vmem:[#allocation10 + $0x368] sm:$0xff]
        %v2166 = vld [vmem:[#allocation10 + $0x370] sm:$0xff]
        %v2167 = vld [vmem:[#allocation10 + $0x378] sm:$0xff]
        %v2168 = vld [vmem:[#allocation10 + $0x380] sm:$0xff]
        %v2169 = vld [vmem:[#allocation10 + $0x388] sm:$0xff]
        %v2170 = vld [vmem:[#allocation10 + $0x390] sm:$0xff]
        %v2171 = vld [vmem:[#allocation10 + $0x398] sm:$0xff]
        %v2172 = vld [vmem:[#allocation10 + $0x3a0] sm:$0xff]
        %v2173 = vld [vmem:[#allocation10 + $0x3a8] sm:$0xff]
        %v2174 = vld [vmem:[#allocation10 + $0x3b0] sm:$0xff]
        %v2175 = vld [vmem:[#allocation10 + $0x3b8] sm:$0xff]
        %v2176 = vld [vmem:[#allocation10 + $0x3c0] sm:$0xff]
        %v2177 = vld [vmem:[#allocation10 + $0x3c8] sm:$0xff]
        %v2178 = vld [vmem:[#allocation10 + $0x3d0] sm:$0xff]
        %v2179 = vld [vmem:[#allocation10 + $0x3d8] sm:$0xff]
        %v2180 = vld [vmem:[#allocation10 + $0x3e0] sm:$0xff]
        %v2181 = vld [vmem:[#allocation10 + $0x3e8] sm:$0xff]
        %v2182 = vld [vmem:[#allocation10 + $0x3f0] sm:$0xff]
        %v2183 = vld [vmem:[#allocation10 + $0x3f8] sm:$0xff]
        %v2184 = vld [vmem:[#allocation10 + $0x400] sm:$0xff]
        %v2185 = vld [vmem:[#allocation10 + $0x408] sm:$0xff]
        %v2186 = vld [vmem:[#allocation10 + $0x410] sm:$0xff]
        %v2187 = vld [vmem:[#allocation10 + $0x418] sm:$0xff]
        %v2188 = vld [vmem:[#allocation10 + $0x420] sm:$0xff]
        %v2189 = vld [vmem:[#allocation10 + $0x428] sm:$0xff]
        %v2190 = vld [vmem:[#allocation10 + $0x430] sm:$0xff]
        %v2191 = vld [vmem:[#allocation10 + $0x438] sm:$0xff]
        %v2192 = vld [vmem:[#allocation10 + $0x440] sm:$0xff]
        %v2193 = vld [vmem:[#allocation10 + $0x448] sm:$0xff]
        %v2194 = vld [vmem:[#allocation10 + $0x450] sm:$0xff]
        %v2195 = vld [vmem:[#allocation10 + $0x458] sm:$0xff]
        %v2196 = vld [vmem:[#allocation10 + $0x460] sm:$0xff]
        %v2197 = vld [vmem:[#allocation10 + $0x468] sm:$0xff]
        %v2198 = vld [vmem:[#allocation10 + $0x470] sm:$0xff]
        %v2199 = vld [vmem:[#allocation10 + $0x478] sm:$0xff]
        %v2200 = vld [vmem:[#allocation10 + $0x480] sm:$0xff]
        %v2201 = vld [vmem:[#allocation10 + $0x488] sm:$0xff]
        %v2202 = vld [vmem:[#allocation10 + $0x490] sm:$0xff]
        %v2203 = vld [vmem:[#allocation10 + $0x498] sm:$0xff]
        %v2204 = vld [vmem:[#allocation10 + $0x4a0] sm:$0xff]
        %v2205 = vld [vmem:[#allocation10 + $0x4a8] sm:$0xff]
        %v2206 = vld [vmem:[#allocation10 + $0x4b0] sm:$0xff]
        %v2207 = vld [vmem:[#allocation10 + $0x4b8] sm:$0xff]
        %v2208 = vld [vmem:[#allocation10 + $0x4c0] sm:$0xff]
        %v2209 = vld [vmem:[#allocation10 + $0x4c8] sm:$0xff]
        %v2210 = vld [vmem:[#allocation10 + $0x4d0] sm:$0xff]
        %v2211 = vld [vmem:[#allocation10 + $0x4d8] sm:$0xff]
        %v2212 = vld [vmem:[#allocation10 + $0x4e0] sm:$0xff]
        %v2213 = vld [vmem:[#allocation10 + $0x4e8] sm:$0xff]
        %v2214 = vld [vmem:[#allocation10 + $0x4f0] sm:$0xff]
        %v2215 = vld [vmem:[#allocation10 + $0x4f8] sm:$0xff]
        %v2216 = vld [vmem:[#allocation10 + $0x500] sm:$0xff]
        %v2217 = vld [vmem:[#allocation10 + $0x508] sm:$0xff]
        %v2218 = vld [vmem:[#allocation10 + $0x510] sm:$0xff]
        %v2219 = vld [vmem:[#allocation10 + $0x518] sm:$0xff]
        %v2220 = vld [vmem:[#allocation10 + $0x520] sm:$0xff]
        %v2221 = vld [vmem:[#allocation10 + $0x528] sm:$0xff]
        %v2222 = vld [vmem:[#allocation10 + $0x530] sm:$0xff]
        %v2223 = vld [vmem:[#allocation10 + $0x538] sm:$0xff]
        %v2224 = vld [vmem:[#allocation10 + $0x540] sm:$0xff]
        %v2225 = vld [vmem:[#allocation10 + $0x548] sm:$0xff]
        %v2226 = vld [vmem:[#allocation10 + $0x550] sm:$0xff]
        %v2227 = vld [vmem:[#allocation10 + $0x558] sm:$0xff]
        %v2228 = vld [vmem:[#allocation10 + $0x560] sm:$0xff]
        %v2229 = vld [vmem:[#allocation10 + $0x568] sm:$0xff]
        %v2230 = vld [vmem:[#allocation10 + $0x570] sm:$0xff]
        %v2231 = vld [vmem:[#allocation10 + $0x578] sm:$0xff]
        %v2232 = vld [vmem:[#allocation10 + $0x580] sm:$0xff]
        %v2233 = vld [vmem:[#allocation10 + $0x588] sm:$0xff]
        %v2234 = vld [vmem:[#allocation10 + $0x590] sm:$0xff]
        %v2235 = vld [vmem:[#allocation10 + $0x598] sm:$0xff]
        %v2236 = vld [vmem:[#allocation10 + $0x5a0] sm:$0xff]
        %v2237 = vld [vmem:[#allocation10 + $0x5a8] sm:$0xff]
        %v2238 = vld [vmem:[#allocation10 + $0x5b0] sm:$0xff]
        %v2239 = vld [vmem:[#allocation10 + $0x5b8] sm:$0xff]
        %v2240 = vld [vmem:[#allocation10 + $0x5c0] sm:$0xff]
        %v2241 = vld [vmem:[#allocation10 + $0x5c8] sm:$0xff]
        %v2242 = vld [vmem:[#allocation10 + $0x5d0] sm:$0xff]
        %v2243 = vld [vmem:[#allocation10 + $0x5d8] sm:$0xff]
        %v2244 = vld [vmem:[#allocation10 + $0x5e0] sm:$0xff]
        %v2245 = vld [vmem:[#allocation10 + $0x5e8] sm:$0xff]
        %v2246 = vld [vmem:[#allocation10 + $0x5f0] sm:$0xff]
        %v2247 = vld [vmem:[#allocation10 + $0x5f8] sm:$0xff]
        %v2440 = vunpack.c.l.b16 %v2056
        %v2441 = vunpack.c.h.b16 %v2056
        %v2442 = vunpack.c.l.b16 %v2057
        %v2443 = vunpack.c.h.b16 %v2057
        %v2444 = vunpack.c.l.b16 %v2058
        %v2445 = vunpack.c.h.b16 %v2058
        %v2446 = vunpack.c.l.b16 %v2059
        %v2447 = vunpack.c.h.b16 %v2059
        %v2448 = vunpack.c.l.b16 %v2060
        %v2449 = vunpack.c.h.b16 %v2060
        %v2450 = vunpack.c.l.b16 %v2061
        %v2451 = vunpack.c.h.b16 %v2061
        %v2452 = vunpack.c.l.b16 %v2062
        %v2453 = vunpack.c.h.b16 %v2062
        %v2454 = vunpack.c.l.b16 %v2063
        %v2455 = vunpack.c.h.b16 %v2063
        %v2456 = vunpack.c.l.b16 %v2064
        %v2457 = vunpack.c.h.b16 %v2064
        %v2458 = vunpack.c.l.b16 %v2065
        %v2459 = vunpack.c.h.b16 %v2065
        %v2460 = vunpack.c.l.b16 %v2066
        %v2461 = vunpack.c.h.b16 %v2066
        %v2462 = vunpack.c.l.b16 %v2067
        %v2463 = vunpack.c.h.b16 %v2067
        %v2464 = vunpack.c.l.b16 %v2068
        %v2465 = vunpack.c.h.b16 %v2068
        %v2466 = vunpack.c.l.b16 %v2069
        %v2467 = vunpack.c.h.b16 %v2069
        %v2468 = vunpack.c.l.b16 %v2070
        %v2469 = vunpack.c.h.b16 %v2070
        %v2470 = vunpack.c.l.b16 %v2071
        %v2471 = vunpack.c.h.b16 %v2071
        %v2472 = vunpack.c.l.b16 %v2072
        %v2473 = vunpack.c.h.b16 %v2072
        %v2474 = vunpack.c.l.b16 %v2073
        %v2475 = vunpack.c.h.b16 %v2073
        %v2476 = vunpack.c.l.b16 %v2074
        %v2477 = vunpack.c.h.b16 %v2074
        %v2478 = vunpack.c.l.b16 %v2075
        %v2479 = vunpack.c.h.b16 %v2075
        %v2480 = vunpack.c.l.b16 %v2076
        %v2481 = vunpack.c.h.b16 %v2076
        %v2482 = vunpack.c.l.b16 %v2077
        %v2483 = vunpack.c.h.b16 %v2077
        %v2484 = vunpack.c.l.b16 %v2078
        %v2485 = vunpack.c.h.b16 %v2078
        %v2486 = vunpack.c.l.b16 %v2079
        %v2487 = vunpack.c.h.b16 %v2079
        %v2488 = vunpack.c.l.b16 %v2080
        %v2489 = vunpack.c.h.b16 %v2080
        %v2490 = vunpack.c.l.b16 %v2081
        %v2491 = vunpack.c.h.b16 %v2081
        %v2492 = vunpack.c.l.b16 %v2082
        %v2493 = vunpack.c.h.b16 %v2082
        %v2494 = vunpack.c.l.b16 %v2083
        %v2495 = vunpack.c.h.b16 %v2083
        %v2496 = vunpack.c.l.b16 %v2084
        %v2497 = vunpack.c.h.b16 %v2084
        %v2498 = vunpack.c.l.b16 %v2085
        %v2499 = vunpack.c.h.b16 %v2085
        %v2500 = vunpack.c.l.b16 %v2086
        %v2501 = vunpack.c.h.b16 %v2086
        %v2502 = vunpack.c.l.b16 %v2087
        %v2503 = vunpack.c.h.b16 %v2087
        %v2504 = vunpack.c.l.b16 %v2088
        %v2505 = vunpack.c.h.b16 %v2088
        %v2506 = vunpack.c.l.b16 %v2089
        %v2507 = vunpack.c.h.b16 %v2089
        %v2508 = vunpack.c.l.b16 %v2090
        %v2509 = vunpack.c.h.b16 %v2090
        %v2510 = vunpack.c.l.b16 %v2091
        %v2511 = vunpack.c.h.b16 %v2091
        %v2512 = vunpack.c.l.b16 %v2092
        %v2513 = vunpack.c.h.b16 %v2092
        %v2514 = vunpack.c.l.b16 %v2093
        %v2515 = vunpack.c.h.b16 %v2093
        %v2516 = vunpack.c.l.b16 %v2094
        %v2517 = vunpack.c.h.b16 %v2094
        %v2518 = vunpack.c.l.b16 %v2095
        %v2519 = vunpack.c.h.b16 %v2095
        %v2520 = vunpack.c.l.b16 %v2096
        %v2521 = vunpack.c.h.b16 %v2096
        %v2522 = vunpack.c.l.b16 %v2097
        %v2523 = vunpack.c.h.b16 %v2097
        %v2524 = vunpack.c.l.b16 %v2098
        %v2525 = vunpack.c.h.b16 %v2098
        %v2526 = vunpack.c.l.b16 %v2099
        %v2527 = vunpack.c.h.b16 %v2099
        %v2528 = vunpack.c.l.b16 %v2100
        %v2529 = vunpack.c.h.b16 %v2100
        %v2530 = vunpack.c.l.b16 %v2101
        %v2531 = vunpack.c.h.b16 %v2101
        %v2532 = vunpack.c.l.b16 %v2102
        %v2533 = vunpack.c.h.b16 %v2102
        %v2534 = vunpack.c.l.b16 %v2103
        %v2535 = vunpack.c.h.b16 %v2103
        %v2536 = vunpack.c.l.b16 %v2104
        %v2537 = vunpack.c.h.b16 %v2104
        %v2538 = vunpack.c.l.b16 %v2105
        %v2539 = vunpack.c.h.b16 %v2105
        %v2540 = vunpack.c.l.b16 %v2106
        %v2541 = vunpack.c.h.b16 %v2106
        %v2542 = vunpack.c.l.b16 %v2107
        %v2543 = vunpack.c.h.b16 %v2107
        %v2544 = vunpack.c.l.b16 %v2108
        %v2545 = vunpack.c.h.b16 %v2108
        %v2546 = vunpack.c.l.b16 %v2109
        %v2547 = vunpack.c.h.b16 %v2109
        %v2548 = vunpack.c.l.b16 %v2110
        %v2549 = vunpack.c.h.b16 %v2110
        %v2550 = vunpack.c.l.b16 %v2111
        %v2551 = vunpack.c.h.b16 %v2111
        %v2552 = vunpack.c.l.b16 %v2112
        %v2553 = vunpack.c.h.b16 %v2112
        %v2554 = vunpack.c.l.b16 %v2113
        %v2555 = vunpack.c.h.b16 %v2113
        %v2556 = vunpack.c.l.b16 %v2114
        %v2557 = vunpack.c.h.b16 %v2114
        %v2558 = vunpack.c.l.b16 %v2115
        %v2559 = vunpack.c.h.b16 %v2115
        %v2560 = vunpack.c.l.b16 %v2116
        %v2561 = vunpack.c.h.b16 %v2116
        %v2562 = vunpack.c.l.b16 %v2117
        %v2563 = vunpack.c.h.b16 %v2117
        %v2564 = vunpack.c.l.b16 %v2118
        %v2565 = vunpack.c.h.b16 %v2118
        %v2566 = vunpack.c.l.b16 %v2119
        %v2567 = vunpack.c.h.b16 %v2119
        %v2568 = vunpack.c.l.b16 %v2120
        %v2569 = vunpack.c.h.b16 %v2120
        %v2570 = vunpack.c.l.b16 %v2121
        %v2571 = vunpack.c.h.b16 %v2121
        %v2572 = vunpack.c.l.b16 %v2122
        %v2573 = vunpack.c.h.b16 %v2122
        %v2574 = vunpack.c.l.b16 %v2123
        %v2575 = vunpack.c.h.b16 %v2123
        %v2576 = vunpack.c.l.b16 %v2124
        %v2577 = vunpack.c.h.b16 %v2124
        %v2578 = vunpack.c.l.b16 %v2125
        %v2579 = vunpack.c.h.b16 %v2125
        %v2580 = vunpack.c.l.b16 %v2126
        %v2581 = vunpack.c.h.b16 %v2126
        %v2582 = vunpack.c.l.b16 %v2127
        %v2583 = vunpack.c.h.b16 %v2127
        %v2584 = vunpack.c.l.b16 %v2128
        %v2585 = vunpack.c.h.b16 %v2128
        %v2586 = vunpack.c.l.b16 %v2129
        %v2587 = vunpack.c.h.b16 %v2129
        %v2588 = vunpack.c.l.b16 %v2130
        %v2589 = vunpack.c.h.b16 %v2130
        %v2590 = vunpack.c.l.b16 %v2131
        %v2591 = vunpack.c.h.b16 %v2131
        %v2592 = vunpack.c.l.b16 %v2132
        %v2593 = vunpack.c.h.b16 %v2132
        %v2594 = vunpack.c.l.b16 %v2133
        %v2595 = vunpack.c.h.b16 %v2133
        %v2596 = vunpack.c.l.b16 %v2134
        %v2597 = vunpack.c.h.b16 %v2134
        %v2598 = vunpack.c.l.b16 %v2135
        %v2599 = vunpack.c.h.b16 %v2135
        %v2600 = vunpack.c.l.b16 %v2136
        %v2601 = vunpack.c.h.b16 %v2136
        %v2602 = vunpack.c.l.b16 %v2137
        %v2603 = vunpack.c.h.b16 %v2137
        %v2604 = vunpack.c.l.b16 %v2138
        %v2605 = vunpack.c.h.b16 %v2138
        %v2606 = vunpack.c.l.b16 %v2139
        %v2607 = vunpack.c.h.b16 %v2139
        %v2608 = vunpack.c.l.b16 %v2140
        %v2609 = vunpack.c.h.b16 %v2140
        %v2610 = vunpack.c.l.b16 %v2141
        %v2611 = vunpack.c.h.b16 %v2141
        %v2612 = vunpack.c.l.b16 %v2142
        %v2613 = vunpack.c.h.b16 %v2142
        %v2614 = vunpack.c.l.b16 %v2143
        %v2615 = vunpack.c.h.b16 %v2143
        %v2616 = vunpack.c.l.b16 %v2144
        %v2617 = vunpack.c.h.b16 %v2144
        %v2618 = vunpack.c.l.b16 %v2145
        %v2619 = vunpack.c.h.b16 %v2145
        %v2620 = vunpack.c.l.b16 %v2146
        %v2621 = vunpack.c.h.b16 %v2146
        %v2622 = vunpack.c.l.b16 %v2147
        %v2623 = vunpack.c.h.b16 %v2147
        %v2624 = vunpack.c.l.b16 %v2148
        %v2625 = vunpack.c.h.b16 %v2148
        %v2626 = vunpack.c.l.b16 %v2149
        %v2627 = vunpack.c.h.b16 %v2149
        %v2628 = vunpack.c.l.b16 %v2150
        %v2629 = vunpack.c.h.b16 %v2150
        %v2630 = vunpack.c.l.b16 %v2151
        %v2631 = vunpack.c.h.b16 %v2151
        %v2632 = vunpack.c.l.b16 %v2152
        %v2633 = vunpack.c.h.b16 %v2152
        %v2634 = vunpack.c.l.b16 %v2153
        %v2635 = vunpack.c.h.b16 %v2153
        %v2636 = vunpack.c.l.b16 %v2154
        %v2637 = vunpack.c.h.b16 %v2154
        %v2638 = vunpack.c.l.b16 %v2155
        %v2639 = vunpack.c.h.b16 %v2155
        %v2640 = vunpack.c.l.b16 %v2156
        %v2641 = vunpack.c.h.b16 %v2156
        %v2642 = vunpack.c.l.b16 %v2157
        %v2643 = vunpack.c.h.b16 %v2157
        %v2644 = vunpack.c.l.b16 %v2158
        %v2645 = vunpack.c.h.b16 %v2158
        %v2646 = vunpack.c.l.b16 %v2159
        %v2647 = vunpack.c.h.b16 %v2159
        %v2648 = vunpack.c.l.b16 %v2160
        %v2649 = vunpack.c.h.b16 %v2160
        %v2650 = vunpack.c.l.b16 %v2161
        %v2651 = vunpack.c.h.b16 %v2161
        %v2652 = vunpack.c.l.b16 %v2162
        %v2653 = vunpack.c.h.b16 %v2162
        %v2654 = vunpack.c.l.b16 %v2163
        %v2655 = vunpack.c.h.b16 %v2163
        %v2656 = vunpack.c.l.b16 %v2164
        %v2657 = vunpack.c.h.b16 %v2164
        %v2658 = vunpack.c.l.b16 %v2165
        %v2659 = vunpack.c.h.b16 %v2165
        %v2660 = vunpack.c.l.b16 %v2166
        %v2661 = vunpack.c.h.b16 %v2166
        %v2662 = vunpack.c.l.b16 %v2167
        %v2663 = vunpack.c.h.b16 %v2167
        %v2664 = vunpack.c.l.b16 %v2168
        %v2665 = vunpack.c.h.b16 %v2168
        %v2666 = vunpack.c.l.b16 %v2169
        %v2667 = vunpack.c.h.b16 %v2169
        %v2668 = vunpack.c.l.b16 %v2170
        %v2669 = vunpack.c.h.b16 %v2170
        %v2670 = vunpack.c.l.b16 %v2171
        %v2671 = vunpack.c.h.b16 %v2171
        %v2672 = vunpack.c.l.b16 %v2172
        %v2673 = vunpack.c.h.b16 %v2172
        %v2674 = vunpack.c.l.b16 %v2173
        %v2675 = vunpack.c.h.b16 %v2173
        %v2676 = vunpack.c.l.b16 %v2174
        %v2677 = vunpack.c.h.b16 %v2174
        %v2678 = vunpack.c.l.b16 %v2175
        %v2679 = vunpack.c.h.b16 %v2175
        %v2680 = vunpack.c.l.b16 %v2176
        %v2681 = vunpack.c.h.b16 %v2176
        %v2682 = vunpack.c.l.b16 %v2177
        %v2683 = vunpack.c.h.b16 %v2177
        %v2684 = vunpack.c.l.b16 %v2178
        %v2685 = vunpack.c.h.b16 %v2178
        %v2686 = vunpack.c.l.b16 %v2179
        %v2687 = vunpack.c.h.b16 %v2179
        %v2688 = vunpack.c.l.b16 %v2180
        %v2689 = vunpack.c.h.b16 %v2180
        %v2690 = vunpack.c.l.b16 %v2181
        %v2691 = vunpack.c.h.b16 %v2181
        %v2692 = vunpack.c.l.b16 %v2182
        %v2693 = vunpack.c.h.b16 %v2182
        %v2694 = vunpack.c.l.b16 %v2183
        %v2695 = vunpack.c.h.b16 %v2183
        %v2696 = vunpack.c.l.b16 %v2184
        %v2697 = vunpack.c.h.b16 %v2184
        %v2698 = vunpack.c.l.b16 %v2185
        %v2699 = vunpack.c.h.b16 %v2185
        %v2700 = vunpack.c.l.b16 %v2186
        %v2701 = vunpack.c.h.b16 %v2186
        %v2702 = vunpack.c.l.b16 %v2187
        %v2703 = vunpack.c.h.b16 %v2187
        %v2704 = vunpack.c.l.b16 %v2188
        %v2705 = vunpack.c.h.b16 %v2188
        %v2706 = vunpack.c.l.b16 %v2189
        %v2707 = vunpack.c.h.b16 %v2189
        %v2708 = vunpack.c.l.b16 %v2190
        %v2709 = vunpack.c.h.b16 %v2190
        %v2710 = vunpack.c.l.b16 %v2191
        %v2711 = vunpack.c.h.b16 %v2191
        %v2712 = vunpack.c.l.b16 %v2192
        %v2713 = vunpack.c.h.b16 %v2192
        %v2714 = vunpack.c.l.b16 %v2193
        %v2715 = vunpack.c.h.b16 %v2193
        %v2716 = vunpack.c.l.b16 %v2194
        %v2717 = vunpack.c.h.b16 %v2194
        %v2718 = vunpack.c.l.b16 %v2195
        %v2719 = vunpack.c.h.b16 %v2195
        %v2720 = vunpack.c.l.b16 %v2196
        %v2721 = vunpack.c.h.b16 %v2196
        %v2722 = vunpack.c.l.b16 %v2197
        %v2723 = vunpack.c.h.b16 %v2197
        %v2724 = vunpack.c.l.b16 %v2198
        %v2725 = vunpack.c.h.b16 %v2198
        %v2726 = vunpack.c.l.b16 %v2199
        %v2727 = vunpack.c.h.b16 %v2199
        %v2728 = vunpack.c.l.b16 %v2200
        %v2729 = vunpack.c.h.b16 %v2200
        %v2730 = vunpack.c.l.b16 %v2201
        %v2731 = vunpack.c.h.b16 %v2201
        %v2732 = vunpack.c.l.b16 %v2202
        %v2733 = vunpack.c.h.b16 %v2202
        %v2734 = vunpack.c.l.b16 %v2203
        %v2735 = vunpack.c.h.b16 %v2203
        %v2736 = vunpack.c.l.b16 %v2204
        %v2737 = vunpack.c.h.b16 %v2204
        %v2738 = vunpack.c.l.b16 %v2205
        %v2739 = vunpack.c.h.b16 %v2205
        %v2740 = vunpack.c.l.b16 %v2206
        %v2741 = vunpack.c.h.b16 %v2206
        %v2742 = vunpack.c.l.b16 %v2207
        %v2743 = vunpack.c.h.b16 %v2207
        %v2744 = vunpack.c.l.b16 %v2208
        %v2745 = vunpack.c.h.b16 %v2208
        %v2746 = vunpack.c.l.b16 %v2209
        %v2747 = vunpack.c.h.b16 %v2209
        %v2748 = vunpack.c.l.b16 %v2210
        %v2749 = vunpack.c.h.b16 %v2210
        %v2750 = vunpack.c.l.b16 %v2211
        %v2751 = vunpack.c.h.b16 %v2211
        %v2752 = vunpack.c.l.b16 %v2212
        %v2753 = vunpack.c.h.b16 %v2212
        %v2754 = vunpack.c.l.b16 %v2213
        %v2755 = vunpack.c.h.b16 %v2213
        %v2756 = vunpack.c.l.b16 %v2214
        %v2757 = vunpack.c.h.b16 %v2214
        %v2758 = vunpack.c.l.b16 %v2215
        %v2759 = vunpack.c.h.b16 %v2215
        %v2760 = vunpack.c.l.b16 %v2216
        %v2761 = vunpack.c.h.b16 %v2216
        %v2762 = vunpack.c.l.b16 %v2217
        %v2763 = vunpack.c.h.b16 %v2217
        %v2764 = vunpack.c.l.b16 %v2218
        %v2765 = vunpack.c.h.b16 %v2218
        %v2766 = vunpack.c.l.b16 %v2219
        %v2767 = vunpack.c.h.b16 %v2219
        %v2768 = vunpack.c.l.b16 %v2220
        %v2769 = vunpack.c.h.b16 %v2220
        %v2770 = vunpack.c.l.b16 %v2221
        %v2771 = vunpack.c.h.b16 %v2221
        %v2772 = vunpack.c.l.b16 %v2222
        %v2773 = vunpack.c.h.b16 %v2222
        %v2774 = vunpack.c.l.b16 %v2223
        %v2775 = vunpack.c.h.b16 %v2223
        %v2776 = vunpack.c.l.b16 %v2224
        %v2777 = vunpack.c.h.b16 %v2224
        %v2778 = vunpack.c.l.b16 %v2225
        %v2779 = vunpack.c.h.b16 %v2225
        %v2780 = vunpack.c.l.b16 %v2226
        %v2781 = vunpack.c.h.b16 %v2226
        %v2782 = vunpack.c.l.b16 %v2227
        %v2783 = vunpack.c.h.b16 %v2227
        %v2784 = vunpack.c.l.b16 %v2228
        %v2785 = vunpack.c.h.b16 %v2228
        %v2786 = vunpack.c.l.b16 %v2229
        %v2787 = vunpack.c.h.b16 %v2229
        %v2788 = vunpack.c.l.b16 %v2230
        %v2789 = vunpack.c.h.b16 %v2230
        %v2790 = vunpack.c.l.b16 %v2231
        %v2791 = vunpack.c.h.b16 %v2231
        %v2792 = vunpack.c.l.b16 %v2232
        %v2793 = vunpack.c.h.b16 %v2232
        %v2794 = vunpack.c.l.b16 %v2233
        %v2795 = vunpack.c.h.b16 %v2233
        %v2796 = vunpack.c.l.b16 %v2234
        %v2797 = vunpack.c.h.b16 %v2234
        %v2798 = vunpack.c.l.b16 %v2235
        %v2799 = vunpack.c.h.b16 %v2235
        %v2800 = vunpack.c.l.b16 %v2236
        %v2801 = vunpack.c.h.b16 %v2236
        %v2802 = vunpack.c.l.b16 %v2237
        %v2803 = vunpack.c.h.b16 %v2237
        %v2804 = vunpack.c.l.b16 %v2238
        %v2805 = vunpack.c.h.b16 %v2238
        %v2806 = vunpack.c.l.b16 %v2239
        %v2807 = vunpack.c.h.b16 %v2239
        %v2808 = vunpack.c.l.b16 %v2240
        %v2809 = vunpack.c.h.b16 %v2240
        %v2810 = vunpack.c.l.b16 %v2241
        %v2811 = vunpack.c.h.b16 %v2241
        %v2812 = vunpack.c.l.b16 %v2242
        %v2813 = vunpack.c.h.b16 %v2242
        %v2814 = vunpack.c.l.b16 %v2243
        %v2815 = vunpack.c.h.b16 %v2243
        %v2816 = vunpack.c.l.b16 %v2244
        %v2817 = vunpack.c.h.b16 %v2244
        %v2818 = vunpack.c.l.b16 %v2245
        %v2819 = vunpack.c.h.b16 %v2245
        %v2820 = vunpack.c.l.b16 %v2246
        %v2821 = vunpack.c.h.b16 %v2246
        %v2822 = vunpack.c.l.b16 %v2247
        %v2823 = vunpack.c.h.b16 %v2247
        %v2824 = vpack.c.b16 %v2448, %v2440
        %v2825 = vpack.c.b16 %v2449, %v2441
        %v2826 = vpack.c.b16 %v2450, %v2442
        %v2827 = vpack.c.b16 %v2451, %v2443
        %v2828 = vpack.c.b16 %v2452, %v2444
        %v2829 = vpack.c.b16 %v2453, %v2445
        %v2830 = vpack.c.b16 %v2454, %v2446
        %v2831 = vpack.c.b16 %v2455, %v2447
        %v2832 = vpack.c.b16 %v2464, %v2456
        %v2833 = vpack.c.b16 %v2465, %v2457
        %v2834 = vpack.c.b16 %v2466, %v2458
        %v2835 = vpack.c.b16 %v2467, %v2459
        %v2836 = vpack.c.b16 %v2468, %v2460
        %v2837 = vpack.c.b16 %v2469, %v2461
        %v2838 = vpack.c.b16 %v2470, %v2462
        %v2839 = vpack.c.b16 %v2471, %v2463
        %v2840 = vpack.c.b16 %v2480, %v2472
        %v2841 = vpack.c.b16 %v2481, %v2473
        %v2842 = vpack.c.b16 %v2482, %v2474
        %v2843 = vpack.c.b16 %v2483, %v2475
        %v2844 = vpack.c.b16 %v2484, %v2476
        %v2845 = vpack.c.b16 %v2485, %v2477
        %v2846 = vpack.c.b16 %v2486, %v2478
        %v2847 = vpack.c.b16 %v2487, %v2479
        %v2848 = vpack.c.b16 %v2496, %v2488
        %v2849 = vpack.c.b16 %v2497, %v2489
        %v2850 = vpack.c.b16 %v2498, %v2490
        %v2851 = vpack.c.b16 %v2499, %v2491
        %v2852 = vpack.c.b16 %v2500, %v2492
        %v2853 = vpack.c.b16 %v2501, %v2493
        %v2854 = vpack.c.b16 %v2502, %v2494
        %v2855 = vpack.c.b16 %v2503, %v2495
        %v2856 = vpack.c.b16 %v2512, %v2504
        %v2857 = vpack.c.b16 %v2513, %v2505
        %v2858 = vpack.c.b16 %v2514, %v2506
        %v2859 = vpack.c.b16 %v2515, %v2507
        %v2860 = vpack.c.b16 %v2516, %v2508
        %v2861 = vpack.c.b16 %v2517, %v2509
        %v2862 = vpack.c.b16 %v2518, %v2510
        %v2863 = vpack.c.b16 %v2519, %v2511
        %v2864 = vpack.c.b16 %v2528, %v2520
        %v2865 = vpack.c.b16 %v2529, %v2521
        %v2866 = vpack.c.b16 %v2530, %v2522
        %v2867 = vpack.c.b16 %v2531, %v2523
        %v2868 = vpack.c.b16 %v2532, %v2524
        %v2869 = vpack.c.b16 %v2533, %v2525
        %v2870 = vpack.c.b16 %v2534, %v2526
        %v2871 = vpack.c.b16 %v2535, %v2527
        %v2872 = vpack.c.b16 %v2544, %v2536
        %v2873 = vpack.c.b16 %v2545, %v2537
        %v2874 = vpack.c.b16 %v2546, %v2538
        %v2875 = vpack.c.b16 %v2547, %v2539
        %v2876 = vpack.c.b16 %v2548, %v2540
        %v2877 = vpack.c.b16 %v2549, %v2541
        %v2878 = vpack.c.b16 %v2550, %v2542
        %v2879 = vpack.c.b16 %v2551, %v2543
        %v2880 = vpack.c.b16 %v2560, %v2552
        %v2881 = vpack.c.b16 %v2561, %v2553
        %v2882 = vpack.c.b16 %v2562, %v2554
        %v2883 = vpack.c.b16 %v2563, %v2555
        %v2884 = vpack.c.b16 %v2564, %v2556
        %v2885 = vpack.c.b16 %v2565, %v2557
        %v2886 = vpack.c.b16 %v2566, %v2558
        %v2887 = vpack.c.b16 %v2567, %v2559
        %v2888 = vpack.c.b16 %v2576, %v2568
        %v2889 = vpack.c.b16 %v2577, %v2569
        %v2890 = vpack.c.b16 %v2578, %v2570
        %v2891 = vpack.c.b16 %v2579, %v2571
        %v2892 = vpack.c.b16 %v2580, %v2572
        %v2893 = vpack.c.b16 %v2581, %v2573
        %v2894 = vpack.c.b16 %v2582, %v2574
        %v2895 = vpack.c.b16 %v2583, %v2575
        %v2896 = vpack.c.b16 %v2592, %v2584
        %v2897 = vpack.c.b16 %v2593, %v2585
        %v2898 = vpack.c.b16 %v2594, %v2586
        %v2899 = vpack.c.b16 %v2595, %v2587
        %v2900 = vpack.c.b16 %v2596, %v2588
        %v2901 = vpack.c.b16 %v2597, %v2589
        %v2902 = vpack.c.b16 %v2598, %v2590
        %v2903 = vpack.c.b16 %v2599, %v2591
        %v2904 = vpack.c.b16 %v2608, %v2600
        %v2905 = vpack.c.b16 %v2609, %v2601
        %v2906 = vpack.c.b16 %v2610, %v2602
        %v2907 = vpack.c.b16 %v2611, %v2603
        %v2908 = vpack.c.b16 %v2612, %v2604
        %v2909 = vpack.c.b16 %v2613, %v2605
        %v2910 = vpack.c.b16 %v2614, %v2606
        %v2911 = vpack.c.b16 %v2615, %v2607
        %v2912 = vpack.c.b16 %v2624, %v2616
        %v2913 = vpack.c.b16 %v2625, %v2617
        %v2914 = vpack.c.b16 %v2626, %v2618
        %v2915 = vpack.c.b16 %v2627, %v2619
        %v2916 = vpack.c.b16 %v2628, %v2620
        %v2917 = vpack.c.b16 %v2629, %v2621
        %v2918 = vpack.c.b16 %v2630, %v2622
        %v2919 = vpack.c.b16 %v2631, %v2623
        %v2920 = vpack.c.b16 %v2640, %v2632
        %v2921 = vpack.c.b16 %v2641, %v2633
        %v2922 = vpack.c.b16 %v2642, %v2634
        %v2923 = vpack.c.b16 %v2643, %v2635
        %v2924 = vpack.c.b16 %v2644, %v2636
        %v2925 = vpack.c.b16 %v2645, %v2637
        %v2926 = vpack.c.b16 %v2646, %v2638
        %v2927 = vpack.c.b16 %v2647, %v2639
        %v2928 = vpack.c.b16 %v2656, %v2648
        %v2929 = vpack.c.b16 %v2657, %v2649
        %v2930 = vpack.c.b16 %v2658, %v2650
        %v2931 = vpack.c.b16 %v2659, %v2651
        %v2932 = vpack.c.b16 %v2660, %v2652
        %v2933 = vpack.c.b16 %v2661, %v2653
        %v2934 = vpack.c.b16 %v2662, %v2654
        %v2935 = vpack.c.b16 %v2663, %v2655
        %v2936 = vpack.c.b16 %v2672, %v2664
        %v2937 = vpack.c.b16 %v2673, %v2665
        %v2938 = vpack.c.b16 %v2674, %v2666
        %v2939 = vpack.c.b16 %v2675, %v2667
        %v2940 = vpack.c.b16 %v2676, %v2668
        %v2941 = vpack.c.b16 %v2677, %v2669
        %v2942 = vpack.c.b16 %v2678, %v2670
        %v2943 = vpack.c.b16 %v2679, %v2671
        %v2944 = vpack.c.b16 %v2688, %v2680
        %v2945 = vpack.c.b16 %v2689, %v2681
        %v2946 = vpack.c.b16 %v2690, %v2682
        %v2947 = vpack.c.b16 %v2691, %v2683
        %v2948 = vpack.c.b16 %v2692, %v2684
        %v2949 = vpack.c.b16 %v2693, %v2685
        %v2950 = vpack.c.b16 %v2694, %v2686
        %v2951 = vpack.c.b16 %v2695, %v2687
        %v2952 = vpack.c.b16 %v2704, %v2696
        %v2953 = vpack.c.b16 %v2705, %v2697
        %v2954 = vpack.c.b16 %v2706, %v2698
        %v2955 = vpack.c.b16 %v2707, %v2699
        %v2956 = vpack.c.b16 %v2708, %v2700
        %v2957 = vpack.c.b16 %v2709, %v2701
        %v2958 = vpack.c.b16 %v2710, %v2702
        %v2959 = vpack.c.b16 %v2711, %v2703
        %v2960 = vpack.c.b16 %v2720, %v2712
        %v2961 = vpack.c.b16 %v2721, %v2713
        %v2962 = vpack.c.b16 %v2722, %v2714
        %v2963 = vpack.c.b16 %v2723, %v2715
        %v2964 = vpack.c.b16 %v2724, %v2716
        %v2965 = vpack.c.b16 %v2725, %v2717
        %v2966 = vpack.c.b16 %v2726, %v2718
        %v2967 = vpack.c.b16 %v2727, %v2719
        %v2968 = vpack.c.b16 %v2736, %v2728
        %v2969 = vpack.c.b16 %v2737, %v2729
        %v2970 = vpack.c.b16 %v2738, %v2730
        %v2971 = vpack.c.b16 %v2739, %v2731
        %v2972 = vpack.c.b16 %v2740, %v2732
        %v2973 = vpack.c.b16 %v2741, %v2733
        %v2974 = vpack.c.b16 %v2742, %v2734
        %v2975 = vpack.c.b16 %v2743, %v2735
        %v2976 = vpack.c.b16 %v2752, %v2744
        %v2977 = vpack.c.b16 %v2753, %v2745
        %v2978 = vpack.c.b16 %v2754, %v2746
        %v2979 = vpack.c.b16 %v2755, %v2747
        %v2980 = vpack.c.b16 %v2756, %v2748
        %v2981 = vpack.c.b16 %v2757, %v2749
        %v2982 = vpack.c.b16 %v2758, %v2750
        %v2983 = vpack.c.b16 %v2759, %v2751
        %v2984 = vpack.c.b16 %v2768, %v2760
        %v2985 = vpack.c.b16 %v2769, %v2761
        %v2986 = vpack.c.b16 %v2770, %v2762
        %v2987 = vpack.c.b16 %v2771, %v2763
        %v2988 = vpack.c.b16 %v2772, %v2764
        %v2989 = vpack.c.b16 %v2773, %v2765
        %v2990 = vpack.c.b16 %v2774, %v2766
        %v2991 = vpack.c.b16 %v2775, %v2767
        %v2992 = vpack.c.b16 %v2784, %v2776
        %v2993 = vpack.c.b16 %v2785, %v2777
        %v2994 = vpack.c.b16 %v2786, %v2778
        %v2995 = vpack.c.b16 %v2787, %v2779
        %v2996 = vpack.c.b16 %v2788, %v2780
        %v2997 = vpack.c.b16 %v2789, %v2781
        %v2998 = vpack.c.b16 %v2790, %v2782
        %v2999 = vpack.c.b16 %v2791, %v2783
        %v3000 = vpack.c.b16 %v2800, %v2792
        %v3001 = vpack.c.b16 %v2801, %v2793
        %v3002 = vpack.c.b16 %v2802, %v2794
        %v3003 = vpack.c.b16 %v2803, %v2795
        %v3004 = vpack.c.b16 %v2804, %v2796
        %v3005 = vpack.c.b16 %v2805, %v2797
        %v3006 = vpack.c.b16 %v2806, %v2798
        %v3007 = vpack.c.b16 %v2807, %v2799
        %v3008 = vpack.c.b16 %v2816, %v2808
        %v3009 = vpack.c.b16 %v2817, %v2809
        %v3010 = vpack.c.b16 %v2818, %v2810
        %v3011 = vpack.c.b16 %v2819, %v2811
        %v3012 = vpack.c.b16 %v2820, %v2812
        %v3013 = vpack.c.b16 %v2821, %v2813
        %v3014 = vpack.c.b16 %v2822, %v2814
        %v3015 = vpack.c.b16 %v2823, %v2815
        %3208 = vmatprep.subr.bf16.mxu0 %v2825
        %3209 = vmatpush1.bf16.msra.mxu0 %v2824
        %3210 = vmatprep.subr.bf16.mxu0 %v2833
        %3211 = vmatpush1.bf16.msra.mxu0 %v2832
        %3212 = vmatprep.subr.bf16.mxu0 %v2841
        %3213 = vmatpush1.bf16.msra.mxu0 %v2840
        %3214 = vmatprep.subr.bf16.mxu0 %v2849
        %3215 = vmatpush1.bf16.msra.mxu0 %v2848
        %3216 = vmatprep.subr.bf16.mxu0 %v2857
        %3217 = vmatpush1.bf16.msra.mxu0 %v2856
        %3218 = vmatprep.subr.bf16.mxu0 %v2865
        %3219 = vmatpush1.bf16.msra.mxu0 %v2864
        %3220 = vmatprep.subr.bf16.mxu0 %v2873
        %3221 = vmatpush1.bf16.msra.mxu0 %v2872
        %3222 = vmatprep.subr.bf16.mxu0 %v2881
        %3223 = vmatpush1.bf16.msra.mxu0 %v2880
        %3224 = vmatprep.subr.bf16.mxu0 %v2889
        %3225 = vmatpush1.bf16.msra.mxu0 %v2888
        %3226 = vmatprep.subr.bf16.mxu0 %v2897
        %3227 = vmatpush1.bf16.msra.mxu0 %v2896
        %3228 = vmatprep.subr.bf16.mxu0 %v2905
        %3229 = vmatpush1.bf16.msra.mxu0 %v2904
        %3230 = vmatprep.subr.bf16.mxu0 %v2913
        %3231 = vmatpush1.bf16.msra.mxu0 %v2912
        %3232 = vmatprep.subr.bf16.mxu0 %v2921
        %3233 = vmatpush1.bf16.msra.mxu0 %v2920
        %3234 = vmatprep.subr.bf16.mxu0 %v2929
        %3235 = vmatpush1.bf16.msra.mxu0 %v2928
        %3236 = vmatprep.subr.bf16.mxu0 %v2937
        %3237 = vmatpush1.bf16.msra.mxu0 %v2936
        %3238 = vmatprep.subr.bf16.mxu0 %v2945
        %3239 = vmatpush1.bf16.msra.mxu0 %v2944
        %3240 = vmatprep.mubr.bf16.mxu0 %v1785
        %3241 = vmatmul.mubr.bf16.gmra.mrb[0].mxu0 %v1522
        %v3242 = vpop.f32.mrb[0].mxu0
        %v3243 = vadd.f32 0.0, %v3242
        %v3244 = vpop.f32.mrb[0].mxu0
        %v3245 = vadd.f32 0.0, %v3244
        %v3246 = vpop.f32.mrb[0].mxu0
        %v3247 = vadd.f32 0.0, %v3246
        %v3248 = vpop.f32.mrb[0].mxu0
        %v3249 = vadd.f32 0.0, %v3248
        %3250 = vmatprep.mubr.bf16.mxu0 %v1786
        %3251 = vmatmul.mubr.bf16.gmra.mrb[0].mxu0 %v1523
        %v3252 = vpop.f32.mrb[0].mxu0
        %v3253 = vadd.f32 0.0, %v3252
        %v3254 = vpop.f32.mrb[0].mxu0
        %v3255 = vadd.f32 0.0, %v3254
        %v3256 = vpop.f32.mrb[0].mxu0
        %v3257 = vadd.f32 0.0, %v3256
        %v3258 = vpop.f32.mrb[0].mxu0
        %v3259 = vadd.f32 0.0, %v3258
        %3260 = vmatprep.mubr.bf16.mxu0 %v1787
        %3261 = vmatmul.mubr.bf16.gmra.mrb[0].mxu0 %v1524
        %v3262 = vpop.f32.mrb[0].mxu0
        %v3263 = vadd.f32 0.0, %v3262
        %v3264 = vpop.f32.mrb[0].mxu0
        %v3265 = vadd.f32 0.0, %v3264
        %v3266 = vpop.f32.mrb[0].mxu0
        %v3267 = vadd.f32 0.0, %v3266
        %v3268 = vpop.f32.mrb[0].mxu0
        %v3269 = vadd.f32 0.0, %v3268
        %3270 = vmatprep.mubr.bf16.mxu0 %v1788
        %3271 = vmatmul.mubr.bf16.gmra.mrb[0].mxu0 %v1525
        %v3272 = vpop.f32.mrb[0].mxu0
        %v3273 = vadd.f32 0.0, %v3272
        %v3274 = vpop.f32.mrb[0].mxu0
        %v3275 = vadd.f32 0.0, %v3274
        %v3276 = vpop.f32.mrb[0].mxu0
        %v3277 = vadd.f32 0.0, %v3276
        %v3278 = vpop.f32.mrb[0].mxu0
        %v3279 = vadd.f32 0.0, %v3278
        %3280 = vmatprep.mubr.bf16.mxu0 %v1789
        %3281 = vmatmul.mubr.bf16.gmra.mrb[0].mxu0 %v1526
        %v3282 = vpop.f32.mrb[0].mxu0
        %v3283 = vadd.f32 0.0, %v3282
        %v3284 = vpop.f32.mrb[0].mxu0
        %v3285 = vadd.f32 0.0, %v3284
        %v3286 = vpop.f32.mrb[0].mxu0
        %v3287 = vadd.f32 0.0, %v3286
        %v3288 = vpop.f32.mrb[0].mxu0
        %v3289 = vadd.f32 0.0, %v3288
        %3290 = vmatprep.mubr.bf16.mxu0 %v1790
        %3291 = vmatmul.mubr.bf16.gmra.mrb[0].mxu0 %v1527
        %v3292 = vpop.f32.mrb[0].mxu0
        %v3293 = vadd.f32 0.0, %v3292
        %v3294 = vpop.f32.mrb[0].mxu0
        %v3295 = vadd.f32 0.0, %v3294
        %v3296 = vpop.f32.mrb[0].mxu0
        %v3297 = vadd.f32 0.0, %v3296
        %v3298 = vpop.f32.mrb[0].mxu0
        %v3299 = vadd.f32 0.0, %v3298
        %3300 = vmatprep.mubr.bf16.mxu0 %v1791
        %3301 = vmatmul.mubr.bf16.gmra.mrb[0].mxu0 %v1528
        %v3302 = vpop.f32.mrb[0].mxu0
        %v3303 = vadd.f32 0.0, %v3302
        %v3304 = vpop.f32.mrb[0].mxu0
        %v3305 = vadd.f32 0.0, %v3304
        %v3306 = vpop.f32.mrb[0].mxu0
        %v3307 = vadd.f32 0.0, %v3306
        %v3308 = vpop.f32.mrb[0].mxu0
        %v3309 = vadd.f32 0.0, %v3308
        %3310 = vmatprep.mubr.bf16.mxu0 %v1792
        %3311 = vmatmul.mubr.bf16.gmra.mrb[0].mxu0 %v1529
        %v3312 = vpop.f32.mrb[0].mxu0
        %v3313 = vadd.f32 0.0, %v3312
        %v3314 = vpop.f32.mrb[0].mxu0
        %v3315 = vadd.f32 0.0, %v3314
        %v3316 = vpop.f32.mrb[0].mxu0
        %v3317 = vadd.f32 0.0, %v3316
        %v3318 = vpop.f32.mrb[0].mxu0
        %v3319 = vadd.f32 0.0, %v3318
        %3320 = vdwg.mxu0
        %3321 = vmatprep.subr.bf16.mxu0 %v2953
        %3322 = vmatpush1.bf16.msra.mxu0 %v2952
        %3323 = vmatprep.subr.bf16.mxu0 %v2961
        %3324 = vmatpush1.bf16.msra.mxu0 %v2960
        %3325 = vmatprep.subr.bf16.mxu0 %v2969
        %3326 = vmatpush1.bf16.msra.mxu0 %v2968
        %3327 = vmatprep.subr.bf16.mxu0 %v2977
        %3328 = vmatpush1.bf16.msra.mxu0 %v2976
        %3329 = vmatprep.subr.bf16.mxu0 %v2985
        %3330 = vmatpush1.bf16.msra.mxu0 %v2984
        %3331 = vmatprep.subr.bf16.mxu0 %v2993
        %3332 = vmatpush1.bf16.msra.mxu0 %v2992
        %3333 = vmatprep.subr.bf16.mxu0 %v3001
        %3334 = vmatpush1.bf16.msra.mxu0 %v3000
        %3335 = vmatprep.subr.bf16.mxu0 %v3009
        %3336 = vmatpush1.bf16.msra.mxu0 %v3008
        %3337 = vmatprep.subr.bf16.mxu0 0
        %3338 = vmatpush1.bf16.msra.mxu0 0
        %3339 = vmatprep.subr.bf16.mxu0 0
        %3340 = vmatpush1.bf16.msra.mxu0 0
        %3341 = vmatprep.subr.bf16.mxu0 0
        %3342 = vmatpush1.bf16.msra.mxu0 0
        %3343 = vmatprep.subr.bf16.mxu0 0
        %3344 = vmatpush1.bf16.msra.mxu0 0
        %3345 = vmatprep.subr.bf16.mxu0 0
        %3346 = vmatpush1.bf16.msra.mxu0 0
        %3347 = vmatprep.subr.bf16.mxu0 0
        %3348 = vmatpush1.bf16.msra.mxu0 0
        %3349 = vmatprep.subr.bf16.mxu0 0
        %3350 = vmatpush1.bf16.msra.mxu0 0
        %3351 = vmatprep.subr.bf16.mxu0 0
        %3352 = vmatpush1.bf16.msra.mxu0 0
        %3353 = vmatprep.mubr.bf16.mxu0 0
        %3354 = vmatmul.mubr.bf16.gmra.mrb[0].mxu0 %v2048
        %v3355 = vpop.f32.mrb[0].mxu0
        %v3356 = vadd.f32 %v3243, %v3355
        %v3357 = vpop.f32.mrb[0].mxu0
        %v3358 = vadd.f32 %v3245, %v3357
        %v3359 = vpop.f32.mrb[0].mxu0
        %v3360 = vadd.f32 %v3247, %v3359
        %v3361 = vpop.f32.mrb[0].mxu0
        %v3362 = vadd.f32 %v3249, %v3361
        %3363 = vmatprep.mubr.bf16.mxu0 0
        %3364 = vmatmul.mubr.bf16.gmra.mrb[0].mxu0 %v2049
        %v3365 = vpop.f32.mrb[0].mxu0
        %v3366 = vadd.f32 %v3253, %v3365
        %v3367 = vpop.f32.mrb[0].mxu0
        %v3368 = vadd.f32 %v3255, %v3367
        %v3369 = vpop.f32.mrb[0].mxu0
        %v3370 = vadd.f32 %v3257, %v3369
        %v3371 = vpop.f32.mrb[0].mxu0
        %v3372 = vadd.f32 %v3259, %v3371
        %3373 = vmatprep.mubr.bf16.mxu0 0
        %3374 = vmatmul.mubr.bf16.gmra.mrb[0].mxu0 %v2050
        %v3375 = vpop.f32.mrb[0].mxu0
        %v3376 = vadd.f32 %v3263, %v3375
        %v3377 = vpop.f32.mrb[0].mxu0
        %v3378 = vadd.f32 %v3265, %v3377
        %v3379 = vpop.f32.mrb[0].mxu0
        %v3380 = vadd.f32 %v3267, %v3379
        %v3381 = vpop.f32.mrb[0].mxu0
        %v3382 = vadd.f32 %v3269, %v3381
        %3383 = vmatprep.mubr.bf16.mxu0 0
        %3384 = vmatmul.mubr.bf16.gmra.mrb[0].mxu0 %v2051
        %v3385 = vpop.f32.mrb[0].mxu0
        %v3386 = vadd.f32 %v3273, %v3385
        %v3387 = vpop.f32.mrb[0].mxu0
        %v3388 = vadd.f32 %v3275, %v3387
        %v3389 = vpop.f32.mrb[0].mxu0
        %v3390 = vadd.f32 %v3277, %v3389
        %v3391 = vpop.f32.mrb[0].mxu0
        %v3392 = vadd.f32 %v3279, %v3391
        %3393 = vmatprep.mubr.bf16.mxu0 0
        %3394 = vmatmul.mubr.bf16.gmra.mrb[0].mxu0 %v2052
        %v3395 = vpop.f32.mrb[0].mxu0
        %v3396 = vadd.f32 %v3283, %v3395
        %v3397 = vpop.f32.mrb[0].mxu0
        %v3398 = vadd.f32 %v3285, %v3397
        %v3399 = vpop.f32.mrb[0].mxu0
        %v3400 = vadd.f32 %v3287, %v3399
        %v3401 = vpop.f32.mrb[0].mxu0
        %v3402 = vadd.f32 %v3289, %v3401
        %3403 = vmatprep.mubr.bf16.mxu0 0
        %3404 = vmatmul.mubr.bf16.gmra.mrb[0].mxu0 %v2053
        %v3405 = vpop.f32.mrb[0].mxu0
        %v3406 = vadd.f32 %v3293, %v3405
        %v3407 = vpop.f32.mrb[0].mxu0
        %v3408 = vadd.f32 %v3295, %v3407
        %v3409 = vpop.f32.mrb[0].mxu0
        %v3410 = vadd.f32 %v3297, %v3409
        %v3411 = vpop.f32.mrb[0].mxu0
        %v3412 = vadd.f32 %v3299, %v3411
        %3413 = vmatprep.mubr.bf16.mxu0 0
        %3414 = vmatmul.mubr.bf16.gmra.mrb[0].mxu0 %v2054
        %v3415 = vpop.f32.mrb[0].mxu0
        %v3416 = vadd.f32 %v3303, %v3415
        %v3417 = vpop.f32.mrb[0].mxu0
        %v3418 = vadd.f32 %v3305, %v3417
        %v3419 = vpop.f32.mrb[0].mxu0
        %v3420 = vadd.f32 %v3307, %v3419
        %v3421 = vpop.f32.mrb[0].mxu0
        %v3422 = vadd.f32 %v3309, %v3421
        %3423 = vmatprep.mubr.bf16.mxu0 0
        %3424 = vmatmul.mubr.bf16.gmra.mrb[0].mxu0 %v2055
        %v3425 = vpop.f32.mrb[0].mxu0
        %v3426 = vadd.f32 %v3313, %v3425
        %v3427 = vpop.f32.mrb[0].mxu0
        %v3428 = vadd.f32 %v3315, %v3427
        %v3429 = vpop.f32.mrb[0].mxu0
        %v3430 = vadd.f32 %v3317, %v3429
        %v3431 = vpop.f32.mrb[0].mxu0
        %v3432 = vadd.f32 %v3319, %v3431
        %3433 = vdwg.mxu0
        %3434 = vmatprep.subr.bf16.mxu0 %v2827
        %3435 = vmatpush1.bf16.msra.mxu0 %v2826
        %3436 = vmatprep.subr.bf16.mxu0 %v2835
        %3437 = vmatpush1.bf16.msra.mxu0 %v2834
        %3438 = vmatprep.subr.bf16.mxu0 %v2843
        %3439 = vmatpush1.bf16.msra.mxu0 %v2842
        %3440 = vmatprep.subr.bf16.mxu0 %v2851
        %3441 = vmatpush1.bf16.msra.mxu0 %v2850
        %3442 = vmatprep.subr.bf16.mxu0 %v2859
        %3443 = vmatpush1.bf16.msra.mxu0 %v2858
        %3444 = vmatprep.subr.bf16.mxu0 %v2867
        %3445 = vmatpush1.bf16.msra.mxu0 %v2866
        %3446 = vmatprep.subr.bf16.mxu0 %v2875
        %3447 = vmatpush1.bf16.msra.mxu0 %v2874
        %3448 = vmatprep.subr.bf16.mxu0 %v2883
        %3449 = vmatpush1.bf16.msra.mxu0 %v2882
        %3450 = vmatprep.subr.bf16.mxu0 %v2891
        %3451 = vmatpush1.bf16.msra.mxu0 %v2890
        %3452 = vmatprep.subr.bf16.mxu0 %v2899
        %3453 = vmatpush1.bf16.msra.mxu0 %v2898
        %3454 = vmatprep.subr.bf16.mxu0 %v2907
        %3455 = vmatpush1.bf16.msra.mxu0 %v2906
        %3456 = vmatprep.subr.bf16.mxu0 %v2915
        %3457 = vmatpush1.bf16.msra.mxu0 %v2914
        %3458 = vmatprep.subr.bf16.mxu0 %v2923
        %3459 = vmatpush1.bf16.msra.mxu0 %v2922
        %3460 = vmatprep.subr.bf16.mxu0 %v2931
        %3461 = vmatpush1.bf16.msra.mxu0 %v2930
        %3462 = vmatprep.subr.bf16.mxu0 %v2939
        %3463 = vmatpush1.bf16.msra.mxu0 %v2938
        %3464 = vmatprep.subr.bf16.mxu0 %v2947
        %3465 = vmatpush1.bf16.msra.mxu0 %v2946
        %3466 = vmatprep.mubr.bf16.mxu0 %v1785
        %3467 = vmatmul.mubr.bf16.gmra.mrb[0].mxu0 %v1522
        %v3468 = vpop.f32.mrb[0].mxu0
        %v3469 = vadd.f32 0.0, %v3468
        %v3470 = vpop.f32.mrb[0].mxu0
        %v3471 = vadd.f32 0.0, %v3470
        %v3472 = vpop.f32.mrb[0].mxu0
        %v3473 = vadd.f32 0.0, %v3472
        %v3474 = vpop.f32.mrb[0].mxu0
        %v3475 = vadd.f32 0.0, %v3474
        %3476 = vmatprep.mubr.bf16.mxu0 %v1786
        %3477 = vmatmul.mubr.bf16.gmra.mrb[0].mxu0 %v1523
        %v3478 = vpop.f32.mrb[0].mxu0
        %v3479 = vadd.f32 0.0, %v3478
        %v3480 = vpop.f32.mrb[0].mxu0
        %v3481 = vadd.f32 0.0, %v3480
        %v3482 = vpop.f32.mrb[0].mxu0
        %v3483 = vadd.f32 0.0, %v3482
        %v3484 = vpop.f32.mrb[0].mxu0
        %v3485 = vadd.f32 0.0, %v3484
        %3486 = vmatprep.mubr.bf16.mxu0 %v1787
        %3487 = vmatmul.mubr.bf16.gmra.mrb[0].mxu0 %v1524
        %v3488 = vpop.f32.mrb[0].mxu0
        %v3489 = vadd.f32 0.0, %v3488
        %v3490 = vpop.f32.mrb[0].mxu0
        %v3491 = vadd.f32 0.0, %v3490
        %v3492 = vpop.f32.mrb[0].mxu0
        %v3493 = vadd.f32 0.0, %v3492
        %v3494 = vpop.f32.mrb[0].mxu0
        %v3495 = vadd.f32 0.0, %v3494
        %3496 = vmatprep.mubr.bf16.mxu0 %v1788
        %3497 = vmatmul.mubr.bf16.gmra.mrb[0].mxu0 %v1525
        %v3498 = vpop.f32.mrb[0].mxu0
        %v3499 = vadd.f32 0.0, %v3498
        %v3500 = vpop.f32.mrb[0].mxu0
        %v3501 = vadd.f32 0.0, %v3500
        %v3502 = vpop.f32.mrb[0].mxu0
        %v3503 = vadd.f32 0.0, %v3502
        %v3504 = vpop.f32.mrb[0].mxu0
        %v3505 = vadd.f32 0.0, %v3504
        %3506 = vmatprep.mubr.bf16.mxu0 %v1789
        %3507 = vmatmul.mubr.bf16.gmra.mrb[0].mxu0 %v1526
        %v3508 = vpop.f32.mrb[0].mxu0
        %v3509 = vadd.f32 0.0, %v3508
        %v3510 = vpop.f32.mrb[0].mxu0
        %v3511 = vadd.f32 0.0, %v3510
        %v3512 = vpop.f32.mrb[0].mxu0
        %v3513 = vadd.f32 0.0, %v3512
        %v3514 = vpop.f32.mrb[0].mxu0
        %v3515 = vadd.f32 0.0, %v3514
        %3516 = vmatprep.mubr.bf16.mxu0 %v1790
        %3517 = vmatmul.mubr.bf16.gmra.mrb[0].mxu0 %v1527
        %v3518 = vpop.f32.mrb[0].mxu0
        %v3519 = vadd.f32 0.0, %v3518
        %v3520 = vpop.f32.mrb[0].mxu0
        %v3521 = vadd.f32 0.0, %v3520
        %v3522 = vpop.f32.mrb[0].mxu0
        %v3523 = vadd.f32 0.0, %v3522
        %v3524 = vpop.f32.mrb[0].mxu0
        %v3525 = vadd.f32 0.0, %v3524
        %3526 = vmatprep.mubr.bf16.mxu0 %v1791
        %3527 = vmatmul.mubr.bf16.gmra.mrb[0].mxu0 %v1528
        %v3528 = vpop.f32.mrb[0].mxu0
        %v3529 = vadd.f32 0.0, %v3528
        %v3530 = vpop.f32.mrb[0].mxu0
        %v3531 = vadd.f32 0.0, %v3530
        %v3532 = vpop.f32.mrb[0].mxu0
        %v3533 = vadd.f32 0.0, %v3532
        %v3534 = vpop.f32.mrb[0].mxu0
        %v3535 = vadd.f32 0.0, %v3534
        %3536 = vmatprep.mubr.bf16.mxu0 %v1792
        %3537 = vmatmul.mubr.bf16.gmra.mrb[0].mxu0 %v1529
        %v3538 = vpop.f32.mrb[0].mxu0
        %v3539 = vadd.f32 0.0, %v3538
        %v3540 = vpop.f32.mrb[0].mxu0
        %v3541 = vadd.f32 0.0, %v3540
        %v3542 = vpop.f32.mrb[0].mxu0
        %v3543 = vadd.f32 0.0, %v3542
        %v3544 = vpop.f32.mrb[0].mxu0
        %v3545 = vadd.f32 0.0, %v3544
        %3546 = vdwg.mxu0
        %3547 = vmatprep.subr.bf16.mxu0 %v2955
        %3548 = vmatpush1.bf16.msra.mxu0 %v2954
        %3549 = vmatprep.subr.bf16.mxu0 %v2963
        %3550 = vmatpush1.bf16.msra.mxu0 %v2962
        %3551 = vmatprep.subr.bf16.mxu0 %v2971
        %3552 = vmatpush1.bf16.msra.mxu0 %v2970
        %3553 = vmatprep.subr.bf16.mxu0 %v2979
        %3554 = vmatpush1.bf16.msra.mxu0 %v2978
        %3555 = vmatprep.subr.bf16.mxu0 %v2987
        %3556 = vmatpush1.bf16.msra.mxu0 %v2986
        %3557 = vmatprep.subr.bf16.mxu0 %v2995
        %3558 = vmatpush1.bf16.msra.mxu0 %v2994
        %3559 = vmatprep.subr.bf16.mxu0 %v3003
        %3560 = vmatpush1.bf16.msra.mxu0 %v3002
        %3561 = vmatprep.subr.bf16.mxu0 %v3011
        %3562 = vmatpush1.bf16.msra.mxu0 %v3010
        %3563 = vmatprep.subr.bf16.mxu0 0
        %3564 = vmatpush1.bf16.msra.mxu0 0
        %3565 = vmatprep.subr.bf16.mxu0 0
        %3566 = vmatpush1.bf16.msra.mxu0 0
        %3567 = vmatprep.subr.bf16.mxu0 0
        %3568 = vmatpush1.bf16.msra.mxu0 0
        %3569 = vmatprep.subr.bf16.mxu0 0
        %3570 = vmatpush1.bf16.msra.mxu0 0
        %3571 = vmatprep.subr.bf16.mxu0 0
        %3572 = vmatpush1.bf16.msra.mxu0 0
        %3573 = vmatprep.subr.bf16.mxu0 0
        %3574 = vmatpush1.bf16.msra.mxu0 0
        %3575 = vmatprep.subr.bf16.mxu0 0
        %3576 = vmatpush1.bf16.msra.mxu0 0
        %3577 = vmatprep.subr.bf16.mxu0 0
        %3578 = vmatpush1.bf16.msra.mxu0 0
        %3579 = vmatprep.mubr.bf16.mxu0 0
        %3580 = vmatmul.mubr.bf16.gmra.mrb[0].mxu0 %v2048
        %v3581 = vpop.f32.mrb[0].mxu0
        %v3582 = vadd.f32 %v3469, %v3581
        %v3583 = vpop.f32.mrb[0].mxu0
        %v3584 = vadd.f32 %v3471, %v3583
        %v3585 = vpop.f32.mrb[0].mxu0
        %v3586 = vadd.f32 %v3473, %v3585
        %v3587 = vpop.f32.mrb[0].mxu0
        %v3588 = vadd.f32 %v3475, %v3587
        %3589 = vmatprep.mubr.bf16.mxu0 0
        %3590 = vmatmul.mubr.bf16.gmra.mrb[0].mxu0 %v2049
        %v3591 = vpop.f32.mrb[0].mxu0
        %v3592 = vadd.f32 %v3479, %v3591
        %v3593 = vpop.f32.mrb[0].mxu0
        %v3594 = vadd.f32 %v3481, %v3593
        %v3595 = vpop.f32.mrb[0].mxu0
        %v3596 = vadd.f32 %v3483, %v3595
        %v3597 = vpop.f32.mrb[0].mxu0
        %v3598 = vadd.f32 %v3485, %v3597
        %3599 = vmatprep.mubr.bf16.mxu0 0
        %3600 = vmatmul.mubr.bf16.gmra.mrb[0].mxu0 %v2050
        %v3601 = vpop.f32.mrb[0].mxu0
        %v3602 = vadd.f32 %v3489, %v3601
        %v3603 = vpop.f32.mrb[0].mxu0
        %v3604 = vadd.f32 %v3491, %v3603
        %v3605 = vpop.f32.mrb[0].mxu0
        %v3606 = vadd.f32 %v3493, %v3605
        %v3607 = vpop.f32.mrb[0].mxu0
        %v3608 = vadd.f32 %v3495, %v3607
        %3609 = vmatprep.mubr.bf16.mxu0 0
        %3610 = vmatmul.mubr.bf16.gmra.mrb[0].mxu0 %v2051
        %v3611 = vpop.f32.mrb[0].mxu0
        %v3612 = vadd.f32 %v3499, %v3611
        %v3613 = vpop.f32.mrb[0].mxu0
        %v3614 = vadd.f32 %v3501, %v3613
        %v3615 = vpop.f32.mrb[0].mxu0
        %v3616 = vadd.f32 %v3503, %v3615
        %v3617 = vpop.f32.mrb[0].mxu0
        %v3618 = vadd.f32 %v3505, %v3617
        %3619 = vmatprep.mubr.bf16.mxu0 0
        %3620 = vmatmul.mubr.bf16.gmra.mrb[0].mxu0 %v2052
        %v3621 = vpop.f32.mrb[0].mxu0
        %v3622 = vadd.f32 %v3509, %v3621
        %v3623 = vpop.f32.mrb[0].mxu0
        %v3624 = vadd.f32 %v3511, %v3623
        %v3625 = vpop.f32.mrb[0].mxu0
        %v3626 = vadd.f32 %v3513, %v3625
        %v3627 = vpop.f32.mrb[0].mxu0
        %v3628 = vadd.f32 %v3515, %v3627
        %3629 = vmatprep.mubr.bf16.mxu0 0
        %3630 = vmatmul.mubr.bf16.gmra.mrb[0].mxu0 %v2053
        %v3631 = vpop.f32.mrb[0].mxu0
        %v3632 = vadd.f32 %v3519, %v3631
        %v3633 = vpop.f32.mrb[0].mxu0
        %v3634 = vadd.f32 %v3521, %v3633
        %v3635 = vpop.f32.mrb[0].mxu0
        %v3636 = vadd.f32 %v3523, %v3635
        %v3637 = vpop.f32.mrb[0].mxu0
        %v3638 = vadd.f32 %v3525, %v3637
        %3639 = vmatprep.mubr.bf16.mxu0 0
        %3640 = vmatmul.mubr.bf16.gmra.mrb[0].mxu0 %v2054
        %v3641 = vpop.f32.mrb[0].mxu0
        %v3642 = vadd.f32 %v3529, %v3641
        %v3643 = vpop.f32.mrb[0].mxu0
        %v3644 = vadd.f32 %v3531, %v3643
        %v3645 = vpop.f32.mrb[0].mxu0
        %v3646 = vadd.f32 %v3533, %v3645
        %v3647 = vpop.f32.mrb[0].mxu0
        %v3648 = vadd.f32 %v3535, %v3647
        %3649 = vmatprep.mubr.bf16.mxu0 0
        %3650 = vmatmul.mubr.bf16.gmra.mrb[0].mxu0 %v2055
        %v3651 = vpop.f32.mrb[0].mxu0
        %v3652 = vadd.f32 %v3539, %v3651
        %v3653 = vpop.f32.mrb[0].mxu0
        %v3654 = vadd.f32 %v3541, %v3653
        %v3655 = vpop.f32.mrb[0].mxu0
        %v3656 = vadd.f32 %v3543, %v3655
        %v3657 = vpop.f32.mrb[0].mxu0
        %v3658 = vadd.f32 %v3545, %v3657
        %3659 = vdwg.mxu0
        %3660 = vmatprep.subr.bf16.mxu0 %v2829
        %3661 = vmatpush1.bf16.msra.mxu0 %v2828
        %3662 = vmatprep.subr.bf16.mxu0 %v2837
        %3663 = vmatpush1.bf16.msra.mxu0 %v2836
        %3664 = vmatprep.subr.bf16.mxu0 %v2845
        %3665 = vmatpush1.bf16.msra.mxu0 %v2844
        %3666 = vmatprep.subr.bf16.mxu0 %v2853
        %3667 = vmatpush1.bf16.msra.mxu0 %v2852
        %3668 = vmatprep.subr.bf16.mxu0 %v2861
        %3669 = vmatpush1.bf16.msra.mxu0 %v2860
        %3670 = vmatprep.subr.bf16.mxu0 %v2869
        %3671 = vmatpush1.bf16.msra.mxu0 %v2868
        %3672 = vmatprep.subr.bf16.mxu0 %v2877
        %3673 = vmatpush1.bf16.msra.mxu0 %v2876
        %3674 = vmatprep.subr.bf16.mxu0 %v2885
        %3675 = vmatpush1.bf16.msra.mxu0 %v2884
        %3676 = vmatprep.subr.bf16.mxu0 %v2893
        %3677 = vmatpush1.bf16.msra.mxu0 %v2892
        %3678 = vmatprep.subr.bf16.mxu0 %v2901
        %3679 = vmatpush1.bf16.msra.mxu0 %v2900
        %3680 = vmatprep.subr.bf16.mxu0 %v2909
        %3681 = vmatpush1.bf16.msra.mxu0 %v2908
        %3682 = vmatprep.subr.bf16.mxu0 %v2917
        %3683 = vmatpush1.bf16.msra.mxu0 %v2916
        %3684 = vmatprep.subr.bf16.mxu0 %v2925
        %3685 = vmatpush1.bf16.msra.mxu0 %v2924
        %3686 = vmatprep.subr.bf16.mxu0 %v2933
        %3687 = vmatpush1.bf16.msra.mxu0 %v2932
        %3688 = vmatprep.subr.bf16.mxu0 %v2941
        %3689 = vmatpush1.bf16.msra.mxu0 %v2940
        %3690 = vmatprep.subr.bf16.mxu0 %v2949
        %3691 = vmatpush1.bf16.msra.mxu0 %v2948
        %3692 = vmatprep.mubr.bf16.mxu0 %v1785
        %3693 = vmatmul.mubr.bf16.gmra.mrb[0].mxu0 %v1522
        %v3694 = vpop.f32.mrb[0].mxu0
        %v3695 = vadd.f32 0.0, %v3694
        %v3696 = vpop.f32.mrb[0].mxu0
        %v3697 = vadd.f32 0.0, %v3696
        %v3698 = vpop.f32.mrb[0].mxu0
        %v3699 = vadd.f32 0.0, %v3698
        %v3700 = vpop.f32.mrb[0].mxu0
        %v3701 = vadd.f32 0.0, %v3700
        %3702 = vmatprep.mubr.bf16.mxu0 %v1786
        %3703 = vmatmul.mubr.bf16.gmra.mrb[0].mxu0 %v1523
        %v3704 = vpop.f32.mrb[0].mxu0
        %v3705 = vadd.f32 0.0, %v3704
        %v3706 = vpop.f32.mrb[0].mxu0
        %v3707 = vadd.f32 0.0, %v3706
        %v3708 = vpop.f32.mrb[0].mxu0
        %v3709 = vadd.f32 0.0, %v3708
        %v3710 = vpop.f32.mrb[0].mxu0
        %v3711 = vadd.f32 0.0, %v3710
        %3712 = vmatprep.mubr.bf16.mxu0 %v1787
        %3713 = vmatmul.mubr.bf16.gmra.mrb[0].mxu0 %v1524
        %v3714 = vpop.f32.mrb[0].mxu0
        %v3715 = vadd.f32 0.0, %v3714
        %v3716 = vpop.f32.mrb[0].mxu0
        %v3717 = vadd.f32 0.0, %v3716
        %v3718 = vpop.f32.mrb[0].mxu0
        %v3719 = vadd.f32 0.0, %v3718
        %v3720 = vpop.f32.mrb[0].mxu0
        %v3721 = vadd.f32 0.0, %v3720
        %3722 = vmatprep.mubr.bf16.mxu0 %v1788
        %3723 = vmatmul.mubr.bf16.gmra.mrb[0].mxu0 %v1525
        %v3724 = vpop.f32.mrb[0].mxu0
        %v3725 = vadd.f32 0.0, %v3724
        %v3726 = vpop.f32.mrb[0].mxu0
        %v3727 = vadd.f32 0.0, %v3726
        %v3728 = vpop.f32.mrb[0].mxu0
        %v3729 = vadd.f32 0.0, %v3728
        %v3730 = vpop.f32.mrb[0].mxu0
        %v3731 = vadd.f32 0.0, %v3730
        %3732 = vmatprep.mubr.bf16.mxu0 %v1789
        %3733 = vmatmul.mubr.bf16.gmra.mrb[0].mxu0 %v1526
        %v3734 = vpop.f32.mrb[0].mxu0
        %v3735 = vadd.f32 0.0, %v3734
        %v3736 = vpop.f32.mrb[0].mxu0
        %v3737 = vadd.f32 0.0, %v3736
        %v3738 = vpop.f32.mrb[0].mxu0
        %v3739 = vadd.f32 0.0, %v3738
        %v3740 = vpop.f32.mrb[0].mxu0
        %v3741 = vadd.f32 0.0, %v3740
        %3742 = vmatprep.mubr.bf16.mxu0 %v1790
        %3743 = vmatmul.mubr.bf16.gmra.mrb[0].mxu0 %v1527
        %v3744 = vpop.f32.mrb[0].mxu0
        %v3745 = vadd.f32 0.0, %v3744
        %v3746 = vpop.f32.mrb[0].mxu0
        %v3747 = vadd.f32 0.0, %v3746
        %v3748 = vpop.f32.mrb[0].mxu0
        %v3749 = vadd.f32 0.0, %v3748
        %v3750 = vpop.f32.mrb[0].mxu0
        %v3751 = vadd.f32 0.0, %v3750
        %3752 = vmatprep.mubr.bf16.mxu0 %v1791
        %3753 = vmatmul.mubr.bf16.gmra.mrb[0].mxu0 %v1528
        %v3754 = vpop.f32.mrb[0].mxu0
        %v3755 = vadd.f32 0.0, %v3754
        %v3756 = vpop.f32.mrb[0].mxu0
        %v3757 = vadd.f32 0.0, %v3756
        %v3758 = vpop.f32.mrb[0].mxu0
        %v3759 = vadd.f32 0.0, %v3758
        %v3760 = vpop.f32.mrb[0].mxu0
        %v3761 = vadd.f32 0.0, %v3760
        %3762 = vmatprep.mubr.bf16.mxu0 %v1792
        %3763 = vmatmul.mubr.bf16.gmra.mrb[0].mxu0 %v1529
        %v3764 = vpop.f32.mrb[0].mxu0
        %v3765 = vadd.f32 0.0, %v3764
        %v3766 = vpop.f32.mrb[0].mxu0
        %v3767 = vadd.f32 0.0, %v3766
        %v3768 = vpop.f32.mrb[0].mxu0
        %v3769 = vadd.f32 0.0, %v3768
        %v3770 = vpop.f32.mrb[0].mxu0
        %v3771 = vadd.f32 0.0, %v3770
        %3772 = vdwg.mxu0
        %3773 = vmatprep.subr.bf16.mxu0 %v2957
        %3774 = vmatpush1.bf16.msra.mxu0 %v2956
        %3775 = vmatprep.subr.bf16.mxu0 %v2965
        %3776 = vmatpush1.bf16.msra.mxu0 %v2964
        %3777 = vmatprep.subr.bf16.mxu0 %v2973
        %3778 = vmatpush1.bf16.msra.mxu0 %v2972
        %3779 = vmatprep.subr.bf16.mxu0 %v2981
        %3780 = vmatpush1.bf16.msra.mxu0 %v2980
        %3781 = vmatprep.subr.bf16.mxu0 %v2989
        %3782 = vmatpush1.bf16.msra.mxu0 %v2988
        %3783 = vmatprep.subr.bf16.mxu0 %v2997
        %3784 = vmatpush1.bf16.msra.mxu0 %v2996
        %3785 = vmatprep.subr.bf16.mxu0 %v3005
        %3786 = vmatpush1.bf16.msra.mxu0 %v3004
        %3787 = vmatprep.subr.bf16.mxu0 %v3013
        %3788 = vmatpush1.bf16.msra.mxu0 %v3012
        %3789 = vmatprep.subr.bf16.mxu0 0
        %3790 = vmatpush1.bf16.msra.mxu0 0
        %3791 = vmatprep.subr.bf16.mxu0 0
        %3792 = vmatpush1.bf16.msra.mxu0 0
        %3793 = vmatprep.subr.bf16.mxu0 0
        %3794 = vmatpush1.bf16.msra.mxu0 0
        %3795 = vmatprep.subr.bf16.mxu0 0
        %3796 = vmatpush1.bf16.msra.mxu0 0
        %3797 = vmatprep.subr.bf16.mxu0 0
        %3798 = vmatpush1.bf16.msra.mxu0 0
        %3799 = vmatprep.subr.bf16.mxu0 0
        %3800 = vmatpush1.bf16.msra.mxu0 0
        %3801 = vmatprep.subr.bf16.mxu0 0
        %3802 = vmatpush1.bf16.msra.mxu0 0
        %3803 = vmatprep.subr.bf16.mxu0 0
        %3804 = vmatpush1.bf16.msra.mxu0 0
        %3805 = vmatprep.mubr.bf16.mxu0 0
        %3806 = vmatmul.mubr.bf16.gmra.mrb[0].mxu0 %v2048
        %v3807 = vpop.f32.mrb[0].mxu0
        %v3808 = vadd.f32 %v3695, %v3807
        %v3809 = vpop.f32.mrb[0].mxu0
        %v3810 = vadd.f32 %v3697, %v3809
        %v3811 = vpop.f32.mrb[0].mxu0
        %v3812 = vadd.f32 %v3699, %v3811
        %v3813 = vpop.f32.mrb[0].mxu0
        %v3814 = vadd.f32 %v3701, %v3813
        %3815 = vmatprep.mubr.bf16.mxu0 0
        %3816 = vmatmul.mubr.bf16.gmra.mrb[0].mxu0 %v2049
        %v3817 = vpop.f32.mrb[0].mxu0
        %v3818 = vadd.f32 %v3705, %v3817
        %v3819 = vpop.f32.mrb[0].mxu0
        %v3820 = vadd.f32 %v3707, %v3819
        %v3821 = vpop.f32.mrb[0].mxu0
        %v3822 = vadd.f32 %v3709, %v3821
        %v3823 = vpop.f32.mrb[0].mxu0
        %v3824 = vadd.f32 %v3711, %v3823
        %3825 = vmatprep.mubr.bf16.mxu0 0
        %3826 = vmatmul.mubr.bf16.gmra.mrb[0].mxu0 %v2050
        %v3827 = vpop.f32.mrb[0].mxu0
        %v3828 = vadd.f32 %v3715, %v3827
        %v3829 = vpop.f32.mrb[0].mxu0
        %v3830 = vadd.f32 %v3717, %v3829
        %v3831 = vpop.f32.mrb[0].mxu0
        %v3832 = vadd.f32 %v3719, %v3831
        %v3833 = vpop.f32.mrb[0].mxu0
        %v3834 = vadd.f32 %v3721, %v3833
        %3835 = vmatprep.mubr.bf16.mxu0 0
        %3836 = vmatmul.mubr.bf16.gmra.mrb[0].mxu0 %v2051
        %v3837 = vpop.f32.mrb[0].mxu0
        %v3838 = vadd.f32 %v3725, %v3837
        %v3839 = vpop.f32.mrb[0].mxu0
        %v3840 = vadd.f32 %v3727, %v3839
        %v3841 = vpop.f32.mrb[0].mxu0
        %v3842 = vadd.f32 %v3729, %v3841
        %v3843 = vpop.f32.mrb[0].mxu0
        %v3844 = vadd.f32 %v3731, %v3843
        %3845 = vmatprep.mubr.bf16.mxu0 0
        %3846 = vmatmul.mubr.bf16.gmra.mrb[0].mxu0 %v2052
        %v3847 = vpop.f32.mrb[0].mxu0
        %v3848 = vadd.f32 %v3735, %v3847
        %v3849 = vpop.f32.mrb[0].mxu0
        %v3850 = vadd.f32 %v3737, %v3849
        %v3851 = vpop.f32.mrb[0].mxu0
        %v3852 = vadd.f32 %v3739, %v3851
        %v3853 = vpop.f32.mrb[0].mxu0
        %v3854 = vadd.f32 %v3741, %v3853
        %3855 = vmatprep.mubr.bf16.mxu0 0
        %3856 = vmatmul.mubr.bf16.gmra.mrb[0].mxu0 %v2053
        %v3857 = vpop.f32.mrb[0].mxu0
        %v3858 = vadd.f32 %v3745, %v3857
        %v3859 = vpop.f32.mrb[0].mxu0
        %v3860 = vadd.f32 %v3747, %v3859
        %v3861 = vpop.f32.mrb[0].mxu0
        %v3862 = vadd.f32 %v3749, %v3861
        %v3863 = vpop.f32.mrb[0].mxu0
        %v3864 = vadd.f32 %v3751, %v3863
        %3865 = vmatprep.mubr.bf16.mxu0 0
        %3866 = vmatmul.mubr.bf16.gmra.mrb[0].mxu0 %v2054
        %v3867 = vpop.f32.mrb[0].mxu0
        %v3868 = vadd.f32 %v3755, %v3867
        %v3869 = vpop.f32.mrb[0].mxu0
        %v3870 = vadd.f32 %v3757, %v3869
        %v3871 = vpop.f32.mrb[0].mxu0
        %v3872 = vadd.f32 %v3759, %v3871
        %v3873 = vpop.f32.mrb[0].mxu0
        %v3874 = vadd.f32 %v3761, %v3873
        %3875 = vmatprep.mubr.bf16.mxu0 0
        %3876 = vmatmul.mubr.bf16.gmra.mrb[0].mxu0 %v2055
        %v3877 = vpop.f32.mrb[0].mxu0
        %v3878 = vadd.f32 %v3765, %v3877
        %v3879 = vpop.f32.mrb[0].mxu0
        %v3880 = vadd.f32 %v3767, %v3879
        %v3881 = vpop.f32.mrb[0].mxu0
        %v3882 = vadd.f32 %v3769, %v3881
        %v3883 = vpop.f32.mrb[0].mxu0
        %v3884 = vadd.f32 %v3771, %v3883
        %3885 = vdwg.mxu0
        %3886 = vmatprep.subr.bf16.mxu0 %v2831
        %3887 = vmatpush1.bf16.msra.mxu0 %v2830
        %3888 = vmatprep.subr.bf16.mxu0 %v2839
        %3889 = vmatpush1.bf16.msra.mxu0 %v2838
        %3890 = vmatprep.subr.bf16.mxu0 %v2847
        %3891 = vmatpush1.bf16.msra.mxu0 %v2846
        %3892 = vmatprep.subr.bf16.mxu0 %v2855
        %3893 = vmatpush1.bf16.msra.mxu0 %v2854
        %3894 = vmatprep.subr.bf16.mxu0 %v2863
        %3895 = vmatpush1.bf16.msra.mxu0 %v2862
        %3896 = vmatprep.subr.bf16.mxu0 %v2871
        %3897 = vmatpush1.bf16.msra.mxu0 %v2870
        %3898 = vmatprep.subr.bf16.mxu0 %v2879
        %3899 = vmatpush1.bf16.msra.mxu0 %v2878
        %3900 = vmatprep.subr.bf16.mxu0 %v2887
        %3901 = vmatpush1.bf16.msra.mxu0 %v2886
        %3902 = vmatprep.subr.bf16.mxu0 %v2895
        %3903 = vmatpush1.bf16.msra.mxu0 %v2894
        %3904 = vmatprep.subr.bf16.mxu0 %v2903
        %3905 = vmatpush1.bf16.msra.mxu0 %v2902
        %3906 = vmatprep.subr.bf16.mxu0 %v2911
        %3907 = vmatpush1.bf16.msra.mxu0 %v2910
        %3908 = vmatprep.subr.bf16.mxu0 %v2919
        %3909 = vmatpush1.bf16.msra.mxu0 %v2918
        %3910 = vmatprep.subr.bf16.mxu0 %v2927
        %3911 = vmatpush1.bf16.msra.mxu0 %v2926
        %3912 = vmatprep.subr.bf16.mxu0 %v2935
        %3913 = vmatpush1.bf16.msra.mxu0 %v2934
        %3914 = vmatprep.subr.bf16.mxu0 %v2943
        %3915 = vmatpush1.bf16.msra.mxu0 %v2942
        %3916 = vmatprep.subr.bf16.mxu0 %v2951
        %3917 = vmatpush1.bf16.msra.mxu0 %v2950
        %3918 = vmatprep.mubr.bf16.mxu0 %v1785
        %3919 = vmatmul.mubr.bf16.gmra.mrb[0].mxu0 %v1522
        %v3920 = vpop.f32.mrb[0].mxu0
        %v3921 = vadd.f32 0.0, %v3920
        %v3922 = vpop.f32.mrb[0].mxu0
        %v3923 = vadd.f32 0.0, %v3922
        %v3924 = vpop.f32.mrb[0].mxu0
        %v3925 = vadd.f32 0.0, %v3924
        %v3926 = vpop.f32.mrb[0].mxu0
        %v3927 = vadd.f32 0.0, %v3926
        %3928 = vmatprep.mubr.bf16.mxu0 %v1786
        %3929 = vmatmul.mubr.bf16.gmra.mrb[0].mxu0 %v1523
        %v3930 = vpop.f32.mrb[0].mxu0
        %v3931 = vadd.f32 0.0, %v3930
        %v3932 = vpop.f32.mrb[0].mxu0
        %v3933 = vadd.f32 0.0, %v3932
        %v3934 = vpop.f32.mrb[0].mxu0
        %v3935 = vadd.f32 0.0, %v3934
        %v3936 = vpop.f32.mrb[0].mxu0
        %v3937 = vadd.f32 0.0, %v3936
        %3938 = vmatprep.mubr.bf16.mxu0 %v1787
        %3939 = vmatmul.mubr.bf16.gmra.mrb[0].mxu0 %v1524
        %v3940 = vpop.f32.mrb[0].mxu0
        %v3941 = vadd.f32 0.0, %v3940
        %v3942 = vpop.f32.mrb[0].mxu0
        %v3943 = vadd.f32 0.0, %v3942
        %v3944 = vpop.f32.mrb[0].mxu0
        %v3945 = vadd.f32 0.0, %v3944
        %v3946 = vpop.f32.mrb[0].mxu0
        %v3947 = vadd.f32 0.0, %v3946
        %3948 = vmatprep.mubr.bf16.mxu0 %v1788
        %3949 = vmatmul.mubr.bf16.gmra.mrb[0].mxu0 %v1525
        %v3950 = vpop.f32.mrb[0].mxu0
        %v3951 = vadd.f32 0.0, %v3950
        %v3952 = vpop.f32.mrb[0].mxu0
        %v3953 = vadd.f32 0.0, %v3952
        %v3954 = vpop.f32.mrb[0].mxu0
        %v3955 = vadd.f32 0.0, %v3954
        %v3956 = vpop.f32.mrb[0].mxu0
        %v3957 = vadd.f32 0.0, %v3956
        %3958 = vmatprep.mubr.bf16.mxu0 %v1789
        %3959 = vmatmul.mubr.bf16.gmra.mrb[0].mxu0 %v1526
        %v3960 = vpop.f32.mrb[0].mxu0
        %v3961 = vadd.f32 0.0, %v3960
        %v3962 = vpop.f32.mrb[0].mxu0
        %v3963 = vadd.f32 0.0, %v3962
        %v3964 = vpop.f32.mrb[0].mxu0
        %v3965 = vadd.f32 0.0, %v3964
        %v3966 = vpop.f32.mrb[0].mxu0
        %v3967 = vadd.f32 0.0, %v3966
        %3968 = vmatprep.mubr.bf16.mxu0 %v1790
        %3969 = vmatmul.mubr.bf16.gmra.mrb[0].mxu0 %v1527
        %v3970 = vpop.f32.mrb[0].mxu0
        %v3971 = vadd.f32 0.0, %v3970
        %v3972 = vpop.f32.mrb[0].mxu0
        %v3973 = vadd.f32 0.0, %v3972
        %v3974 = vpop.f32.mrb[0].mxu0
        %v3975 = vadd.f32 0.0, %v3974
        %v3976 = vpop.f32.mrb[0].mxu0
        %v3977 = vadd.f32 0.0, %v3976
        %3978 = vmatprep.mubr.bf16.mxu0 %v1791
        %3979 = vmatmul.mubr.bf16.gmra.mrb[0].mxu0 %v1528
        %v3980 = vpop.f32.mrb[0].mxu0
        %v3981 = vadd.f32 0.0, %v3980
        %v3982 = vpop.f32.mrb[0].mxu0
        %v3983 = vadd.f32 0.0, %v3982
        %v3984 = vpop.f32.mrb[0].mxu0
        %v3985 = vadd.f32 0.0, %v3984
        %v3986 = vpop.f32.mrb[0].mxu0
        %v3987 = vadd.f32 0.0, %v3986
        %3988 = vmatprep.mubr.bf16.mxu0 %v1792
        %3989 = vmatmul.mubr.bf16.gmra.mrb[0].mxu0 %v1529
        %v3990 = vpop.f32.mrb[0].mxu0
        %v3991 = vadd.f32 0.0, %v3990
        %v3992 = vpop.f32.mrb[0].mxu0
        %v3993 = vadd.f32 0.0, %v3992
        %v3994 = vpop.f32.mrb[0].mxu0
        %v3995 = vadd.f32 0.0, %v3994
        %v3996 = vpop.f32.mrb[0].mxu0
        %v3997 = vadd.f32 0.0, %v3996
        %3998 = vdwg.mxu0
        %3999 = vmatprep.subr.bf16.mxu0 %v2959
        %4000 = vmatpush1.bf16.msra.mxu0 %v2958
        %4001 = vmatprep.subr.bf16.mxu0 %v2967
        %4002 = vmatpush1.bf16.msra.mxu0 %v2966
        %4003 = vmatprep.subr.bf16.mxu0 %v2975
        %4004 = vmatpush1.bf16.msra.mxu0 %v2974
        %4005 = vmatprep.subr.bf16.mxu0 %v2983
        %4006 = vmatpush1.bf16.msra.mxu0 %v2982
        %4007 = vmatprep.subr.bf16.mxu0 %v2991
        %4008 = vmatpush1.bf16.msra.mxu0 %v2990
        %4009 = vmatprep.subr.bf16.mxu0 %v2999
        %4010 = vmatpush1.bf16.msra.mxu0 %v2998
        %4011 = vmatprep.subr.bf16.mxu0 %v3007
        %4012 = vmatpush1.bf16.msra.mxu0 %v3006
        %4013 = vmatprep.subr.bf16.mxu0 %v3015
        %4014 = vmatpush1.bf16.msra.mxu0 %v3014
        %4015 = vmatprep.subr.bf16.mxu0 0
        %4016 = vmatpush1.bf16.msra.mxu0 0
        %4017 = vmatprep.subr.bf16.mxu0 0
        %4018 = vmatpush1.bf16.msra.mxu0 0
        %4019 = vmatprep.subr.bf16.mxu0 0
        %4020 = vmatpush1.bf16.msra.mxu0 0
        %4021 = vmatprep.subr.bf16.mxu0 0
        %4022 = vmatpush1.bf16.msra.mxu0 0
        %4023 = vmatprep.subr.bf16.mxu0 0
        %4024 = vmatpush1.bf16.msra.mxu0 0
        %4025 = vmatprep.subr.bf16.mxu0 0
        %4026 = vmatpush1.bf16.msra.mxu0 0
        %4027 = vmatprep.subr.bf16.mxu0 0
        %4028 = vmatpush1.bf16.msra.mxu0 0
        %4029 = vmatprep.subr.bf16.mxu0 0
        %4030 = vmatpush1.bf16.msra.mxu0 0
        %4031 = vmatprep.mubr.bf16.mxu0 0
        %4032 = vmatmul.mubr.bf16.gmra.mrb[0].mxu0 %v2048
        %v4033 = vpop.f32.mrb[0].mxu0
        %v4034 = vadd.f32 %v3921, %v4033
        %v4035 = vpop.f32.mrb[0].mxu0
        %v4036 = vadd.f32 %v3923, %v4035
        %v4037 = vpop.f32.mrb[0].mxu0
        %v4038 = vadd.f32 %v3925, %v4037
        %v4039 = vpop.f32.mrb[0].mxu0
        %v4040 = vadd.f32 %v3927, %v4039
        %4041 = vmatprep.mubr.bf16.mxu0 0
        %4042 = vmatmul.mubr.bf16.gmra.mrb[0].mxu0 %v2049
        %v4043 = vpop.f32.mrb[0].mxu0
        %v4044 = vadd.f32 %v3931, %v4043
        %v4045 = vpop.f32.mrb[0].mxu0
        %v4046 = vadd.f32 %v3933, %v4045
        %v4047 = vpop.f32.mrb[0].mxu0
        %v4048 = vadd.f32 %v3935, %v4047
        %v4049 = vpop.f32.mrb[0].mxu0
        %v4050 = vadd.f32 %v3937, %v4049
        %4051 = vmatprep.mubr.bf16.mxu0 0
        %4052 = vmatmul.mubr.bf16.gmra.mrb[0].mxu0 %v2050
        %v4053 = vpop.f32.mrb[0].mxu0
        %v4054 = vadd.f32 %v3941, %v4053
        %v4055 = vpop.f32.mrb[0].mxu0
        %v4056 = vadd.f32 %v3943, %v4055
        %v4057 = vpop.f32.mrb[0].mxu0
        %v4058 = vadd.f32 %v3945, %v4057
        %v4059 = vpop.f32.mrb[0].mxu0
        %v4060 = vadd.f32 %v3947, %v4059
        %4061 = vmatprep.mubr.bf16.mxu0 0
        %4062 = vmatmul.mubr.bf16.gmra.mrb[0].mxu0 %v2051
        %v4063 = vpop.f32.mrb[0].mxu0
        %v4064 = vadd.f32 %v3951, %v4063
        %v4065 = vpop.f32.mrb[0].mxu0
        %v4066 = vadd.f32 %v3953, %v4065
        %v4067 = vpop.f32.mrb[0].mxu0
        %v4068 = vadd.f32 %v3955, %v4067
        %v4069 = vpop.f32.mrb[0].mxu0
        %v4070 = vadd.f32 %v3957, %v4069
        %4071 = vmatprep.mubr.bf16.mxu0 0
        %4072 = vmatmul.mubr.bf16.gmra.mrb[0].mxu0 %v2052
        %v4073 = vpop.f32.mrb[0].mxu0
        %v4074 = vadd.f32 %v3961, %v4073
        %v4075 = vpop.f32.mrb[0].mxu0
        %v4076 = vadd.f32 %v3963, %v4075
        %v4077 = vpop.f32.mrb[0].mxu0
        %v4078 = vadd.f32 %v3965, %v4077
        %v4079 = vpop.f32.mrb[0].mxu0
        %v4080 = vadd.f32 %v3967, %v4079
        %4081 = vmatprep.mubr.bf16.mxu0 0
        %4082 = vmatmul.mubr.bf16.gmra.mrb[0].mxu0 %v2053
        %v4083 = vpop.f32.mrb[0].mxu0
        %v4084 = vadd.f32 %v3971, %v4083
        %v4085 = vpop.f32.mrb[0].mxu0
        %v4086 = vadd.f32 %v3973, %v4085
        %v4087 = vpop.f32.mrb[0].mxu0
        %v4088 = vadd.f32 %v3975, %v4087
        %v4089 = vpop.f32.mrb[0].mxu0
        %v4090 = vadd.f32 %v3977, %v4089
        %4091 = vmatprep.mubr.bf16.mxu0 0
        %4092 = vmatmul.mubr.bf16.gmra.mrb[0].mxu0 %v2054
        %v4093 = vpop.f32.mrb[0].mxu0
        %v4094 = vadd.f32 %v3981, %v4093
        %v4095 = vpop.f32.mrb[0].mxu0
        %v4096 = vadd.f32 %v3983, %v4095
        %v4097 = vpop.f32.mrb[0].mxu0
        %v4098 = vadd.f32 %v3985, %v4097
        %v4099 = vpop.f32.mrb[0].mxu0
        %v4100 = vadd.f32 %v3987, %v4099
        %4101 = vmatprep.mubr.bf16.mxu0 0
        %4102 = vmatmul.mubr.bf16.gmra.mrb[0].mxu0 %v2055
        %v4103 = vpop.f32.mrb[0].mxu0
        %v4104 = vadd.f32 %v3991, %v4103
        %v4105 = vpop.f32.mrb[0].mxu0
        %v4106 = vadd.f32 %v3993, %v4105
        %v4107 = vpop.f32.mrb[0].mxu0
        %v4108 = vadd.f32 %v3995, %v4107
        %v4109 = vpop.f32.mrb[0].mxu0
        %v4110 = vadd.f32 %v3997, %v4109
        %4111 = vdwg.mxu0
        %v4112 = vld [vmem:[%s17] sm:$0xff]
        %v4114 = vlaneseq
        %v4115 = vshrl.u32 %v4114, 7
        %v4116 = vsub.s32 0, %v4115
        %v4117 = vrot.slane %v4112, %v4116
        %v4118 = vlaneseq
        %v4119 = vshrl.u32 %v4118, 7
        %v4120 = vsub.s32 1, %v4119
        %v4121 = vrot.slane %v4112, %v4120
        %v4122 = vlaneseq
        %v4123 = vshrl.u32 %v4122, 7
        %v4124 = vsub.s32 2, %v4123
        %v4125 = vrot.slane %v4112, %v4124
        %v4126 = vlaneseq
        %v4127 = vshrl.u32 %v4126, 7
        %v4128 = vsub.s32 3, %v4127
        %v4129 = vrot.slane %v4112, %v4128
        %v4130 = vlaneseq
        %v4131 = vshrl.u32 %v4130, 7
        %v4132 = vsub.s32 4, %v4131
        %v4133 = vrot.slane %v4112, %v4132
        %v4134 = vlaneseq
        %v4135 = vshrl.u32 %v4134, 7
        %v4136 = vsub.s32 5, %v4135
        %v4137 = vrot.slane %v4112, %v4136
        %v4138 = vlaneseq
        %v4139 = vshrl.u32 %v4138, 7
        %v4140 = vsub.s32 6, %v4139
        %v4141 = vrot.slane %v4112, %v4140
        %v4142 = vlaneseq
        %v4143 = vshrl.u32 %v4142, 7
        %v4144 = vsub.s32 7, %v4143
        %v4145 = vrot.slane %v4112, %v4144
        %v4154 = vmul.f32 %v3356, %v4117
        %v4155 = vmul.f32 %v3358, %v4121
        %v4156 = vmul.f32 %v3582, %v4125
        %v4157 = vmul.f32 %v3584, %v4129
        %v4158 = vmul.f32 %v3808, %v4133
        %v4159 = vmul.f32 %v3810, %v4137
        %v4160 = vmul.f32 %v4034, %v4141
        %v4161 = vmul.f32 %v4036, %v4145
        %v4162 = vmul.f32 %v3360, %v4117
        %v4163 = vmul.f32 %v3362, %v4121
        %v4164 = vmul.f32 %v3586, %v4125
        %v4165 = vmul.f32 %v3588, %v4129
        %v4166 = vmul.f32 %v3812, %v4133
        %v4167 = vmul.f32 %v3814, %v4137
        %v4168 = vmul.f32 %v4038, %v4141
        %v4169 = vmul.f32 %v4040, %v4145
        %v4170 = vmul.f32 %v3366, %v4117
        %v4171 = vmul.f32 %v3368, %v4121
        %v4172 = vmul.f32 %v3592, %v4125
        %v4173 = vmul.f32 %v3594, %v4129
        %v4174 = vmul.f32 %v3818, %v4133
        %v4175 = vmul.f32 %v3820, %v4137
        %v4176 = vmul.f32 %v4044, %v4141
        %v4177 = vmul.f32 %v4046, %v4145
        %v4178 = vmul.f32 %v3370, %v4117
        %v4179 = vmul.f32 %v3372, %v4121
        %v4180 = vmul.f32 %v3596, %v4125
        %v4181 = vmul.f32 %v3598, %v4129
        %v4182 = vmul.f32 %v3822, %v4133
        %v4183 = vmul.f32 %v3824, %v4137
        %v4184 = vmul.f32 %v4048, %v4141
        %v4185 = vmul.f32 %v4050, %v4145
        %v4186 = vmul.f32 %v3376, %v4117
        %v4187 = vmul.f32 %v3378, %v4121
        %v4188 = vmul.f32 %v3602, %v4125
        %v4189 = vmul.f32 %v3604, %v4129
        %v4190 = vmul.f32 %v3828, %v4133
        %v4191 = vmul.f32 %v3830, %v4137
        %v4192 = vmul.f32 %v4054, %v4141
        %v4193 = vmul.f32 %v4056, %v4145
        %v4194 = vmul.f32 %v3380, %v4117
        %v4195 = vmul.f32 %v3382, %v4121
        %v4196 = vmul.f32 %v3606, %v4125
        %v4197 = vmul.f32 %v3608, %v4129
        %v4198 = vmul.f32 %v3832, %v4133
        %v4199 = vmul.f32 %v3834, %v4137
        %v4200 = vmul.f32 %v4058, %v4141
        %v4201 = vmul.f32 %v4060, %v4145
        %v4202 = vmul.f32 %v3386, %v4117
        %v4203 = vmul.f32 %v3388, %v4121
        %v4204 = vmul.f32 %v3612, %v4125
        %v4205 = vmul.f32 %v3614, %v4129
        %v4206 = vmul.f32 %v3838, %v4133
        %v4207 = vmul.f32 %v3840, %v4137
        %v4208 = vmul.f32 %v4064, %v4141
        %v4209 = vmul.f32 %v4066, %v4145
        %v4210 = vmul.f32 %v3390, %v4117
        %v4211 = vmul.f32 %v3392, %v4121
        %v4212 = vmul.f32 %v3616, %v4125
        %v4213 = vmul.f32 %v3618, %v4129
        %v4214 = vmul.f32 %v3842, %v4133
        %v4215 = vmul.f32 %v3844, %v4137
        %v4216 = vmul.f32 %v4068, %v4141
        %v4217 = vmul.f32 %v4070, %v4145
        %v4218 = vmul.f32 %v3396, %v4117
        %v4219 = vmul.f32 %v3398, %v4121
        %v4220 = vmul.f32 %v3622, %v4125
        %v4221 = vmul.f32 %v3624, %v4129
        %v4222 = vmul.f32 %v3848, %v4133
        %v4223 = vmul.f32 %v3850, %v4137
        %v4224 = vmul.f32 %v4074, %v4141
        %v4225 = vmul.f32 %v4076, %v4145
        %v4226 = vmul.f32 %v3400, %v4117
        %v4227 = vmul.f32 %v3402, %v4121
        %v4228 = vmul.f32 %v3626, %v4125
        %v4229 = vmul.f32 %v3628, %v4129
        %v4230 = vmul.f32 %v3852, %v4133
        %v4231 = vmul.f32 %v3854, %v4137
        %v4232 = vmul.f32 %v4078, %v4141
        %v4233 = vmul.f32 %v4080, %v4145
        %v4234 = vmul.f32 %v3406, %v4117
        %v4235 = vmul.f32 %v3408, %v4121
        %v4236 = vmul.f32 %v3632, %v4125
        %v4237 = vmul.f32 %v3634, %v4129
        %v4238 = vmul.f32 %v3858, %v4133
        %v4239 = vmul.f32 %v3860, %v4137
        %v4240 = vmul.f32 %v4084, %v4141
        %v4241 = vmul.f32 %v4086, %v4145
        %v4242 = vmul.f32 %v3410, %v4117
        %v4243 = vmul.f32 %v3412, %v4121
        %v4244 = vmul.f32 %v3636, %v4125
        %v4245 = vmul.f32 %v3638, %v4129
        %v4246 = vmul.f32 %v3862, %v4133
        %v4247 = vmul.f32 %v3864, %v4137
        %v4248 = vmul.f32 %v4088, %v4141
        %v4249 = vmul.f32 %v4090, %v4145
        %v4250 = vmul.f32 %v3416, %v4117
        %v4251 = vmul.f32 %v3418, %v4121
        %v4252 = vmul.f32 %v3642, %v4125
        %v4253 = vmul.f32 %v3644, %v4129
        %v4254 = vmul.f32 %v3868, %v4133
        %v4255 = vmul.f32 %v3870, %v4137
        %v4256 = vmul.f32 %v4094, %v4141
        %v4257 = vmul.f32 %v4096, %v4145
        %v4258 = vmul.f32 %v3420, %v4117
        %v4259 = vmul.f32 %v3422, %v4121
        %v4260 = vmul.f32 %v3646, %v4125
        %v4261 = vmul.f32 %v3648, %v4129
        %v4262 = vmul.f32 %v3872, %v4133
        %v4263 = vmul.f32 %v3874, %v4137
        %v4264 = vmul.f32 %v4098, %v4141
        %v4265 = vmul.f32 %v4100, %v4145
        %v4266 = vmul.f32 %v3426, %v4117
        %v4267 = vmul.f32 %v3428, %v4121
        %v4268 = vmul.f32 %v3652, %v4125
        %v4269 = vmul.f32 %v3654, %v4129
        %v4270 = vmul.f32 %v3878, %v4133
        %v4271 = vmul.f32 %v3880, %v4137
        %v4272 = vmul.f32 %v4104, %v4141
        %v4273 = vmul.f32 %v4106, %v4145
        %v4274 = vmul.f32 %v3430, %v4117
        %v4275 = vmul.f32 %v3432, %v4121
        %v4276 = vmul.f32 %v3656, %v4125
        %v4277 = vmul.f32 %v3658, %v4129
        %v4278 = vmul.f32 %v3882, %v4133
        %v4279 = vmul.f32 %v3884, %v4137
        %v4280 = vmul.f32 %v4108, %v4141
        %v4281 = vmul.f32 %v4110, %v4145
        %v4282 = vld [vmem:[%s18] sm:$0xff]
        %v4284 = vlaneseq
        %v4285 = vshrl.u32 %v4284, 7
        %v4286 = vsub.s32 0, %v4285
        %v4287 = vrot.slane %v4282, %v4286
        %v4288 = vlaneseq
        %v4289 = vshrl.u32 %v4288, 7
        %v4290 = vsub.s32 1, %v4289
        %v4291 = vrot.slane %v4282, %v4290
        %v4292 = vlaneseq
        %v4293 = vshrl.u32 %v4292, 7
        %v4294 = vsub.s32 2, %v4293
        %v4295 = vrot.slane %v4282, %v4294
        %v4296 = vlaneseq
        %v4297 = vshrl.u32 %v4296, 7
        %v4298 = vsub.s32 3, %v4297
        %v4299 = vrot.slane %v4282, %v4298
        %v4300 = vlaneseq
        %v4301 = vshrl.u32 %v4300, 7
        %v4302 = vsub.s32 4, %v4301
        %v4303 = vrot.slane %v4282, %v4302
        %v4304 = vlaneseq
        %v4305 = vshrl.u32 %v4304, 7
        %v4306 = vsub.s32 5, %v4305
        %v4307 = vrot.slane %v4282, %v4306
        %v4308 = vlaneseq
        %v4309 = vshrl.u32 %v4308, 7
        %v4310 = vsub.s32 6, %v4309
        %v4311 = vrot.slane %v4282, %v4310
        %v4312 = vlaneseq
        %v4313 = vshrl.u32 %v4312, 7
        %v4314 = vsub.s32 7, %v4313
        %v4315 = vrot.slane %v4282, %v4314
        %v4324 = vadd.f32 %v4154, %v4287
        %v4325 = vadd.f32 %v4155, %v4291
        %v4326 = vadd.f32 %v4156, %v4295
        %v4327 = vadd.f32 %v4157, %v4299
        %v4328 = vadd.f32 %v4158, %v4303
        %v4329 = vadd.f32 %v4159, %v4307
        %v4330 = vadd.f32 %v4160, %v4311
        %v4331 = vadd.f32 %v4161, %v4315
        %v4332 = vadd.f32 %v4162, %v4287
        %v4333 = vadd.f32 %v4163, %v4291
        %v4334 = vadd.f32 %v4164, %v4295
        %v4335 = vadd.f32 %v4165, %v4299
        %v4336 = vadd.f32 %v4166, %v4303
        %v4337 = vadd.f32 %v4167, %v4307
        %v4338 = vadd.f32 %v4168, %v4311
        %v4339 = vadd.f32 %v4169, %v4315
        %v4340 = vadd.f32 %v4170, %v4287
        %v4341 = vadd.f32 %v4171, %v4291
        %v4342 = vadd.f32 %v4172, %v4295
        %v4343 = vadd.f32 %v4173, %v4299
        %v4344 = vadd.f32 %v4174, %v4303
        %v4345 = vadd.f32 %v4175, %v4307
        %v4346 = vadd.f32 %v4176, %v4311
        %v4347 = vadd.f32 %v4177, %v4315
        %v4348 = vadd.f32 %v4178, %v4287
        %v4349 = vadd.f32 %v4179, %v4291
        %v4350 = vadd.f32 %v4180, %v4295
        %v4351 = vadd.f32 %v4181, %v4299
        %v4352 = vadd.f32 %v4182, %v4303
        %v4353 = vadd.f32 %v4183, %v4307
        %v4354 = vadd.f32 %v4184, %v4311
        %v4355 = vadd.f32 %v4185, %v4315
        %v4356 = vadd.f32 %v4186, %v4287
        %v4357 = vadd.f32 %v4187, %v4291
        %v4358 = vadd.f32 %v4188, %v4295
        %v4359 = vadd.f32 %v4189, %v4299
        %v4360 = vadd.f32 %v4190, %v4303
        %v4361 = vadd.f32 %v4191, %v4307
        %v4362 = vadd.f32 %v4192, %v4311
        %v4363 = vadd.f32 %v4193, %v4315
        %v4364 = vadd.f32 %v4194, %v4287
        %v4365 = vadd.f32 %v4195, %v4291
        %v4366 = vadd.f32 %v4196, %v4295
        %v4367 = vadd.f32 %v4197, %v4299
        %v4368 = vadd.f32 %v4198, %v4303
        %v4369 = vadd.f32 %v4199, %v4307
        %v4370 = vadd.f32 %v4200, %v4311
        %v4371 = vadd.f32 %v4201, %v4315
        %v4372 = vadd.f32 %v4202, %v4287
        %v4373 = vadd.f32 %v4203, %v4291
        %v4374 = vadd.f32 %v4204, %v4295
        %v4375 = vadd.f32 %v4205, %v4299
        %v4376 = vadd.f32 %v4206, %v4303
        %v4377 = vadd.f32 %v4207, %v4307
        %v4378 = vadd.f32 %v4208, %v4311
        %v4379 = vadd.f32 %v4209, %v4315
        %v4380 = vadd.f32 %v4210, %v4287
        %v4381 = vadd.f32 %v4211, %v4291
        %v4382 = vadd.f32 %v4212, %v4295
        %v4383 = vadd.f32 %v4213, %v4299
        %v4384 = vadd.f32 %v4214, %v4303
        %v4385 = vadd.f32 %v4215, %v4307
        %v4386 = vadd.f32 %v4216, %v4311
        %v4387 = vadd.f32 %v4217, %v4315
        %v4388 = vadd.f32 %v4218, %v4287
        %v4389 = vadd.f32 %v4219, %v4291
        %v4390 = vadd.f32 %v4220, %v4295
        %v4391 = vadd.f32 %v4221, %v4299
        %v4392 = vadd.f32 %v4222, %v4303
        %v4393 = vadd.f32 %v4223, %v4307
        %v4394 = vadd.f32 %v4224, %v4311
        %v4395 = vadd.f32 %v4225, %v4315
        %v4396 = vadd.f32 %v4226, %v4287
        %v4397 = vadd.f32 %v4227, %v4291
        %v4398 = vadd.f32 %v4228, %v4295
        %v4399 = vadd.f32 %v4229, %v4299
        %v4400 = vadd.f32 %v4230, %v4303
        %v4401 = vadd.f32 %v4231, %v4307
        %v4402 = vadd.f32 %v4232, %v4311
        %v4403 = vadd.f32 %v4233, %v4315
        %v4404 = vadd.f32 %v4234, %v4287
        %v4405 = vadd.f32 %v4235, %v4291
        %v4406 = vadd.f32 %v4236, %v4295
        %v4407 = vadd.f32 %v4237, %v4299
        %v4408 = vadd.f32 %v4238, %v4303
        %v4409 = vadd.f32 %v4239, %v4307
        %v4410 = vadd.f32 %v4240, %v4311
        %v4411 = vadd.f32 %v4241, %v4315
        %v4412 = vadd.f32 %v4242, %v4287
        %v4413 = vadd.f32 %v4243, %v4291
        %v4414 = vadd.f32 %v4244, %v4295
        %v4415 = vadd.f32 %v4245, %v4299
        %v4416 = vadd.f32 %v4246, %v4303
        %v4417 = vadd.f32 %v4247, %v4307
        %v4418 = vadd.f32 %v4248, %v4311
        %v4419 = vadd.f32 %v4249, %v4315
        %v4420 = vadd.f32 %v4250, %v4287
        %v4421 = vadd.f32 %v4251, %v4291
        %v4422 = vadd.f32 %v4252, %v4295
        %v4423 = vadd.f32 %v4253, %v4299
        %v4424 = vadd.f32 %v4254, %v4303
        %v4425 = vadd.f32 %v4255, %v4307
        %v4426 = vadd.f32 %v4256, %v4311
        %v4427 = vadd.f32 %v4257, %v4315
        %v4428 = vadd.f32 %v4258, %v4287
        %v4429 = vadd.f32 %v4259, %v4291
        %v4430 = vadd.f32 %v4260, %v4295
        %v4431 = vadd.f32 %v4261, %v4299
        %v4432 = vadd.f32 %v4262, %v4303
        %v4433 = vadd.f32 %v4263, %v4307
        %v4434 = vadd.f32 %v4264, %v4311
        %v4435 = vadd.f32 %v4265, %v4315
        %v4436 = vadd.f32 %v4266, %v4287
        %v4437 = vadd.f32 %v4267, %v4291
        %v4438 = vadd.f32 %v4268, %v4295
        %v4439 = vadd.f32 %v4269, %v4299
        %v4440 = vadd.f32 %v4270, %v4303
        %v4441 = vadd.f32 %v4271, %v4307
        %v4442 = vadd.f32 %v4272, %v4311
        %v4443 = vadd.f32 %v4273, %v4315
        %v4444 = vadd.f32 %v4274, %v4287
        %v4445 = vadd.f32 %v4275, %v4291
        %v4446 = vadd.f32 %v4276, %v4295
        %v4447 = vadd.f32 %v4277, %v4299
        %v4448 = vadd.f32 %v4278, %v4303
        %v4449 = vadd.f32 %v4279, %v4307
        %v4450 = vadd.f32 %v4280, %v4311
        %v4451 = vadd.f32 %v4281, %v4315
        %vm4452 = vcmp.gt.f32.partialorder %v4324, 0.0
        %vm4453 = vcmp.gt.f32.partialorder %v4325, 0.0
        %vm4454 = vcmp.gt.f32.partialorder %v4326, 0.0
        %vm4455 = vcmp.gt.f32.partialorder %v4327, 0.0
        %vm4456 = vcmp.gt.f32.partialorder %v4328, 0.0
        %vm4457 = vcmp.gt.f32.partialorder %v4329, 0.0
        %vm4458 = vcmp.gt.f32.partialorder %v4330, 0.0
        %vm4459 = vcmp.gt.f32.partialorder %v4331, 0.0
        %vm4460 = vcmp.gt.f32.partialorder %v4332, 0.0
        %vm4461 = vcmp.gt.f32.partialorder %v4333, 0.0
        %vm4462 = vcmp.gt.f32.partialorder %v4334, 0.0
        %vm4463 = vcmp.gt.f32.partialorder %v4335, 0.0
        %vm4464 = vcmp.gt.f32.partialorder %v4336, 0.0
        %vm4465 = vcmp.gt.f32.partialorder %v4337, 0.0
        %vm4466 = vcmp.gt.f32.partialorder %v4338, 0.0
        %vm4467 = vcmp.gt.f32.partialorder %v4339, 0.0
        %vm4468 = vcmp.gt.f32.partialorder %v4340, 0.0
        %vm4469 = vcmp.gt.f32.partialorder %v4341, 0.0
        %vm4470 = vcmp.gt.f32.partialorder %v4342, 0.0
        %vm4471 = vcmp.gt.f32.partialorder %v4343, 0.0
        %vm4472 = vcmp.gt.f32.partialorder %v4344, 0.0
        %vm4473 = vcmp.gt.f32.partialorder %v4345, 0.0
        %vm4474 = vcmp.gt.f32.partialorder %v4346, 0.0
        %vm4475 = vcmp.gt.f32.partialorder %v4347, 0.0
        %vm4476 = vcmp.gt.f32.partialorder %v4348, 0.0
        %vm4477 = vcmp.gt.f32.partialorder %v4349, 0.0
        %vm4478 = vcmp.gt.f32.partialorder %v4350, 0.0
        %vm4479 = vcmp.gt.f32.partialorder %v4351, 0.0
        %vm4480 = vcmp.gt.f32.partialorder %v4352, 0.0
        %vm4481 = vcmp.gt.f32.partialorder %v4353, 0.0
        %vm4482 = vcmp.gt.f32.partialorder %v4354, 0.0
        %vm4483 = vcmp.gt.f32.partialorder %v4355, 0.0
        %vm4484 = vcmp.gt.f32.partialorder %v4356, 0.0
        %vm4485 = vcmp.gt.f32.partialorder %v4357, 0.0
        %vm4486 = vcmp.gt.f32.partialorder %v4358, 0.0
        %vm4487 = vcmp.gt.f32.partialorder %v4359, 0.0
        %vm4488 = vcmp.gt.f32.partialorder %v4360, 0.0
        %vm4489 = vcmp.gt.f32.partialorder %v4361, 0.0
        %vm4490 = vcmp.gt.f32.partialorder %v4362, 0.0
        %vm4491 = vcmp.gt.f32.partialorder %v4363, 0.0
        %vm4492 = vcmp.gt.f32.partialorder %v4364, 0.0
        %vm4493 = vcmp.gt.f32.partialorder %v4365, 0.0
        %vm4494 = vcmp.gt.f32.partialorder %v4366, 0.0
        %vm4495 = vcmp.gt.f32.partialorder %v4367, 0.0
        %vm4496 = vcmp.gt.f32.partialorder %v4368, 0.0
        %vm4497 = vcmp.gt.f32.partialorder %v4369, 0.0
        %vm4498 = vcmp.gt.f32.partialorder %v4370, 0.0
        %vm4499 = vcmp.gt.f32.partialorder %v4371, 0.0
        %vm4500 = vcmp.gt.f32.partialorder %v4372, 0.0
        %vm4501 = vcmp.gt.f32.partialorder %v4373, 0.0
        %vm4502 = vcmp.gt.f32.partialorder %v4374, 0.0
        %vm4503 = vcmp.gt.f32.partialorder %v4375, 0.0
        %vm4504 = vcmp.gt.f32.partialorder %v4376, 0.0
        %vm4505 = vcmp.gt.f32.partialorder %v4377, 0.0
        %vm4506 = vcmp.gt.f32.partialorder %v4378, 0.0
        %vm4507 = vcmp.gt.f32.partialorder %v4379, 0.0
        %vm4508 = vcmp.gt.f32.partialorder %v4380, 0.0
        %vm4509 = vcmp.gt.f32.partialorder %v4381, 0.0
        %vm4510 = vcmp.gt.f32.partialorder %v4382, 0.0
        %vm4511 = vcmp.gt.f32.partialorder %v4383, 0.0
        %vm4512 = vcmp.gt.f32.partialorder %v4384, 0.0
        %vm4513 = vcmp.gt.f32.partialorder %v4385, 0.0
        %vm4514 = vcmp.gt.f32.partialorder %v4386, 0.0
        %vm4515 = vcmp.gt.f32.partialorder %v4387, 0.0
        %vm4516 = vcmp.gt.f32.partialorder %v4388, 0.0
        %vm4517 = vcmp.gt.f32.partialorder %v4389, 0.0
        %vm4518 = vcmp.gt.f32.partialorder %v4390, 0.0
        %vm4519 = vcmp.gt.f32.partialorder %v4391, 0.0
        %vm4520 = vcmp.gt.f32.partialorder %v4392, 0.0
        %vm4521 = vcmp.gt.f32.partialorder %v4393, 0.0
        %vm4522 = vcmp.gt.f32.partialorder %v4394, 0.0
        %vm4523 = vcmp.gt.f32.partialorder %v4395, 0.0
        %vm4524 = vcmp.gt.f32.partialorder %v4396, 0.0
        %vm4525 = vcmp.gt.f32.partialorder %v4397, 0.0
        %vm4526 = vcmp.gt.f32.partialorder %v4398, 0.0
        %vm4527 = vcmp.gt.f32.partialorder %v4399, 0.0
        %vm4528 = vcmp.gt.f32.partialorder %v4400, 0.0
        %vm4529 = vcmp.gt.f32.partialorder %v4401, 0.0
        %vm4530 = vcmp.gt.f32.partialorder %v4402, 0.0
        %vm4531 = vcmp.gt.f32.partialorder %v4403, 0.0
        %vm4532 = vcmp.gt.f32.partialorder %v4404, 0.0
        %vm4533 = vcmp.gt.f32.partialorder %v4405, 0.0
        %vm4534 = vcmp.gt.f32.partialorder %v4406, 0.0
        %vm4535 = vcmp.gt.f32.partialorder %v4407, 0.0
        %vm4536 = vcmp.gt.f32.partialorder %v4408, 0.0
        %vm4537 = vcmp.gt.f32.partialorder %v4409, 0.0
        %vm4538 = vcmp.gt.f32.partialorder %v4410, 0.0
        %vm4539 = vcmp.gt.f32.partialorder %v4411, 0.0
        %vm4540 = vcmp.gt.f32.partialorder %v4412, 0.0
        %vm4541 = vcmp.gt.f32.partialorder %v4413, 0.0
        %vm4542 = vcmp.gt.f32.partialorder %v4414, 0.0
        %vm4543 = vcmp.gt.f32.partialorder %v4415, 0.0
        %vm4544 = vcmp.gt.f32.partialorder %v4416, 0.0
        %vm4545 = vcmp.gt.f32.partialorder %v4417, 0.0
        %vm4546 = vcmp.gt.f32.partialorder %v4418, 0.0
        %vm4547 = vcmp.gt.f32.partialorder %v4419, 0.0
        %vm4548 = vcmp.gt.f32.partialorder %v4420, 0.0
        %vm4549 = vcmp.gt.f32.partialorder %v4421, 0.0
        %vm4550 = vcmp.gt.f32.partialorder %v4422, 0.0
        %vm4551 = vcmp.gt.f32.partialorder %v4423, 0.0
        %vm4552 = vcmp.gt.f32.partialorder %v4424, 0.0
        %vm4553 = vcmp.gt.f32.partialorder %v4425, 0.0
        %vm4554 = vcmp.gt.f32.partialorder %v4426, 0.0
        %vm4555 = vcmp.gt.f32.partialorder %v4427, 0.0
        %vm4556 = vcmp.gt.f32.partialorder %v4428, 0.0
        %vm4557 = vcmp.gt.f32.partialorder %v4429, 0.0
        %vm4558 = vcmp.gt.f32.partialorder %v4430, 0.0
        %vm4559 = vcmp.gt.f32.partialorder %v4431, 0.0
        %vm4560 = vcmp.gt.f32.partialorder %v4432, 0.0
        %vm4561 = vcmp.gt.f32.partialorder %v4433, 0.0
        %vm4562 = vcmp.gt.f32.partialorder %v4434, 0.0
        %vm4563 = vcmp.gt.f32.partialorder %v4435, 0.0
        %vm4564 = vcmp.gt.f32.partialorder %v4436, 0.0
        %vm4565 = vcmp.gt.f32.partialorder %v4437, 0.0
        %vm4566 = vcmp.gt.f32.partialorder %v4438, 0.0
        %vm4567 = vcmp.gt.f32.partialorder %v4439, 0.0
        %vm4568 = vcmp.gt.f32.partialorder %v4440, 0.0
        %vm4569 = vcmp.gt.f32.partialorder %v4441, 0.0
        %vm4570 = vcmp.gt.f32.partialorder %v4442, 0.0
        %vm4571 = vcmp.gt.f32.partialorder %v4443, 0.0
        %vm4572 = vcmp.gt.f32.partialorder %v4444, 0.0
        %vm4573 = vcmp.gt.f32.partialorder %v4445, 0.0
        %vm4574 = vcmp.gt.f32.partialorder %v4446, 0.0
        %vm4575 = vcmp.gt.f32.partialorder %v4447, 0.0
        %vm4576 = vcmp.gt.f32.partialorder %v4448, 0.0
        %vm4577 = vcmp.gt.f32.partialorder %v4449, 0.0
        %vm4578 = vcmp.gt.f32.partialorder %v4450, 0.0
        %vm4579 = vcmp.gt.f32.partialorder %v4451, 0.0
        %v4580 = vmul.f32 %v4324, 0.2
        %v4581 = vmul.f32 %v4325, 0.2
        %v4582 = vmul.f32 %v4326, 0.2
        %v4583 = vmul.f32 %v4327, 0.2
        %v4584 = vmul.f32 %v4328, 0.2
        %v4585 = vmul.f32 %v4329, 0.2
        %v4586 = vmul.f32 %v4330, 0.2
        %v4587 = vmul.f32 %v4331, 0.2
        %v4588 = vmul.f32 %v4332, 0.2
        %v4589 = vmul.f32 %v4333, 0.2
        %v4590 = vmul.f32 %v4334, 0.2
        %v4591 = vmul.f32 %v4335, 0.2
        %v4592 = vmul.f32 %v4336, 0.2
        %v4593 = vmul.f32 %v4337, 0.2
        %v4594 = vmul.f32 %v4338, 0.2
        %v4595 = vmul.f32 %v4339, 0.2
        %v4596 = vmul.f32 %v4340, 0.2
        %v4597 = vmul.f32 %v4341, 0.2
        %v4598 = vmul.f32 %v4342, 0.2
        %v4599 = vmul.f32 %v4343, 0.2
        %v4600 = vmul.f32 %v4344, 0.2
        %v4601 = vmul.f32 %v4345, 0.2
        %v4602 = vmul.f32 %v4346, 0.2
        %v4603 = vmul.f32 %v4347, 0.2
        %v4604 = vmul.f32 %v4348, 0.2
        %v4605 = vmul.f32 %v4349, 0.2
        %v4606 = vmul.f32 %v4350, 0.2
        %v4607 = vmul.f32 %v4351, 0.2
        %v4608 = vmul.f32 %v4352, 0.2
        %v4609 = vmul.f32 %v4353, 0.2
        %v4610 = vmul.f32 %v4354, 0.2
        %v4611 = vmul.f32 %v4355, 0.2
        %v4612 = vmul.f32 %v4356, 0.2
        %v4613 = vmul.f32 %v4357, 0.2
        %v4614 = vmul.f32 %v4358, 0.2
        %v4615 = vmul.f32 %v4359, 0.2
        %v4616 = vmul.f32 %v4360, 0.2
        %v4617 = vmul.f32 %v4361, 0.2
        %v4618 = vmul.f32 %v4362, 0.2
        %v4619 = vmul.f32 %v4363, 0.2
        %v4620 = vmul.f32 %v4364, 0.2
        %v4621 = vmul.f32 %v4365, 0.2
        %v4622 = vmul.f32 %v4366, 0.2
        %v4623 = vmul.f32 %v4367, 0.2
        %v4624 = vmul.f32 %v4368, 0.2
        %v4625 = vmul.f32 %v4369, 0.2
        %v4626 = vmul.f32 %v4370, 0.2
        %v4627 = vmul.f32 %v4371, 0.2
        %v4628 = vmul.f32 %v4372, 0.2
        %v4629 = vmul.f32 %v4373, 0.2
        %v4630 = vmul.f32 %v4374, 0.2
        %v4631 = vmul.f32 %v4375, 0.2
        %v4632 = vmul.f32 %v4376, 0.2
        %v4633 = vmul.f32 %v4377, 0.2
        %v4634 = vmul.f32 %v4378, 0.2
        %v4635 = vmul.f32 %v4379, 0.2
        %v4636 = vmul.f32 %v4380, 0.2
        %v4637 = vmul.f32 %v4381, 0.2
        %v4638 = vmul.f32 %v4382, 0.2
        %v4639 = vmul.f32 %v4383, 0.2
        %v4640 = vmul.f32 %v4384, 0.2
        %v4641 = vmul.f32 %v4385, 0.2
        %v4642 = vmul.f32 %v4386, 0.2
        %v4643 = vmul.f32 %v4387, 0.2
        %v4644 = vmul.f32 %v4388, 0.2
        %v4645 = vmul.f32 %v4389, 0.2
        %v4646 = vmul.f32 %v4390, 0.2
        %v4647 = vmul.f32 %v4391, 0.2
        %v4648 = vmul.f32 %v4392, 0.2
        %v4649 = vmul.f32 %v4393, 0.2
        %v4650 = vmul.f32 %v4394, 0.2
        %v4651 = vmul.f32 %v4395, 0.2
        %v4652 = vmul.f32 %v4396, 0.2
        %v4653 = vmul.f32 %v4397, 0.2
        %v4654 = vmul.f32 %v4398, 0.2
        %v4655 = vmul.f32 %v4399, 0.2
        %v4656 = vmul.f32 %v4400, 0.2
        %v4657 = vmul.f32 %v4401, 0.2
        %v4658 = vmul.f32 %v4402, 0.2
        %v4659 = vmul.f32 %v4403, 0.2
        %v4660 = vmul.f32 %v4404, 0.2
        %v4661 = vmul.f32 %v4405, 0.2
        %v4662 = vmul.f32 %v4406, 0.2
        %v4663 = vmul.f32 %v4407, 0.2
        %v4664 = vmul.f32 %v4408, 0.2
        %v4665 = vmul.f32 %v4409, 0.2
        %v4666 = vmul.f32 %v4410, 0.2
        %v4667 = vmul.f32 %v4411, 0.2
        %v4668 = vmul.f32 %v4412, 0.2
        %v4669 = vmul.f32 %v4413, 0.2
        %v4670 = vmul.f32 %v4414, 0.2
        %v4671 = vmul.f32 %v4415, 0.2
        %v4672 = vmul.f32 %v4416, 0.2
        %v4673 = vmul.f32 %v4417, 0.2
        %v4674 = vmul.f32 %v4418, 0.2
        %v4675 = vmul.f32 %v4419, 0.2
        %v4676 = vmul.f32 %v4420, 0.2
        %v4677 = vmul.f32 %v4421, 0.2
        %v4678 = vmul.f32 %v4422, 0.2
        %v4679 = vmul.f32 %v4423, 0.2
        %v4680 = vmul.f32 %v4424, 0.2
        %v4681 = vmul.f32 %v4425, 0.2
        %v4682 = vmul.f32 %v4426, 0.2
        %v4683 = vmul.f32 %v4427, 0.2
        %v4684 = vmul.f32 %v4428, 0.2
        %v4685 = vmul.f32 %v4429, 0.2
        %v4686 = vmul.f32 %v4430, 0.2
        %v4687 = vmul.f32 %v4431, 0.2
        %v4688 = vmul.f32 %v4432, 0.2
        %v4689 = vmul.f32 %v4433, 0.2
        %v4690 = vmul.f32 %v4434, 0.2
        %v4691 = vmul.f32 %v4435, 0.2
        %v4692 = vmul.f32 %v4436, 0.2
        %v4693 = vmul.f32 %v4437, 0.2
        %v4694 = vmul.f32 %v4438, 0.2
        %v4695 = vmul.f32 %v4439, 0.2
        %v4696 = vmul.f32 %v4440, 0.2
        %v4697 = vmul.f32 %v4441, 0.2
        %v4698 = vmul.f32 %v4442, 0.2
        %v4699 = vmul.f32 %v4443, 0.2
        %v4700 = vmul.f32 %v4444, 0.2
        %v4701 = vmul.f32 %v4445, 0.2
        %v4702 = vmul.f32 %v4446, 0.2
        %v4703 = vmul.f32 %v4447, 0.2
        %v4704 = vmul.f32 %v4448, 0.2
        %v4705 = vmul.f32 %v4449, 0.2
        %v4706 = vmul.f32 %v4450, 0.2
        %v4707 = vmul.f32 %v4451, 0.2
        %v4708 = vsel %vm4452, %v4324, %v4580
        %v4709 = vsel %vm4453, %v4325, %v4581
        %v4710 = vsel %vm4454, %v4326, %v4582
        %v4711 = vsel %vm4455, %v4327, %v4583
        %v4712 = vsel %vm4456, %v4328, %v4584
        %v4713 = vsel %vm4457, %v4329, %v4585
        %v4714 = vsel %vm4458, %v4330, %v4586
        %v4715 = vsel %vm4459, %v4331, %v4587
        %v4716 = vsel %vm4460, %v4332, %v4588
        %v4717 = vsel %vm4461, %v4333, %v4589
        %v4718 = vsel %vm4462, %v4334, %v4590
        %v4719 = vsel %vm4463, %v4335, %v4591
        %v4720 = vsel %vm4464, %v4336, %v4592
        %v4721 = vsel %vm4465, %v4337, %v4593
        %v4722 = vsel %vm4466, %v4338, %v4594
        %v4723 = vsel %vm4467, %v4339, %v4595
        %v4724 = vsel %vm4468, %v4340, %v4596
        %v4725 = vsel %vm4469, %v4341, %v4597
        %v4726 = vsel %vm4470, %v4342, %v4598
        %v4727 = vsel %vm4471, %v4343, %v4599
        %v4728 = vsel %vm4472, %v4344, %v4600
        %v4729 = vsel %vm4473, %v4345, %v4601
        %v4730 = vsel %vm4474, %v4346, %v4602
        %v4731 = vsel %vm4475, %v4347, %v4603
        %v4732 = vsel %vm4476, %v4348, %v4604
        %v4733 = vsel %vm4477, %v4349, %v4605
        %v4734 = vsel %vm4478, %v4350, %v4606
        %v4735 = vsel %vm4479, %v4351, %v4607
        %v4736 = vsel %vm4480, %v4352, %v4608
        %v4737 = vsel %vm4481, %v4353, %v4609
        %v4738 = vsel %vm4482, %v4354, %v4610
        %v4739 = vsel %vm4483, %v4355, %v4611
        %v4740 = vsel %vm4484, %v4356, %v4612
        %v4741 = vsel %vm4485, %v4357, %v4613
        %v4742 = vsel %vm4486, %v4358, %v4614
        %v4743 = vsel %vm4487, %v4359, %v4615
        %v4744 = vsel %vm4488, %v4360, %v4616
        %v4745 = vsel %vm4489, %v4361, %v4617
        %v4746 = vsel %vm4490, %v4362, %v4618
        %v4747 = vsel %vm4491, %v4363, %v4619
        %v4748 = vsel %vm4492, %v4364, %v4620
        %v4749 = vsel %vm4493, %v4365, %v4621
        %v4750 = vsel %vm4494, %v4366, %v4622
        %v4751 = vsel %vm4495, %v4367, %v4623
        %v4752 = vsel %vm4496, %v4368, %v4624
        %v4753 = vsel %vm4497, %v4369, %v4625
        %v4754 = vsel %vm4498, %v4370, %v4626
        %v4755 = vsel %vm4499, %v4371, %v4627
        %v4756 = vsel %vm4500, %v4372, %v4628
        %v4757 = vsel %vm4501, %v4373, %v4629
        %v4758 = vsel %vm4502, %v4374, %v4630
        %v4759 = vsel %vm4503, %v4375, %v4631
        %v4760 = vsel %vm4504, %v4376, %v4632
        %v4761 = vsel %vm4505, %v4377, %v4633
        %v4762 = vsel %vm4506, %v4378, %v4634
        %v4763 = vsel %vm4507, %v4379, %v4635
        %v4764 = vsel %vm4508, %v4380, %v4636
        %v4765 = vsel %vm4509, %v4381, %v4637
        %v4766 = vsel %vm4510, %v4382, %v4638
        %v4767 = vsel %vm4511, %v4383, %v4639
        %v4768 = vsel %vm4512, %v4384, %v4640
        %v4769 = vsel %vm4513, %v4385, %v4641
        %v4770 = vsel %vm4514, %v4386, %v4642
        %v4771 = vsel %vm4515, %v4387, %v4643
        %v4772 = vsel %vm4516, %v4388, %v4644
        %v4773 = vsel %vm4517, %v4389, %v4645
        %v4774 = vsel %vm4518, %v4390, %v4646
        %v4775 = vsel %vm4519, %v4391, %v4647
        %v4776 = vsel %vm4520, %v4392, %v4648
        %v4777 = vsel %vm4521, %v4393, %v4649
        %v4778 = vsel %vm4522, %v4394, %v4650
        %v4779 = vsel %vm4523, %v4395, %v4651
        %v4780 = vsel %vm4524, %v4396, %v4652
        %v4781 = vsel %vm4525, %v4397, %v4653
        %v4782 = vsel %vm4526, %v4398, %v4654
        %v4783 = vsel %vm4527, %v4399, %v4655
        %v4784 = vsel %vm4528, %v4400, %v4656
        %v4785 = vsel %vm4529, %v4401, %v4657
        %v4786 = vsel %vm4530, %v4402, %v4658
        %v4787 = vsel %vm4531, %v4403, %v4659
        %v4788 = vsel %vm4532, %v4404, %v4660
        %v4789 = vsel %vm4533, %v4405, %v4661
        %v4790 = vsel %vm4534, %v4406, %v4662
        %v4791 = vsel %vm4535, %v4407, %v4663
        %v4792 = vsel %vm4536, %v4408, %v4664
        %v4793 = vsel %vm4537, %v4409, %v4665
        %v4794 = vsel %vm4538, %v4410, %v4666
        %v4795 = vsel %vm4539, %v4411, %v4667
        %v4796 = vsel %vm4540, %v4412, %v4668
        %v4797 = vsel %vm4541, %v4413, %v4669
        %v4798 = vsel %vm4542, %v4414, %v4670
        %v4799 = vsel %vm4543, %v4415, %v4671
        %v4800 = vsel %vm4544, %v4416, %v4672
        %v4801 = vsel %vm4545, %v4417, %v4673
        %v4802 = vsel %vm4546, %v4418, %v4674
        %v4803 = vsel %vm4547, %v4419, %v4675
        %v4804 = vsel %vm4548, %v4420, %v4676
        %v4805 = vsel %vm4549, %v4421, %v4677
        %v4806 = vsel %vm4550, %v4422, %v4678
        %v4807 = vsel %vm4551, %v4423, %v4679
        %v4808 = vsel %vm4552, %v4424, %v4680
        %v4809 = vsel %vm4553, %v4425, %v4681
        %v4810 = vsel %vm4554, %v4426, %v4682
        %v4811 = vsel %vm4555, %v4427, %v4683
        %v4812 = vsel %vm4556, %v4428, %v4684
        %v4813 = vsel %vm4557, %v4429, %v4685
        %v4814 = vsel %vm4558, %v4430, %v4686
        %v4815 = vsel %vm4559, %v4431, %v4687
        %v4816 = vsel %vm4560, %v4432, %v4688
        %v4817 = vsel %vm4561, %v4433, %v4689
        %v4818 = vsel %vm4562, %v4434, %v4690
        %v4819 = vsel %vm4563, %v4435, %v4691
        %v4820 = vsel %vm4564, %v4436, %v4692
        %v4821 = vsel %vm4565, %v4437, %v4693
        %v4822 = vsel %vm4566, %v4438, %v4694
        %v4823 = vsel %vm4567, %v4439, %v4695
        %v4824 = vsel %vm4568, %v4440, %v4696
        %v4825 = vsel %vm4569, %v4441, %v4697
        %v4826 = vsel %vm4570, %v4442, %v4698
        %v4827 = vsel %vm4571, %v4443, %v4699
        %v4828 = vsel %vm4572, %v4444, %v4700
        %v4829 = vsel %vm4573, %v4445, %v4701
        %v4830 = vsel %vm4574, %v4446, %v4702
        %v4831 = vsel %vm4575, %v4447, %v4703
        %v4832 = vsel %vm4576, %v4448, %v4704
        %v4833 = vsel %vm4577, %v4449, %v4705
        %v4834 = vsel %vm4578, %v4450, %v4706
        %v4835 = vsel %vm4579, %v4451, %v4707
        %v4836 = vpack.c.bf16 %v4716, %v4708
        %v4837 = vpack.c.bf16 %v4717, %v4709
        %v4838 = vpack.c.bf16 %v4718, %v4710
        %v4839 = vpack.c.bf16 %v4719, %v4711
        %v4840 = vpack.c.bf16 %v4720, %v4712
        %v4841 = vpack.c.bf16 %v4721, %v4713
        %v4842 = vpack.c.bf16 %v4722, %v4714
        %v4843 = vpack.c.bf16 %v4723, %v4715
        %v4844 = vpack.c.bf16 %v4732, %v4724
        %v4845 = vpack.c.bf16 %v4733, %v4725
        %v4846 = vpack.c.bf16 %v4734, %v4726
        %v4847 = vpack.c.bf16 %v4735, %v4727
        %v4848 = vpack.c.bf16 %v4736, %v4728
        %v4849 = vpack.c.bf16 %v4737, %v4729
        %v4850 = vpack.c.bf16 %v4738, %v4730
        %v4851 = vpack.c.bf16 %v4739, %v4731
        %v4852 = vpack.c.bf16 %v4748, %v4740
        %v4853 = vpack.c.bf16 %v4749, %v4741
        %v4854 = vpack.c.bf16 %v4750, %v4742
        %v4855 = vpack.c.bf16 %v4751, %v4743
        %v4856 = vpack.c.bf16 %v4752, %v4744
        %v4857 = vpack.c.bf16 %v4753, %v4745
        %v4858 = vpack.c.bf16 %v4754, %v4746
        %v4859 = vpack.c.bf16 %v4755, %v4747
        %v4860 = vpack.c.bf16 %v4764, %v4756
        %v4861 = vpack.c.bf16 %v4765, %v4757
        %v4862 = vpack.c.bf16 %v4766, %v4758
        %v4863 = vpack.c.bf16 %v4767, %v4759
        %v4864 = vpack.c.bf16 %v4768, %v4760
        %v4865 = vpack.c.bf16 %v4769, %v4761
        %v4866 = vpack.c.bf16 %v4770, %v4762
        %v4867 = vpack.c.bf16 %v4771, %v4763
        %v4868 = vpack.c.bf16 %v4780, %v4772
        %v4869 = vpack.c.bf16 %v4781, %v4773
        %v4870 = vpack.c.bf16 %v4782, %v4774
        %v4871 = vpack.c.bf16 %v4783, %v4775
        %v4872 = vpack.c.bf16 %v4784, %v4776
        %v4873 = vpack.c.bf16 %v4785, %v4777
        %v4874 = vpack.c.bf16 %v4786, %v4778
        %v4875 = vpack.c.bf16 %v4787, %v4779
        %v4876 = vpack.c.bf16 %v4796, %v4788
        %v4877 = vpack.c.bf16 %v4797, %v4789
        %v4878 = vpack.c.bf16 %v4798, %v4790
        %v4879 = vpack.c.bf16 %v4799, %v4791
        %v4880 = vpack.c.bf16 %v4800, %v4792
        %v4881 = vpack.c.bf16 %v4801, %v4793
        %v4882 = vpack.c.bf16 %v4802, %v4794
        %v4883 = vpack.c.bf16 %v4803, %v4795
        %v4884 = vpack.c.bf16 %v4812, %v4804
        %v4885 = vpack.c.bf16 %v4813, %v4805
        %v4886 = vpack.c.bf16 %v4814, %v4806
        %v4887 = vpack.c.bf16 %v4815, %v4807
        %v4888 = vpack.c.bf16 %v4816, %v4808
        %v4889 = vpack.c.bf16 %v4817, %v4809
        %v4890 = vpack.c.bf16 %v4818, %v4810
        %v4891 = vpack.c.bf16 %v4819, %v4811
        %v4892 = vpack.c.bf16 %v4828, %v4820
        %v4893 = vpack.c.bf16 %v4829, %v4821
        %v4894 = vpack.c.bf16 %v4830, %v4822
        %v4895 = vpack.c.bf16 %v4831, %v4823
        %v4896 = vpack.c.bf16 %v4832, %v4824
        %v4897 = vpack.c.bf16 %v4833, %v4825
        %v4898 = vpack.c.bf16 %v4834, %v4826
        %v4899 = vpack.c.bf16 %v4835, %v4827
        %v4964 = vunpack.c.l.b16 %v4836
        %v4965 = vunpack.c.l.b16 %v4837
        %v4966 = vunpack.c.l.b16 %v4838
        %v4967 = vunpack.c.l.b16 %v4839
        %v4968 = vunpack.c.l.b16 %v4840
        %v4969 = vunpack.c.l.b16 %v4841
        %v4970 = vunpack.c.l.b16 %v4842
        %v4971 = vunpack.c.l.b16 %v4843
        %v4972 = vunpack.c.h.b16 %v4836
        %v4973 = vunpack.c.h.b16 %v4837
        %v4974 = vunpack.c.h.b16 %v4838
        %v4975 = vunpack.c.h.b16 %v4839
        %v4976 = vunpack.c.h.b16 %v4840
        %v4977 = vunpack.c.h.b16 %v4841
        %v4978 = vunpack.c.h.b16 %v4842
        %v4979 = vunpack.c.h.b16 %v4843
        %v4980 = vunpack.c.l.b16 %v4844
        %v4981 = vunpack.c.l.b16 %v4845
        %v4982 = vunpack.c.l.b16 %v4846
        %v4983 = vunpack.c.l.b16 %v4847
        %v4984 = vunpack.c.l.b16 %v4848
        %v4985 = vunpack.c.l.b16 %v4849
        %v4986 = vunpack.c.l.b16 %v4850
        %v4987 = vunpack.c.l.b16 %v4851
        %v4988 = vunpack.c.h.b16 %v4844
        %v4989 = vunpack.c.h.b16 %v4845
        %v4990 = vunpack.c.h.b16 %v4846
        %v4991 = vunpack.c.h.b16 %v4847
        %v4992 = vunpack.c.h.b16 %v4848
        %v4993 = vunpack.c.h.b16 %v4849
        %v4994 = vunpack.c.h.b16 %v4850
        %v4995 = vunpack.c.h.b16 %v4851
        %v4996 = vunpack.c.l.b16 %v4852
        %v4997 = vunpack.c.l.b16 %v4853
        %v4998 = vunpack.c.l.b16 %v4854
        %v4999 = vunpack.c.l.b16 %v4855
        %v5000 = vunpack.c.l.b16 %v4856
        %v5001 = vunpack.c.l.b16 %v4857
        %v5002 = vunpack.c.l.b16 %v4858
        %v5003 = vunpack.c.l.b16 %v4859
        %v5004 = vunpack.c.h.b16 %v4852
        %v5005 = vunpack.c.h.b16 %v4853
        %v5006 = vunpack.c.h.b16 %v4854
        %v5007 = vunpack.c.h.b16 %v4855
        %v5008 = vunpack.c.h.b16 %v4856
        %v5009 = vunpack.c.h.b16 %v4857
        %v5010 = vunpack.c.h.b16 %v4858
        %v5011 = vunpack.c.h.b16 %v4859
        %v5012 = vunpack.c.l.b16 %v4860
        %v5013 = vunpack.c.l.b16 %v4861
        %v5014 = vunpack.c.l.b16 %v4862
        %v5015 = vunpack.c.l.b16 %v4863
        %v5016 = vunpack.c.l.b16 %v4864
        %v5017 = vunpack.c.l.b16 %v4865
        %v5018 = vunpack.c.l.b16 %v4866
        %v5019 = vunpack.c.l.b16 %v4867
        %v5020 = vunpack.c.h.b16 %v4860
        %v5021 = vunpack.c.h.b16 %v4861
        %v5022 = vunpack.c.h.b16 %v4862
        %v5023 = vunpack.c.h.b16 %v4863
        %v5024 = vunpack.c.h.b16 %v4864
        %v5025 = vunpack.c.h.b16 %v4865
        %v5026 = vunpack.c.h.b16 %v4866
        %v5027 = vunpack.c.h.b16 %v4867
        %v5028 = vunpack.c.l.b16 %v4868
        %v5029 = vunpack.c.l.b16 %v4869
        %v5030 = vunpack.c.l.b16 %v4870
        %v5031 = vunpack.c.l.b16 %v4871
        %v5032 = vunpack.c.l.b16 %v4872
        %v5033 = vunpack.c.l.b16 %v4873
        %v5034 = vunpack.c.l.b16 %v4874
        %v5035 = vunpack.c.l.b16 %v4875
        %v5036 = vunpack.c.h.b16 %v4868
        %v5037 = vunpack.c.h.b16 %v4869
        %v5038 = vunpack.c.h.b16 %v4870
        %v5039 = vunpack.c.h.b16 %v4871
        %v5040 = vunpack.c.h.b16 %v4872
        %v5041 = vunpack.c.h.b16 %v4873
        %v5042 = vunpack.c.h.b16 %v4874
        %v5043 = vunpack.c.h.b16 %v4875
        %v5044 = vunpack.c.l.b16 %v4876
        %v5045 = vunpack.c.l.b16 %v4877
        %v5046 = vunpack.c.l.b16 %v4878
        %v5047 = vunpack.c.l.b16 %v4879
        %v5048 = vunpack.c.l.b16 %v4880
        %v5049 = vunpack.c.l.b16 %v4881
        %v5050 = vunpack.c.l.b16 %v4882
        %v5051 = vunpack.c.l.b16 %v4883
        %v5052 = vunpack.c.h.b16 %v4876
        %v5053 = vunpack.c.h.b16 %v4877
        %v5054 = vunpack.c.h.b16 %v4878
        %v5055 = vunpack.c.h.b16 %v4879
        %v5056 = vunpack.c.h.b16 %v4880
        %v5057 = vunpack.c.h.b16 %v4881
        %v5058 = vunpack.c.h.b16 %v4882
        %v5059 = vunpack.c.h.b16 %v4883
        %v5060 = vunpack.c.l.b16 %v4884
        %v5061 = vunpack.c.l.b16 %v4885
        %v5062 = vunpack.c.l.b16 %v4886
        %v5063 = vunpack.c.l.b16 %v4887
        %v5064 = vunpack.c.l.b16 %v4888
        %v5065 = vunpack.c.l.b16 %v4889
        %v5066 = vunpack.c.l.b16 %v4890
        %v5067 = vunpack.c.l.b16 %v4891
        %v5068 = vunpack.c.h.b16 %v4884
        %v5069 = vunpack.c.h.b16 %v4885
        %v5070 = vunpack.c.h.b16 %v4886
        %v5071 = vunpack.c.h.b16 %v4887
        %v5072 = vunpack.c.h.b16 %v4888
        %v5073 = vunpack.c.h.b16 %v4889
        %v5074 = vunpack.c.h.b16 %v4890
        %v5075 = vunpack.c.h.b16 %v4891
        %v5076 = vunpack.c.l.b16 %v4892
        %v5077 = vunpack.c.l.b16 %v4893
        %v5078 = vunpack.c.l.b16 %v4894
        %v5079 = vunpack.c.l.b16 %v4895
        %v5080 = vunpack.c.l.b16 %v4896
        %v5081 = vunpack.c.l.b16 %v4897
        %v5082 = vunpack.c.l.b16 %v4898
        %v5083 = vunpack.c.l.b16 %v4899
        %v5084 = vunpack.c.h.b16 %v4892
        %v5085 = vunpack.c.h.b16 %v4893
        %v5086 = vunpack.c.h.b16 %v4894
        %v5087 = vunpack.c.h.b16 %v4895
        %v5088 = vunpack.c.h.b16 %v4896
        %v5089 = vunpack.c.h.b16 %v4897
        %v5090 = vunpack.c.h.b16 %v4898
        %v5091 = vunpack.c.h.b16 %v4899
        %v5092 = vpack.c.b16 %v4965, %v4964
        %v5093 = vpack.c.b16 %v4967, %v4966
        %v5094 = vpack.c.b16 %v4969, %v4968
        %v5095 = vpack.c.b16 %v4971, %v4970
        %v5096 = vpack.c.b16 %v4973, %v4972
        %v5097 = vpack.c.b16 %v4975, %v4974
        %v5098 = vpack.c.b16 %v4977, %v4976
        %v5099 = vpack.c.b16 %v4979, %v4978
        %v5100 = vpack.c.b16 %v4981, %v4980
        %v5101 = vpack.c.b16 %v4983, %v4982
        %v5102 = vpack.c.b16 %v4985, %v4984
        %v5103 = vpack.c.b16 %v4987, %v4986
        %v5104 = vpack.c.b16 %v4989, %v4988
        %v5105 = vpack.c.b16 %v4991, %v4990
        %v5106 = vpack.c.b16 %v4993, %v4992
        %v5107 = vpack.c.b16 %v4995, %v4994
        %v5108 = vpack.c.b16 %v4997, %v4996
        %v5109 = vpack.c.b16 %v4999, %v4998
        %v5110 = vpack.c.b16 %v5001, %v5000
        %v5111 = vpack.c.b16 %v5003, %v5002
        %v5112 = vpack.c.b16 %v5005, %v5004
        %v5113 = vpack.c.b16 %v5007, %v5006
        %v5114 = vpack.c.b16 %v5009, %v5008
        %v5115 = vpack.c.b16 %v5011, %v5010
        %v5116 = vpack.c.b16 %v5013, %v5012
        %v5117 = vpack.c.b16 %v5015, %v5014
        %v5118 = vpack.c.b16 %v5017, %v5016
        %v5119 = vpack.c.b16 %v5019, %v5018
        %v5120 = vpack.c.b16 %v5021, %v5020
        %v5121 = vpack.c.b16 %v5023, %v5022
        %v5122 = vpack.c.b16 %v5025, %v5024
        %v5123 = vpack.c.b16 %v5027, %v5026
        %v5124 = vpack.c.b16 %v5029, %v5028
        %v5125 = vpack.c.b16 %v5031, %v5030
        %v5126 = vpack.c.b16 %v5033, %v5032
        %v5127 = vpack.c.b16 %v5035, %v5034
        %v5128 = vpack.c.b16 %v5037, %v5036
        %v5129 = vpack.c.b16 %v5039, %v5038
        %v5130 = vpack.c.b16 %v5041, %v5040
        %v5131 = vpack.c.b16 %v5043, %v5042
        %v5132 = vpack.c.b16 %v5045, %v5044
        %v5133 = vpack.c.b16 %v5047, %v5046
        %v5134 = vpack.c.b16 %v5049, %v5048
        %v5135 = vpack.c.b16 %v5051, %v5050
        %v5136 = vpack.c.b16 %v5053, %v5052
        %v5137 = vpack.c.b16 %v5055, %v5054
        %v5138 = vpack.c.b16 %v5057, %v5056
        %v5139 = vpack.c.b16 %v5059, %v5058
        %v5140 = vpack.c.b16 %v5061, %v5060
        %v5141 = vpack.c.b16 %v5063, %v5062
        %v5142 = vpack.c.b16 %v5065, %v5064
        %v5143 = vpack.c.b16 %v5067, %v5066
        %v5144 = vpack.c.b16 %v5069, %v5068
        %v5145 = vpack.c.b16 %v5071, %v5070
        %v5146 = vpack.c.b16 %v5073, %v5072
        %v5147 = vpack.c.b16 %v5075, %v5074
        %v5148 = vpack.c.b16 %v5077, %v5076
        %v5149 = vpack.c.b16 %v5079, %v5078
        %v5150 = vpack.c.b16 %v5081, %v5080
        %v5151 = vpack.c.b16 %v5083, %v5082
        %v5152 = vpack.c.b16 %v5085, %v5084
        %v5153 = vpack.c.b16 %v5087, %v5086
        %v5154 = vpack.c.b16 %v5089, %v5088
        %v5155 = vpack.c.b16 %v5091, %v5090
        %5220 = vst [vmem:[%s747] sm:$0xff] %v5092
        %5221 = vst [vmem:[%s747 + $0x8] sm:$0xff] %v5093
        %5222 = vst [vmem:[%s747 + $0x10] sm:$0xff] %v5094
        %5223 = vst [vmem:[%s747 + $0x18] sm:$0xff] %v5095
        %5224 = vst [vmem:[%s747 + $0x20] sm:$0xff] %v5096
        %5225 = vst [vmem:[%s747 + $0x28] sm:$0xff] %v5097
        %5226 = vst [vmem:[%s747 + $0x30] sm:$0xff] %v5098
        %5227 = vst [vmem:[%s747 + $0x38] sm:$0xff] %v5099
        %5228 = vst [vmem:[%s747 + $0x40] sm:$0xff] %v5100
        %5229 = vst [vmem:[%s747 + $0x48] sm:$0xff] %v5101
        %5230 = vst [vmem:[%s747 + $0x50] sm:$0xff] %v5102
        %5231 = vst [vmem:[%s747 + $0x58] sm:$0xff] %v5103
        %5232 = vst [vmem:[%s747 + $0x60] sm:$0xff] %v5104
        %5233 = vst [vmem:[%s747 + $0x68] sm:$0xff] %v5105
        %5234 = vst [vmem:[%s747 + $0x70] sm:$0xff] %v5106
        %5235 = vst [vmem:[%s747 + $0x78] sm:$0xff] %v5107
        %5236 = vst [vmem:[%s747 + $0x80] sm:$0xff] %v5108
        %5237 = vst [vmem:[%s747 + $0x88] sm:$0xff] %v5109
        %5238 = vst [vmem:[%s747 + $0x90] sm:$0xff] %v5110
        %5239 = vst [vmem:[%s747 + $0x98] sm:$0xff] %v5111
        %5240 = vst [vmem:[%s747 + $0xa0] sm:$0xff] %v5112
        %5241 = vst [vmem:[%s747 + $0xa8] sm:$0xff] %v5113
        %5242 = vst [vmem:[%s747 + $0xb0] sm:$0xff] %v5114
        %5243 = vst [vmem:[%s747 + $0xb8] sm:$0xff] %v5115
        %5244 = vst [vmem:[%s747 + $0xc0] sm:$0xff] %v5116
        %5245 = vst [vmem:[%s747 + $0xc8] sm:$0xff] %v5117
        %5246 = vst [vmem:[%s747 + $0xd0] sm:$0xff] %v5118
        %5247 = vst [vmem:[%s747 + $0xd8] sm:$0xff] %v5119
        %5248 = vst [vmem:[%s747 + $0xe0] sm:$0xff] %v5120
        %5249 = vst [vmem:[%s747 + $0xe8] sm:$0xff] %v5121
        %5250 = vst [vmem:[%s747 + $0xf0] sm:$0xff] %v5122
        %5251 = vst [vmem:[%s747 + $0xf8] sm:$0xff] %v5123
        %5252 = vst [vmem:[%s747 + $0x100] sm:$0xff] %v5124
        %5253 = vst [vmem:[%s747 + $0x108] sm:$0xff] %v5125
        %5254 = vst [vmem:[%s747 + $0x110] sm:$0xff] %v5126
        %5255 = vst [vmem:[%s747 + $0x118] sm:$0xff] %v5127
        %5256 = vst [vmem:[%s747 + $0x120] sm:$0xff] %v5128
        %5257 = vst [vmem:[%s747 + $0x128] sm:$0xff] %v5129
        %5258 = vst [vmem:[%s747 + $0x130] sm:$0xff] %v5130
        %5259 = vst [vmem:[%s747 + $0x138] sm:$0xff] %v5131
        %5260 = vst [vmem:[%s747 + $0x140] sm:$0xff] %v5132
        %5261 = vst [vmem:[%s747 + $0x148] sm:$0xff] %v5133
        %5262 = vst [vmem:[%s747 + $0x150] sm:$0xff] %v5134
        %5263 = vst [vmem:[%s747 + $0x158] sm:$0xff] %v5135
        %5264 = vst [vmem:[%s747 + $0x160] sm:$0xff] %v5136
        %5265 = vst [vmem:[%s747 + $0x168] sm:$0xff] %v5137
        %5266 = vst [vmem:[%s747 + $0x170] sm:$0xff] %v5138
        %5267 = vst [vmem:[%s747 + $0x178] sm:$0xff] %v5139
        %5268 = vst [vmem:[%s747 + $0x180] sm:$0xff] %v5140
        %5269 = vst [vmem:[%s747 + $0x188] sm:$0xff] %v5141
        %5270 = vst [vmem:[%s747 + $0x190] sm:$0xff] %v5142
        %5271 = vst [vmem:[%s747 + $0x198] sm:$0xff] %v5143
        %5272 = vst [vmem:[%s747 + $0x1a0] sm:$0xff] %v5144
        %5273 = vst [vmem:[%s747 + $0x1a8] sm:$0xff] %v5145
        %5274 = vst [vmem:[%s747 + $0x1b0] sm:$0xff] %v5146
        %5275 = vst [vmem:[%s747 + $0x1b8] sm:$0xff] %v5147
        %5276 = vst [vmem:[%s747 + $0x1c0] sm:$0xff] %v5148
        %5277 = vst [vmem:[%s747 + $0x1c8] sm:$0xff] %v5149
        %5278 = vst [vmem:[%s747 + $0x1d0] sm:$0xff] %v5150
        %5279 = vst [vmem:[%s747 + $0x1d8] sm:$0xff] %v5151
        %5280 = vst [vmem:[%s747 + $0x1e0] sm:$0xff] %v5152
        %5281 = vst [vmem:[%s747 + $0x1e8] sm:$0xff] %v5153
        %5282 = vst [vmem:[%s747 + $0x1f0] sm:$0xff] %v5154
        %5283 = vst [vmem:[%s747 + $0x1f8] sm:$0xff] %v5155
        %v5284 = vmax.f32 %v4708, %v4716
        %v5285 = vmax.f32 %v5284, %v4724
        %v5286 = vmax.f32 %v5285, %v4732
        %v5287 = vmax.f32 %v5286, %v4740
        %v5288 = vmax.f32 %v5287, %v4748
        %v5289 = vmax.f32 %v5288, %v4756
        %v5290 = vmax.f32 %v5289, %v4764
        %v5291 = vmax.f32 %v5290, %v4772
        %v5292 = vmax.f32 %v5291, %v4780
        %v5293 = vmax.f32 %v5292, %v4788
        %v5294 = vmax.f32 %v5293, %v4796
        %v5295 = vmax.f32 %v5294, %v4804
        %v5296 = vmax.f32 %v5295, %v4812
        %v5297 = vmax.f32 %v5296, %v4820
        %v5298 = vmax.f32 %v5297, %v4828
        %v5299 = vrot.slane %v5298, 4
        %v5300 = vmax.f32 %v5298, %v5299
        %v5301 = vrot.slane %v5300, 2
        %v5302 = vmax.f32 %v5300, %v5301
        %v5303 = vrot.slane %v5302, 1
        %v5304 = vmax.f32 %v5302, %v5303
        %v5305 = vmax.f32 %v4709, %v4717
        %v5306 = vmax.f32 %v5305, %v4725
        %v5307 = vmax.f32 %v5306, %v4733
        %v5308 = vmax.f32 %v5307, %v4741
        %v5309 = vmax.f32 %v5308, %v4749
        %v5310 = vmax.f32 %v5309, %v4757
        %v5311 = vmax.f32 %v5310, %v4765
        %v5312 = vmax.f32 %v5311, %v4773
        %v5313 = vmax.f32 %v5312, %v4781
        %v5314 = vmax.f32 %v5313, %v4789
        %v5315 = vmax.f32 %v5314, %v4797
        %v5316 = vmax.f32 %v5315, %v4805
        %v5317 = vmax.f32 %v5316, %v4813
        %v5318 = vmax.f32 %v5317, %v4821
        %v5319 = vmax.f32 %v5318, %v4829
        %v5320 = vrot.slane %v5319, 4
        %v5321 = vmax.f32 %v5319, %v5320
        %v5322 = vrot.slane %v5321, 2
        %v5323 = vmax.f32 %v5321, %v5322
        %v5324 = vrot.slane %v5323, 1
        %v5325 = vmax.f32 %v5323, %v5324
        %v5326 = vmax.f32 %v4710, %v4718
        %v5327 = vmax.f32 %v5326, %v4726
        %v5328 = vmax.f32 %v5327, %v4734
        %v5329 = vmax.f32 %v5328, %v4742
        %v5330 = vmax.f32 %v5329, %v4750
        %v5331 = vmax.f32 %v5330, %v4758
        %v5332 = vmax.f32 %v5331, %v4766
        %v5333 = vmax.f32 %v5332, %v4774
        %v5334 = vmax.f32 %v5333, %v4782
        %v5335 = vmax.f32 %v5334, %v4790
        %v5336 = vmax.f32 %v5335, %v4798
        %v5337 = vmax.f32 %v5336, %v4806
        %v5338 = vmax.f32 %v5337, %v4814
        %v5339 = vmax.f32 %v5338, %v4822
        %v5340 = vmax.f32 %v5339, %v4830
        %v5341 = vrot.slane %v5340, 4
        %v5342 = vmax.f32 %v5340, %v5341
        %v5343 = vrot.slane %v5342, 2
        %v5344 = vmax.f32 %v5342, %v5343
        %v5345 = vrot.slane %v5344, 1
        %v5346 = vmax.f32 %v5344, %v5345
        %v5347 = vmax.f32 %v4711, %v4719
        %v5348 = vmax.f32 %v5347, %v4727
        %v5349 = vmax.f32 %v5348, %v4735
        %v5350 = vmax.f32 %v5349, %v4743
        %v5351 = vmax.f32 %v5350, %v4751
        %v5352 = vmax.f32 %v5351, %v4759
        %v5353 = vmax.f32 %v5352, %v4767
        %v5354 = vmax.f32 %v5353, %v4775
        %v5355 = vmax.f32 %v5354, %v4783
        %v5356 = vmax.f32 %v5355, %v4791
        %v5357 = vmax.f32 %v5356, %v4799
        %v5358 = vmax.f32 %v5357, %v4807
        %v5359 = vmax.f32 %v5358, %v4815
        %v5360 = vmax.f32 %v5359, %v4823
        %v5361 = vmax.f32 %v5360, %v4831
        %v5362 = vrot.slane %v5361, 4
        %v5363 = vmax.f32 %v5361, %v5362
        %v5364 = vrot.slane %v5363, 2
        %v5365 = vmax.f32 %v5363, %v5364
        %v5366 = vrot.slane %v5365, 1
        %v5367 = vmax.f32 %v5365, %v5366
        %v5368 = vmax.f32 %v4712, %v4720
        %v5369 = vmax.f32 %v5368, %v4728
        %v5370 = vmax.f32 %v5369, %v4736
        %v5371 = vmax.f32 %v5370, %v4744
        %v5372 = vmax.f32 %v5371, %v4752
        %v5373 = vmax.f32 %v5372, %v4760
        %v5374 = vmax.f32 %v5373, %v4768
        %v5375 = vmax.f32 %v5374, %v4776
        %v5376 = vmax.f32 %v5375, %v4784
        %v5377 = vmax.f32 %v5376, %v4792
        %v5378 = vmax.f32 %v5377, %v4800
        %v5379 = vmax.f32 %v5378, %v4808
        %v5380 = vmax.f32 %v5379, %v4816
        %v5381 = vmax.f32 %v5380, %v4824
        %v5382 = vmax.f32 %v5381, %v4832
        %v5383 = vrot.slane %v5382, 4
        %v5384 = vmax.f32 %v5382, %v5383
        %v5385 = vrot.slane %v5384, 2
        %v5386 = vmax.f32 %v5384, %v5385
        %v5387 = vrot.slane %v5386, 1
        %v5388 = vmax.f32 %v5386, %v5387
        %v5389 = vmax.f32 %v4713, %v4721
        %v5390 = vmax.f32 %v5389, %v4729
        %v5391 = vmax.f32 %v5390, %v4737
        %v5392 = vmax.f32 %v5391, %v4745
        %v5393 = vmax.f32 %v5392, %v4753
        %v5394 = vmax.f32 %v5393, %v4761
        %v5395 = vmax.f32 %v5394, %v4769
        %v5396 = vmax.f32 %v5395, %v4777
        %v5397 = vmax.f32 %v5396, %v4785
        %v5398 = vmax.f32 %v5397, %v4793
        %v5399 = vmax.f32 %v5398, %v4801
        %v5400 = vmax.f32 %v5399, %v4809
        %v5401 = vmax.f32 %v5400, %v4817
        %v5402 = vmax.f32 %v5401, %v4825
        %v5403 = vmax.f32 %v5402, %v4833
        %v5404 = vrot.slane %v5403, 4
        %v5405 = vmax.f32 %v5403, %v5404
        %v5406 = vrot.slane %v5405, 2
        %v5407 = vmax.f32 %v5405, %v5406
        %v5408 = vrot.slane %v5407, 1
        %v5409 = vmax.f32 %v5407, %v5408
        %v5410 = vmax.f32 %v4714, %v4722
        %v5411 = vmax.f32 %v5410, %v4730
        %v5412 = vmax.f32 %v5411, %v4738
        %v5413 = vmax.f32 %v5412, %v4746
        %v5414 = vmax.f32 %v5413, %v4754
        %v5415 = vmax.f32 %v5414, %v4762
        %v5416 = vmax.f32 %v5415, %v4770
        %v5417 = vmax.f32 %v5416, %v4778
        %v5418 = vmax.f32 %v5417, %v4786
        %v5419 = vmax.f32 %v5418, %v4794
        %v5420 = vmax.f32 %v5419, %v4802
        %v5421 = vmax.f32 %v5420, %v4810
        %v5422 = vmax.f32 %v5421, %v4818
        %v5423 = vmax.f32 %v5422, %v4826
        %v5424 = vmax.f32 %v5423, %v4834
        %v5425 = vrot.slane %v5424, 4
        %v5426 = vmax.f32 %v5424, %v5425
        %v5427 = vrot.slane %v5426, 2
        %v5428 = vmax.f32 %v5426, %v5427
        %v5429 = vrot.slane %v5428, 1
        %v5430 = vmax.f32 %v5428, %v5429
        %v5431 = vmax.f32 %v4715, %v4723
        %v5432 = vmax.f32 %v5431, %v4731
        %v5433 = vmax.f32 %v5432, %v4739
        %v5434 = vmax.f32 %v5433, %v4747
        %v5435 = vmax.f32 %v5434, %v4755
        %v5436 = vmax.f32 %v5435, %v4763
        %v5437 = vmax.f32 %v5436, %v4771
        %v5438 = vmax.f32 %v5437, %v4779
        %v5439 = vmax.f32 %v5438, %v4787
        %v5440 = vmax.f32 %v5439, %v4795
        %v5441 = vmax.f32 %v5440, %v4803
        %v5442 = vmax.f32 %v5441, %v4811
        %v5443 = vmax.f32 %v5442, %v4819
        %v5444 = vmax.f32 %v5443, %v4827
        %v5445 = vmax.f32 %v5444, %v4835
        %v5446 = vrot.slane %v5445, 4
        %v5447 = vmax.f32 %v5445, %v5446
        %v5448 = vrot.slane %v5447, 2
        %v5449 = vmax.f32 %v5447, %v5448
        %v5450 = vrot.slane %v5449, 1
        %v5451 = vmax.f32 %v5449, %v5450
        %v5452 = vadd.f32 %v4708, %v4716
        %v5453 = vadd.f32 %v5452, %v4724
        %v5454 = vadd.f32 %v5453, %v4732
        %v5455 = vadd.f32 %v5454, %v4740
        %v5456 = vadd.f32 %v5455, %v4748
        %v5457 = vadd.f32 %v5456, %v4756
        %v5458 = vadd.f32 %v5457, %v4764
        %v5459 = vadd.f32 %v5458, %v4772
        %v5460 = vadd.f32 %v5459, %v4780
        %v5461 = vadd.f32 %v5460, %v4788
        %v5462 = vadd.f32 %v5461, %v4796
        %v5463 = vadd.f32 %v5462, %v4804
        %v5464 = vadd.f32 %v5463, %v4812
        %v5465 = vadd.f32 %v5464, %v4820
        %v5466 = vadd.f32 %v5465, %v4828
        %v5467 = vrot.slane %v5466, 4
        %v5468 = vadd.f32 %v5466, %v5467
        %v5469 = vrot.slane %v5468, 2
        %v5470 = vadd.f32 %v5468, %v5469
        %v5471 = vrot.slane %v5470, 1
        %v5472 = vadd.f32 %v5470, %v5471
        %v5473 = vadd.f32 %v4709, %v4717
        %v5474 = vadd.f32 %v5473, %v4725
        %v5475 = vadd.f32 %v5474, %v4733
        %v5476 = vadd.f32 %v5475, %v4741
        %v5477 = vadd.f32 %v5476, %v4749
        %v5478 = vadd.f32 %v5477, %v4757
        %v5479 = vadd.f32 %v5478, %v4765
        %v5480 = vadd.f32 %v5479, %v4773
        %v5481 = vadd.f32 %v5480, %v4781
        %v5482 = vadd.f32 %v5481, %v4789
        %v5483 = vadd.f32 %v5482, %v4797
        %v5484 = vadd.f32 %v5483, %v4805
        %v5485 = vadd.f32 %v5484, %v4813
        %v5486 = vadd.f32 %v5485, %v4821
        %v5487 = vadd.f32 %v5486, %v4829
        %v5488 = vrot.slane %v5487, 4
        %v5489 = vadd.f32 %v5487, %v5488
        %v5490 = vrot.slane %v5489, 2
        %v5491 = vadd.f32 %v5489, %v5490
        %v5492 = vrot.slane %v5491, 1
        %v5493 = vadd.f32 %v5491, %v5492
        %v5494 = vadd.f32 %v4710, %v4718
        %v5495 = vadd.f32 %v5494, %v4726
        %v5496 = vadd.f32 %v5495, %v4734
        %v5497 = vadd.f32 %v5496, %v4742
        %v5498 = vadd.f32 %v5497, %v4750
        %v5499 = vadd.f32 %v5498, %v4758
        %v5500 = vadd.f32 %v5499, %v4766
        %v5501 = vadd.f32 %v5500, %v4774
        %v5502 = vadd.f32 %v5501, %v4782
        %v5503 = vadd.f32 %v5502, %v4790
        %v5504 = vadd.f32 %v5503, %v4798
        %v5505 = vadd.f32 %v5504, %v4806
        %v5506 = vadd.f32 %v5505, %v4814
        %v5507 = vadd.f32 %v5506, %v4822
        %v5508 = vadd.f32 %v5507, %v4830
        %v5509 = vrot.slane %v5508, 4
        %v5510 = vadd.f32 %v5508, %v5509
        %v5511 = vrot.slane %v5510, 2
        %v5512 = vadd.f32 %v5510, %v5511
        %v5513 = vrot.slane %v5512, 1
        %v5514 = vadd.f32 %v5512, %v5513
        %v5515 = vadd.f32 %v4711, %v4719
        %v5516 = vadd.f32 %v5515, %v4727
        %v5517 = vadd.f32 %v5516, %v4735
        %v5518 = vadd.f32 %v5517, %v4743
        %v5519 = vadd.f32 %v5518, %v4751
        %v5520 = vadd.f32 %v5519, %v4759
        %v5521 = vadd.f32 %v5520, %v4767
        %v5522 = vadd.f32 %v5521, %v4775
        %v5523 = vadd.f32 %v5522, %v4783
        %v5524 = vadd.f32 %v5523, %v4791
        %v5525 = vadd.f32 %v5524, %v4799
        %v5526 = vadd.f32 %v5525, %v4807
        %v5527 = vadd.f32 %v5526, %v4815
        %v5528 = vadd.f32 %v5527, %v4823
        %v5529 = vadd.f32 %v5528, %v4831
        %v5530 = vrot.slane %v5529, 4
        %v5531 = vadd.f32 %v5529, %v5530
        %v5532 = vrot.slane %v5531, 2
        %v5533 = vadd.f32 %v5531, %v5532
        %v5534 = vrot.slane %v5533, 1
        %v5535 = vadd.f32 %v5533, %v5534
        %v5536 = vadd.f32 %v4712, %v4720
        %v5537 = vadd.f32 %v5536, %v4728
        %v5538 = vadd.f32 %v5537, %v4736
        %v5539 = vadd.f32 %v5538, %v4744
        %v5540 = vadd.f32 %v5539, %v4752
        %v5541 = vadd.f32 %v5540, %v4760
        %v5542 = vadd.f32 %v5541, %v4768
        %v5543 = vadd.f32 %v5542, %v4776
        %v5544 = vadd.f32 %v5543, %v4784
        %v5545 = vadd.f32 %v5544, %v4792
        %v5546 = vadd.f32 %v5545, %v4800
        %v5547 = vadd.f32 %v5546, %v4808
        %v5548 = vadd.f32 %v5547, %v4816
        %v5549 = vadd.f32 %v5548, %v4824
        %v5550 = vadd.f32 %v5549, %v4832
        %v5551 = vrot.slane %v5550, 4
        %v5552 = vadd.f32 %v5550, %v5551
        %v5553 = vrot.slane %v5552, 2
        %v5554 = vadd.f32 %v5552, %v5553
        %v5555 = vrot.slane %v5554, 1
        %v5556 = vadd.f32 %v5554, %v5555
        %v5557 = vadd.f32 %v4713, %v4721
        %v5558 = vadd.f32 %v5557, %v4729
        %v5559 = vadd.f32 %v5558, %v4737
        %v5560 = vadd.f32 %v5559, %v4745
        %v5561 = vadd.f32 %v5560, %v4753
        %v5562 = vadd.f32 %v5561, %v4761
        %v5563 = vadd.f32 %v5562, %v4769
        %v5564 = vadd.f32 %v5563, %v4777
        %v5565 = vadd.f32 %v5564, %v4785
        %v5566 = vadd.f32 %v5565, %v4793
        %v5567 = vadd.f32 %v5566, %v4801
        %v5568 = vadd.f32 %v5567, %v4809
        %v5569 = vadd.f32 %v5568, %v4817
        %v5570 = vadd.f32 %v5569, %v4825
        %v5571 = vadd.f32 %v5570, %v4833
        %v5572 = vrot.slane %v5571, 4
        %v5573 = vadd.f32 %v5571, %v5572
        %v5574 = vrot.slane %v5573, 2
        %v5575 = vadd.f32 %v5573, %v5574
        %v5576 = vrot.slane %v5575, 1
        %v5577 = vadd.f32 %v5575, %v5576
        %v5578 = vadd.f32 %v4714, %v4722
        %v5579 = vadd.f32 %v5578, %v4730
        %v5580 = vadd.f32 %v5579, %v4738
        %v5581 = vadd.f32 %v5580, %v4746
        %v5582 = vadd.f32 %v5581, %v4754
        %v5583 = vadd.f32 %v5582, %v4762
        %v5584 = vadd.f32 %v5583, %v4770
        %v5585 = vadd.f32 %v5584, %v4778
        %v5586 = vadd.f32 %v5585, %v4786
        %v5587 = vadd.f32 %v5586, %v4794
        %v5588 = vadd.f32 %v5587, %v4802
        %v5589 = vadd.f32 %v5588, %v4810
        %v5590 = vadd.f32 %v5589, %v4818
        %v5591 = vadd.f32 %v5590, %v4826
        %v5592 = vadd.f32 %v5591, %v4834
        %v5593 = vrot.slane %v5592, 4
        %v5594 = vadd.f32 %v5592, %v5593
        %v5595 = vrot.slane %v5594, 2
        %v5596 = vadd.f32 %v5594, %v5595
        %v5597 = vrot.slane %v5596, 1
        %v5598 = vadd.f32 %v5596, %v5597
        %v5599 = vadd.f32 %v4715, %v4723
        %v5600 = vadd.f32 %v5599, %v4731
        %v5601 = vadd.f32 %v5600, %v4739
        %v5602 = vadd.f32 %v5601, %v4747
        %v5603 = vadd.f32 %v5602, %v4755
        %v5604 = vadd.f32 %v5603, %v4763
        %v5605 = vadd.f32 %v5604, %v4771
        %v5606 = vadd.f32 %v5605, %v4779
        %v5607 = vadd.f32 %v5606, %v4787
        %v5608 = vadd.f32 %v5607, %v4795
        %v5609 = vadd.f32 %v5608, %v4803
        %v5610 = vadd.f32 %v5609, %v4811
        %v5611 = vadd.f32 %v5610, %v4819
        %v5612 = vadd.f32 %v5611, %v4827
        %v5613 = vadd.f32 %v5612, %v4835
        %v5614 = vrot.slane %v5613, 4
        %v5615 = vadd.f32 %v5613, %v5614
        %v5616 = vrot.slane %v5615, 2
        %v5617 = vadd.f32 %v5615, %v5616
        %v5618 = vrot.slane %v5617, 1
        %v5619 = vadd.f32 %v5617, %v5618
        %p5620 = scmp.eq.s32.totalorder %s47, 0
        // Predicated region
        $region117: #{tpu_custom_call.1} parent=95 // pred_check
          %p5621 = pneg %p5620
        $region118: #{tpu_custom_call.1} parent=95 // pred_check_branch
          %5623 = sbr.rel (%p5621) target = $region120
        $region119: #{tpu_custom_call.1} parent=95 // pred_region
          %v5632 = vcombine.low %v5304, %v5325
          %v5633 = vcombine.low %v5346, %v5367
          %v5634 = vcombine.low %v5388, %v5409
          %v5635 = vcombine.low %v5430, %v5451
          %v5637 = vunpack.c.l.s4 1966171168
          %v5638 = vunpack.c.0.s8 %v5637
          %v5639 = vlaneseq
          %v5640 = vshrl.u32 %v5639, 7
          %v5641 = vsub.s32 %v5638, %v5640
          %v5642 = vrot.slane %v5632, %v5641
          %v5644 = vunpack.c.l.s4 1966171168
          %v5645 = vunpack.c.0.s8 %v5644
          %v5646 = vlaneseq
          %v5647 = vshrl.u32 %v5646, 7
          %v5648 = vsub.s32 %v5645, %v5647
          %v5649 = vrot.slane %v5633, %v5648
          %v5651 = vunpack.c.l.s4 1966171168
          %v5652 = vunpack.c.0.s8 %v5651
          %v5653 = vlaneseq
          %v5654 = vshrl.u32 %v5653, 7
          %v5655 = vsub.s32 %v5652, %v5654
          %v5656 = vrot.slane %v5634, %v5655
          %v5658 = vunpack.c.l.s4 1966171168
          %v5659 = vunpack.c.0.s8 %v5658
          %v5660 = vlaneseq
          %v5661 = vshrl.u32 %v5660, 7
          %v5662 = vsub.s32 %v5659, %v5661
          %v5663 = vrot.slane %v5635, %v5662
          %v5664 = vcombine.low %v5642, %v5649
          %v5665 = vcombine.low %v5656, %v5663
          %v5667 = vunpack.c.l.s4 1966171168
          %v5668 = vunpack.c.0.s8 %v5667
          %v5669 = vlaneseq
          %v5670 = vshrl.u32 %v5669, 7
          %v5671 = vsub.s32 %v5668, %v5670
          %v5672 = vrot.slane %v5664, %v5671
          %v5674 = vunpack.c.l.s4 1966171168
          %v5675 = vunpack.c.0.s8 %v5674
          %v5676 = vlaneseq
          %v5677 = vshrl.u32 %v5676, 7
          %v5678 = vsub.s32 %v5675, %v5677
          %v5679 = vrot.slane %v5665, %v5678
          %v5680 = vcombine.low %v5672, %v5679
          %5682 = vst [vmem:[%s754] sm:$0xff] %v5680
          %v5691 = vcombine.low %v5472, %v5493
          %v5692 = vcombine.low %v5514, %v5535
          %v5693 = vcombine.low %v5556, %v5577
          %v5694 = vcombine.low %v5598, %v5619
          %v5696 = vunpack.c.l.s4 1966171168
          %v5697 = vunpack.c.0.s8 %v5696
          %v5698 = vlaneseq
          %v5699 = vshrl.u32 %v5698, 7
          %v5700 = vsub.s32 %v5697, %v5699
          %v5701 = vrot.slane %v5691, %v5700
          %v5703 = vunpack.c.l.s4 1966171168
          %v5704 = vunpack.c.0.s8 %v5703
          %v5705 = vlaneseq
          %v5706 = vshrl.u32 %v5705, 7
          %v5707 = vsub.s32 %v5704, %v5706
          %v5708 = vrot.slane %v5692, %v5707
          %v5710 = vunpack.c.l.s4 1966171168
          %v5711 = vunpack.c.0.s8 %v5710
          %v5712 = vlaneseq
          %v5713 = vshrl.u32 %v5712, 7
          %v5714 = vsub.s32 %v5711, %v5713
          %v5715 = vrot.slane %v5693, %v5714
          %v5717 = vunpack.c.l.s4 1966171168
          %v5718 = vunpack.c.0.s8 %v5717
          %v5719 = vlaneseq
          %v5720 = vshrl.u32 %v5719, 7
          %v5721 = vsub.s32 %v5718, %v5720
          %v5722 = vrot.slane %v5694, %v5721
          %v5723 = vcombine.low %v5701, %v5708
          %v5724 = vcombine.low %v5715, %v5722
          %v5726 = vunpack.c.l.s4 1966171168
          %v5727 = vunpack.c.0.s8 %v5726
          %v5728 = vlaneseq
          %v5729 = vshrl.u32 %v5728, 7
          %v5730 = vsub.s32 %v5727, %v5729
          %v5731 = vrot.slane %v5723, %v5730
          %v5733 = vunpack.c.l.s4 1966171168
          %v5734 = vunpack.c.0.s8 %v5733
          %v5735 = vlaneseq
          %v5736 = vshrl.u32 %v5735, 7
          %v5737 = vsub.s32 %v5734, %v5736
          %v5738 = vrot.slane %v5724, %v5737
          %v5739 = vcombine.low %v5731, %v5738
          %5741 = vst [vmem:[%s761] sm:$0xff] %v5739
        $region120: #{tpu_custom_call.1} parent=95 // pred_fallthru
          _
        %p5742 = scmp.gt.s32.totalorder %s47, 0
        // Predicated region
        $region121: #{tpu_custom_call.1} parent=95 // pred_check
          %p5743 = pneg %p5742
        $region122: #{tpu_custom_call.1} parent=95 // pred_check_branch
          %5745 = sbr.rel (%p5743) target = $region124
        $region123: #{tpu_custom_call.1} parent=95 // pred_region
          %v5746 = vld [vmem:[%s754] sm:$0xff]
          %v5755 = vcombine.low %v5304, %v5325
          %v5756 = vcombine.low %v5346, %v5367
          %v5757 = vcombine.low %v5388, %v5409
          %v5758 = vcombine.low %v5430, %v5451
          %v5760 = vunpack.c.l.s4 1966171168
          %v5761 = vunpack.c.0.s8 %v5760
          %v5762 = vlaneseq
          %v5763 = vshrl.u32 %v5762, 7
          %v5764 = vsub.s32 %v5761, %v5763
          %v5765 = vrot.slane %v5755, %v5764
          %v5767 = vunpack.c.l.s4 1966171168
          %v5768 = vunpack.c.0.s8 %v5767
          %v5769 = vlaneseq
          %v5770 = vshrl.u32 %v5769, 7
          %v5771 = vsub.s32 %v5768, %v5770
          %v5772 = vrot.slane %v5756, %v5771
          %v5774 = vunpack.c.l.s4 1966171168
          %v5775 = vunpack.c.0.s8 %v5774
          %v5776 = vlaneseq
          %v5777 = vshrl.u32 %v5776, 7
          %v5778 = vsub.s32 %v5775, %v5777
          %v5779 = vrot.slane %v5757, %v5778
          %v5781 = vunpack.c.l.s4 1966171168
          %v5782 = vunpack.c.0.s8 %v5781
          %v5783 = vlaneseq
          %v5784 = vshrl.u32 %v5783, 7
          %v5785 = vsub.s32 %v5782, %v5784
          %v5786 = vrot.slane %v5758, %v5785
          %v5787 = vcombine.low %v5765, %v5772
          %v5788 = vcombine.low %v5779, %v5786
          %v5790 = vunpack.c.l.s4 1966171168
          %v5791 = vunpack.c.0.s8 %v5790
          %v5792 = vlaneseq
          %v5793 = vshrl.u32 %v5792, 7
          %v5794 = vsub.s32 %v5791, %v5793
          %v5795 = vrot.slane %v5787, %v5794
          %v5797 = vunpack.c.l.s4 1966171168
          %v5798 = vunpack.c.0.s8 %v5797
          %v5799 = vlaneseq
          %v5800 = vshrl.u32 %v5799, 7
          %v5801 = vsub.s32 %v5798, %v5800
          %v5802 = vrot.slane %v5788, %v5801
          %v5803 = vcombine.low %v5795, %v5802
          %v5805 = vmax.f32 %v5746, %v5803
          %5806 = vst [vmem:[%s754] sm:$0xff] %v5805
          %v5807 = vld [vmem:[%s761] sm:$0xff]
          %v5816 = vcombine.low %v5472, %v5493
          %v5817 = vcombine.low %v5514, %v5535
          %v5818 = vcombine.low %v5556, %v5577
          %v5819 = vcombine.low %v5598, %v5619
          %v5821 = vunpack.c.l.s4 1966171168
          %v5822 = vunpack.c.0.s8 %v5821
          %v5823 = vlaneseq
          %v5824 = vshrl.u32 %v5823, 7
          %v5825 = vsub.s32 %v5822, %v5824
          %v5826 = vrot.slane %v5816, %v5825
          %v5828 = vunpack.c.l.s4 1966171168
          %v5829 = vunpack.c.0.s8 %v5828
          %v5830 = vlaneseq
          %v5831 = vshrl.u32 %v5830, 7
          %v5832 = vsub.s32 %v5829, %v5831
          %v5833 = vrot.slane %v5817, %v5832
          %v5835 = vunpack.c.l.s4 1966171168
          %v5836 = vunpack.c.0.s8 %v5835
          %v5837 = vlaneseq
          %v5838 = vshrl.u32 %v5837, 7
          %v5839 = vsub.s32 %v5836, %v5838
          %v5840 = vrot.slane %v5818, %v5839
          %v5842 = vunpack.c.l.s4 1966171168
          %v5843 = vunpack.c.0.s8 %v5842
          %v5844 = vlaneseq
          %v5845 = vshrl.u32 %v5844, 7
          %v5846 = vsub.s32 %v5843, %v5845
          %v5847 = vrot.slane %v5819, %v5846
          %v5848 = vcombine.low %v5826, %v5833
          %v5849 = vcombine.low %v5840, %v5847
          %v5851 = vunpack.c.l.s4 1966171168
          %v5852 = vunpack.c.0.s8 %v5851
          %v5853 = vlaneseq
          %v5854 = vshrl.u32 %v5853, 7
          %v5855 = vsub.s32 %v5852, %v5854
          %v5856 = vrot.slane %v5848, %v5855
          %v5858 = vunpack.c.l.s4 1966171168
          %v5859 = vunpack.c.0.s8 %v5858
          %v5860 = vlaneseq
          %v5861 = vshrl.u32 %v5860, 7
          %v5862 = vsub.s32 %v5859, %v5861
          %v5863 = vrot.slane %v5849, %v5862
          %v5864 = vcombine.low %v5856, %v5863
          %v5866 = vadd.f32 %v5807, %v5864
          %5867 = vst [vmem:[%s761] sm:$0xff] %v5866
        $region124: #{tpu_custom_call.1} parent=95 // pred_fallthru
          _
        // Predicated region
        $region125: #{tpu_custom_call.1} parent=95 // pred_check
          %p5868 = pneg %p5620
        $region126: #{tpu_custom_call.1} parent=95 // pred_check_branch
          %5870 = sbr.rel (%p5868) target = $region128
        $region127: #{tpu_custom_call.1} parent=95 // pred_region
          %v5871 = vld [vmem:[%s761] sm:$0xff]
          %v5872 = vmul.f32 %v5871, 0.0078125
          %5873 = vst [vmem:[%s761] sm:$0xff] %v5872
        $region128: #{tpu_custom_call.1} parent=95 // pred_fallthru
          _
        %s5874 = sand.u32 %s470, 1
        %s5875 = scalar_lea.sflag [#allocation4], %s5874
        %s5876 = sand.u32 %s470, 1
        %s5877 = smul.addr %s5876, 512
        %s5878 = scalar_lea.vmem [#allocation11], %s5877
        %s5879 = sand.u32 %s42, 1
        %s5880 = scalar_lea.sflag [#allocation13], %s5879
        %s5881 = sand.u32 %s496, 1
        %s5882 = smul.addr %s5881, 8
        %s5883 = scalar_lea.vmem [#allocation12], %s5882
        %s5884 = sand.u32 %s42, 1
        %s5885 = scalar_lea.sflag [#allocation13], %s5884
        %s5886 = sand.u32 %s522, 1
        %s5887 = smul.addr %s5886, 8
        %s5888 = scalar_lea.vmem [#allocation14], %s5887
        // Predicated region
        $region129: #{tpu_custom_call.1} parent=95 // pred_check
          %p5889 = pneg %p480
        $region130: #{tpu_custom_call.1} parent=95 // pred_check_branch
          %5891 = sbr.rel (%p5889) target = $region132
        $region131: #{tpu_custom_call.1} parent=95 // pred_region
          %s5892 = smul.u32 16, %s47
          %s5894 = ssub.s32 8192, 8192
          %5895 = vsyncadd %s5875, %s5894
          %s5896 = smul.addr %s5892, 8
          %s5897 = smul.addr %s46, 128
          %s5898 = sadd.s32 %s5896, %s5897
          %s5899 = smul.addr %s5898, 64
          %s5900 = scalar_lea.hbm %s19, %s5899
          %s5901 = sshll.u32 %s5878, 4
          %s5902 = int_to_ptr.vmem [resolvable:$true] %s5901
          %5907 = dma.vmem_to_hbm [thread:$0]  %s5902, 8192, %s5900, %s5875, 512, 512, 32
        $region132: #{tpu_custom_call.1} parent=95 // pred_fallthru
          _
        // Predicated region
        $region133: #{tpu_custom_call.1} parent=95 // pred_check
          %p5908 = pneg %p506
        $region134: #{tpu_custom_call.1} parent=95 // pred_check_branch
          %5910 = sbr.rel (%p5908) target = $region136
        $region135: #{tpu_custom_call.1} parent=95 // pred_region
          %s5912 = ssub.s32 128, 128
          %5913 = vsyncadd %s5880, %s5912
          %s5914 = smul.addr %s46, 8
          %s5915 = smul.addr %s5914, 16
          %s5916 = scalar_lea.hbm %s20, %s5915
          %s5918 = sshll.u32 %s5883, 4
          %s5919 = int_to_ptr.vmem [resolvable:$true] %s5918
          %5921 = dma.vmem_to_hbm [thread:$0]  %s5919, 128, %s5916, %s5880
        $region136: #{tpu_custom_call.1} parent=95 // pred_fallthru
          _
        // Predicated region
        $region137: #{tpu_custom_call.1} parent=95 // pred_check
          %p5922 = pneg %p532
        $region138: #{tpu_custom_call.1} parent=95 // pred_check_branch
          %5924 = sbr.rel (%p5922) target = $region140
        $region139: #{tpu_custom_call.1} parent=95 // pred_region
          %s5926 = ssub.s32 128, 128
          %5927 = vsyncadd %s5885, %s5926
          %s5928 = smul.addr %s46, 8
          %s5929 = smul.addr %s5928, 16
          %s5930 = scalar_lea.hbm %s21, %s5929
          %s5932 = sshll.u32 %s5888, 4
          %s5933 = int_to_ptr.vmem [resolvable:$true] %s5932
          %5935 = dma.vmem_to_hbm [thread:$0]  %s5933, 128, %s5930, %s5885
        $region140: #{tpu_custom_call.1} parent=95 // pred_fallthru
          _
      $region96: #{tpu_custom_call.1} parent=5 // pred_fallthru
        _
      %p5936 = scmp.le.s32.totalorder 2, %s37
      // Predicated region
      $region141: #{tpu_custom_call.1} parent=5 // pred_check
        %p5937 = pneg %p5936
      $region142: #{tpu_custom_call.1} parent=5 // pred_check_branch
        %5939 = sbr.rel (%p5937) target = $region144
      $region143: #{tpu_custom_call.1} parent=5 // pred_region
        %s5940 = ssub.s32 %s37, 2
        // Predicated region
        $region145: #{tpu_custom_call.1} parent=143 // pred_check
          %p5941 = pneg %p486
        $region146: #{tpu_custom_call.1} parent=143 // pred_check_branch
          %5943 = sbr.rel (%p5941) target = $region148
        $region147: #{tpu_custom_call.1} parent=143 // pred_region
          %s5944 = sand.u32 %s471, 1
          %s5945 = scalar_lea.sflag [#allocation4], %s5944
          %s5946 = sand.u32 %s471, 1
          %s5947 = smul.addr %s5946, 512
          %s5948 = scalar_lea.vmem [#allocation11], %s5947
          %5949 = dma.done %s5945, 8192
        $region148: #{tpu_custom_call.1} parent=143 // pred_fallthru
          _
        // Predicated region
        $region149: #{tpu_custom_call.1} parent=143 // pred_check
          %p5950 = pneg %p512
        $region150: #{tpu_custom_call.1} parent=143 // pred_check_branch
          %5952 = sbr.rel (%p5950) target = $region152
        $region151: #{tpu_custom_call.1} parent=143 // pred_region
          %s5953 = sand.u32 %s43, 1
          %s5954 = scalar_lea.sflag [#allocation13], %s5953
          %s5955 = sand.u32 %s497, 1
          %s5956 = smul.addr %s5955, 8
          %s5957 = scalar_lea.vmem [#allocation12], %s5956
          %5958 = dma.done %s5954, 128
        $region152: #{tpu_custom_call.1} parent=143 // pred_fallthru
          _
        // Predicated region
        $region153: #{tpu_custom_call.1} parent=143 // pred_check
          %p5959 = pneg %p538
        $region154: #{tpu_custom_call.1} parent=143 // pred_check_branch
          %5961 = sbr.rel (%p5959) target = $region156
        $region155: #{tpu_custom_call.1} parent=143 // pred_region
          %s5962 = sand.u32 %s43, 1
          %s5963 = scalar_lea.sflag [#allocation13], %s5962
          %s5964 = sand.u32 %s523, 1
          %s5965 = smul.addr %s5964, 8
          %s5966 = scalar_lea.vmem [#allocation14], %s5965
          %5967 = dma.done %s5963, 128
        $region156: #{tpu_custom_call.1} parent=143 // pred_fallthru
          _
      $region144: #{tpu_custom_call.1} parent=5 // pred_fallthru
        _
    $region6: #{tpu_custom_call.1} parent=1 // loop_footer
      %s41 = sadd.s32 1, %s37
    $region7: #{tpu_custom_call.1} parent=1 // loop_footer_branch
      %36 = sbr.rel target = $region3
    $region8: #{tpu_custom_call.1} parent=1 // loop_exit
      _
    %5968 = vsyncpa [#allocation3], 1
    %s5969 = scalar_lea.sflag [#allocation3], 1
    %5970 = vsyncpa %s5969, 1
    %5971 = vsyncpa [#allocation6], 1
    %5972 = vsyncpa [#allocation9], 1
    %5973 = vsyncpa [#allocation4], 1
    %s5974 = scalar_lea.sflag [#allocation4], 1
    %5975 = vsyncpa %s5974, 1
    %5976 = vsyncpa [#allocation13], 1
    %s5977 = scalar_lea.sflag [#allocation13], 1
    %5978 = vsyncpa %s5977, 1

</llo_original>
